<compile_context>
chip_gen: v7x
topology: tpu7x:2x2x1
jax: 0.10.0
libtpu: 0.0.40
codegen_flags: <defaults>
</compile_context>

<pallas_src>
import functools

import jax
import jax.numpy as jnp
from jax.experimental import pallas as pl
from jax.experimental.pallas import tpu as pltpu


def mha_kernel(q_ref, k_ref, v_ref,
               wq_ref, bq_ref, wk_ref, bk_ref, wv_ref, bv_ref,
               wo_ref, bo_ref, gamma_ref, beta_ref,
               out_ref, *rest,
               n_heads, d_k, d_v, return_attn):
    # q_ref:  (1, tq, d_model)           k_ref / v_ref: (1, S_kv, d_model)
    # wq/wk:  (H, d_model, d_k)          wv: (H, d_model, d_v)   wo: (H, d_v, d_model)
    # bq/bk:  (H, 1, d_k)                bv: (H, 1, d_v)
    # bo/gamma/beta: (1, d_model)
    # out_ref: (1, tq, d_model)          attn_ref (opt): (1, H, tq, S_kv)
    # k_scr:  (H, S_kv, d_k) scratch     v_scr: (H, S_kv, d_v) scratch
    if return_attn:
        attn_ref, k_scr, v_scr = rest
    else:
        attn_ref = None
        k_scr, v_scr = rest

    cdt = wq_ref.dtype                     # MXU operand dtype (f32 or bf16)
    q_in = q_ref[0]                        # (tq, d_model)

    # ---- K/V head projections: once per batch, reused across all q tiles ----
    @pl.when(pl.program_id(1) == 0)
    def _():
        k_in = k_ref[0].astype(cdt)        # (S_kv, d_model)
        v_in = v_ref[0].astype(cdt)
        for h in range(n_heads):           # static unroll over heads
            k_h = (jnp.dot(k_in, wk_ref[h, :, :],
                           preferred_element_type=jnp.float32)
                   + bk_ref[h, :, :].astype(jnp.float32))
            v_h = (jnp.dot(v_in, wv_ref[h, :, :],
                           preferred_element_type=jnp.float32)
                   + bv_ref[h, :, :].astype(jnp.float32))
            k_scr[h, :, :] = k_h.astype(k_scr.dtype)
            v_scr[h, :, :] = v_h.astype(v_scr.dtype)

    # ---- per-head attention with fused output projection ----
    scale = 1.0 / (d_k ** 0.5)
    dn = (((1,), (1,)), ((), ()))          # contract last axis of both (Q @ K^T)
    q_c = q_in.astype(cdt)

    # residual (Q) and output-projection bias folded into the accumulator init
    y = q_in.astype(jnp.float32) + bo_ref[...].astype(jnp.float32)

    for h in range(n_heads):               # static unroll over heads
        q_h = (jnp.dot(q_c, wq_ref[h, :, :],
                       preferred_element_type=jnp.float32)
               + bq_ref[h, :, :].astype(jnp.float32)) * scale
        s = jax.lax.dot_general(q_h.astype(cdt), k_scr[h, :, :], dn,
                                preferred_element_type=jnp.float32)
        m = jnp.max(s, axis=-1, keepdims=True)
        e = jnp.exp(s - m)
        inv_l = pl.reciprocal(jnp.sum(e, axis=-1, keepdims=True), approx=True)

        if return_attn:
            a = e * inv_l
            attn_ref[0, h, :, :] = a.astype(attn_ref.dtype)
            ctx = jnp.dot(a.astype(cdt), v_scr[h, :, :],
                          preferred_element_type=jnp.float32)
        else:
            # defer the 1/sum normalization into the (tq, d_v) context
            ctx = jnp.dot(e.astype(cdt), v_scr[h, :, :],
                          preferred_element_type=jnp.float32) * inv_l

        # fused output projection: y += ctx_h @ W_O[h]   (no concatenate)
        y = y + jnp.dot(ctx.astype(cdt), wo_ref[h, :, :],
                        preferred_element_type=jnp.float32)

    # ---- LayerNorm epilogue (f32, PyTorch-style biased variance) ----
    d_model = y.shape[-1]
    inv_d = 1.0 / d_model                  # compile-time constant
    mean = jnp.sum(y, axis=-1, keepdims=True) * inv_d
    c = y - mean
    var = jnp.sum(c * c, axis=-1, keepdims=True) * inv_d
    inv = jax.lax.rsqrt(var + 1e-5)        # EUP slot
    out = (c * inv) * gamma_ref[...].astype(jnp.float32) \
        + beta_ref[...].astype(jnp.float32)

    out_ref[0] = out.astype(out_ref.dtype)


def multi_head_attention(Q, K, V, wq, bq, wk, bk, wv, bv, wo, bo, gamma, beta,
                         *, n_heads, d_k, d_v, q_tile=None,
                         mxu_dtype=None, return_attn=True):
    """Q/K/V: [B, S, d_model] -> (out [B, S, d_model], attn [B, H, S, S_kv] or None)."""
    B, S, d_model = Q.shape
    S_kv = K.shape[1]
    hk, hv = n_heads * d_k, n_heads * d_v

    if q_tile is None:
        q_tile = S if S <= 256 else 256
    assert S % q_tile == 0, "seq length must be divisible by q_tile"
    nq = S // q_tile

    cdt = jnp.dtype(mxu_dtype) if mxu_dtype is not None else Q.dtype

    # Head-major weight layout (wrapper-side plumbing): no lane-offset head
    # slicing inside the kernel.
    wq_h = wq.reshape(d_model, n_heads, d_k).transpose(1, 0, 2).astype(cdt)
    wk_h = wk.reshape(d_model, n_heads, d_k).transpose(1, 0, 2).astype(cdt)
    wv_h = wv.reshape(d_model, n_heads, d_v).transpose(1, 0, 2).astype(cdt)
    wo_h = wo.reshape(n_heads, d_v, d_model).astype(cdt)
    bq_h = bq.reshape(n_heads, 1, d_k).astype(jnp.float32)
    bk_h = bk.reshape(n_heads, 1, d_k).astype(jnp.float32)
    bv_h = bv.reshape(n_heads, 1, d_v).astype(jnp.float32)
    bo2 = bo.reshape(1, d_model).astype(jnp.float32)
    gamma2 = gamma.reshape(1, d_model).astype(jnp.float32)
    beta2 = beta.reshape(1, d_model).astype(jnp.float32)

    # --- cost estimate (K/V projections counted once per batch) ---
    itemsize = Q.dtype.itemsize
    wsize = jnp.dtype(cdt).itemsize
    flops = (2 * B * S * d_model * hk            # Q projection
             + 2 * B * S_kv * d_model * hk       # K projection (per batch)
             + 2 * B * S_kv * d_model * hv       # V projection (per batch)
             + 2 * B * n_heads * S * S_kv * d_k  # Q @ K^T
             + 2 * B * n_heads * S * S_kv * d_v  # attn @ V
             + 2 * B * S * hv * d_model)         # output projection
    bytes_accessed = ((Q.size + K.size + V.size) * itemsize
                      + (wq_h.size + wk_h.size + wv_h.size + wo_h.size) * wsize
                      + (bq.size + bk.size + bv.size + bo.size
                         + gamma.size + beta.size) * 4
                      + B * S * d_model * itemsize)
    if return_attn:
        bytes_accessed += B * n_heads * S * S_kv * itemsize
    cost = pl.CostEstimate(flops=int(flops),
                           transcendentals=int(B * n_heads * S * S_kv),
                           bytes_accessed=int(bytes_accessed))

    in_specs = [
        pl.BlockSpec((1, q_tile, d_model), lambda b, i: (b, i, 0)),      # Q rows
        pl.BlockSpec((1, S_kv, d_model), lambda b, i: (b, 0, 0)),        # K (full seq)
        pl.BlockSpec((1, S_kv, d_model), lambda b, i: (b, 0, 0)),        # V (full seq)
        pl.BlockSpec((n_heads, d_model, d_k), lambda b, i: (0, 0, 0)),   # W_Q (head-major)
        pl.BlockSpec((n_heads, 1, d_k), lambda b, i: (0, 0, 0)),         # b_Q
        pl.BlockSpec((n_heads, d_model, d_k), lambda b, i: (0, 0, 0)),   # W_K
        pl.BlockSpec((n_heads, 1, d_k), lambda b, i: (0, 0, 0)),         # b_K
        pl.BlockSpec((n_heads, d_model, d_v), lambda b, i: (0, 0, 0)),   # W_V
        pl.BlockSpec((n_heads, 1, d_v), lambda b, i: (0, 0, 0)),         # b_V
        pl.BlockSpec((n_heads, d_v, d_model), lambda b, i: (0, 0, 0)),   # W_O (head-major)
        pl.BlockSpec((1, d_model), lambda b, i: (0, 0)),                 # b_O
        pl.BlockSpec((1, d_model), lambda b, i: (0, 0)),                 # gamma
        pl.BlockSpec((1, d_model), lambda b, i: (0, 0)),                 # beta
    ]
    out_spec_y = pl.BlockSpec((1, q_tile, d_model), lambda b, i: (b, i, 0))
    if return_attn:
        out_shape = (jax.ShapeDtypeStruct((B, S, d_model), Q.dtype),
                     jax.ShapeDtypeStruct((B, n_heads, S, S_kv), Q.dtype))
        out_specs = [out_spec_y,
                     pl.BlockSpec((1, n_heads, q_tile, S_kv),
                                  lambda b, i: (b, 0, i, 0))]
    else:
        out_shape = jax.ShapeDtypeStruct((B, S, d_model), Q.dtype)
        out_specs = out_spec_y

    scratch_shapes = [pltpu.VMEM((n_heads, S_kv, d_k), cdt),   # projected K (per head)
                      pltpu.VMEM((n_heads, S_kv, d_v), cdt)]   # projected V (per head)

    kernel = functools.partial(mha_kernel, n_heads=n_heads, d_k=d_k, d_v=d_v,
                               return_attn=return_attn)

    result = pl.pallas_call(
        kernel,
        out_shape=out_shape,
        grid_spec=pltpu.PrefetchScalarGridSpec(
            num_scalar_prefetch=0,
            grid=(B, nq),
            in_specs=in_specs,
            out_specs=out_specs,
            scratch_shapes=scratch_shapes),
        compiler_params=pltpu.CompilerParams(
            # q axis is "arbitrary" so the K/V projection scratch computed at
            # program_id(1)==0 is reused across q tiles of the same batch;
            # batch axis stays megacore-parallel.
            dimension_semantics=("parallel", "arbitrary"),
            vmem_limit_bytes=64 * 1024 * 1024),
        cost_estimate=cost,
    )(Q, K, V, wq_h, bq_h, wk_h, bk_h, wv_h, bv_h, wo_h, bo2, gamma2, beta2)

    if return_attn:
        out, attn = result
        return out, attn
    return result, None


def _reference(Q, K, V, wq, bq, wk, bk, wv, bv, wo, bo, gamma, beta,
               *, n_heads, d_k, d_v):
    B, S, d_model = Q.shape
    hp = jax.lax.Precision.HIGHEST
    q_s = (jnp.matmul(Q, wq, precision=hp) + bq).reshape(B, S, n_heads, d_k).transpose(0, 2, 1, 3)
    k_s = (jnp.matmul(K, wk, precision=hp) + bk).reshape(B, -1, n_heads, d_k).transpose(0, 2, 1, 3)
    v_s = (jnp.matmul(V, wv, precision=hp) + bv).reshape(B, -1, n_heads, d_v).transpose(0, 2, 1, 3)
    scores = jnp.einsum('bhqd,bhkd->bhqk', q_s, k_s, precision=hp) / jnp.sqrt(jnp.float32(d_k))
    attn = jax.nn.softmax(scores, axis=-1)
    context = jnp.einsum('bhqk,bhkd->bhqd', attn, v_s, precision=hp)
    context = context.transpose(0, 2, 1, 3).reshape(B, S, n_heads * d_v)
    y = jnp.matmul(context, wo, precision=hp) + bo + Q
    mean = jnp.mean(y, axis=-1, keepdims=True)
    var = jnp.mean((y - mean) ** 2, axis=-1, keepdims=True)
    out = (y - mean) / jnp.sqrt(var + 1e-5) * gamma + beta
    return out, attn


if __name__ == "__main__":
    # small shapes consistent with the module; S=32 with q_tile=16 gives two
    # q tiles per batch so the hoisted-K/V-projection path is exercised.
    B, S, d_model = 2, 32, 128
    n_heads, d_k, d_v = 4, 32, 32

    key = jax.random.PRNGKey(0)
    ks = jax.random.split(key, 11)
    wscale = 1.0 / (d_model ** 0.5)

    Q = jax.random.normal(ks[0], (B, S, d_model), jnp.float32)
    K = jax.random.normal(ks[1], (B, S, d_model), jnp.float32)
    V = jax.random.normal(ks[2], (B, S, d_model), jnp.float32)

    wq = jax.random.normal(ks[3], (d_model, n_heads * d_k), jnp.float32) * wscale
    wk = jax.random.normal(ks[4], (d_model, n_heads * d_k), jnp.float32) * wscale
    wv = jax.random.normal(ks[5], (d_model, n_heads * d_v), jnp.float32) * wscale
    wo = jax.random.normal(ks[6], (n_heads * d_v, d_model), jnp.float32) * (1.0 / (n_heads * d_v) ** 0.5)
    bq = jax.random.normal(ks[7], (n_heads * d_k,), jnp.float32) * 0.02
    bk = jax.random.normal(ks[8], (n_heads * d_k,), jnp.float32) * 0.02
    bv = jax.random.normal(ks[9], (n_heads * d_v,), jnp.float32) * 0.02
    bo = jax.random.normal(ks[10], (d_model,), jnp.float32) * 0.02
    gamma = jnp.ones((d_model,), jnp.float32)   # nn.LayerNorm weight init
    beta = jnp.zeros((d_model,), jnp.float32)   # nn.LayerNorm bias init

    ref_out, ref_attn = _reference(
        Q, K, V, wq, bq, wk, bk, wv, bv, wo, bo, gamma, beta,
        n_heads=n_heads, d_k=d_k, d_v=d_v)

    # 1) module-faithful path: f32 MXU operands, attn returned
    out, attn = multi_head_attention(
        Q, K, V, wq, bq, wk, bk, wv, bv, wo, bo, gamma, beta,
        n_heads=n_heads, d_k=d_k, d_v=d_v, q_tile=16, return_attn=True)
    out = jax.block_until_ready(out)
    attn = jax.block_until_ready(attn)

    assert out.shape == (B, S, d_model)
    assert attn.shape == (B, n_heads, S, S)
    assert jnp.allclose(out, ref_out, atol=2e-2, rtol=2e-2), "output mismatch vs reference"
    assert jnp.allclose(attn, ref_attn, atol=2e-2, rtol=2e-2), "attn mismatch vs reference"

    # 2) perf path: bf16 MXU operands (f32 accumulation), no attn writeback
    out_fast, _ = multi_head_attention(
        Q, K, V, wq, bq, wk, bk, wv, bv, wo, bo, gamma, beta,
        n_heads=n_heads, d_k=d_k, d_v=d_v, q_tile=16,
        mxu_dtype=jnp.bfloat16, return_attn=False)
    out_fast = jax.block_until_ready(out_fast)

    assert out_fast.shape == (B, S, d_model)
    assert jnp.allclose(out_fast, ref_out, atol=6e-2, rtol=6e-2), \
        "bf16-path output mismatch vs reference"

    print("KERNEL_OK")
</pallas_src>

<mosaic_0001>
module attributes {stable_mosaic.version = 11 : i64} {
  func.func @mha_kernel(%arg0: i32, %arg1: i32, %arg2: memref<1x16x128xf32, #tpu.memory_space<vmem>>, %arg3: memref<1x32x128xf32, #tpu.memory_space<vmem>>, %arg4: memref<1x32x128xf32, #tpu.memory_space<vmem>>, %arg5: memref<4x128x32xf32, #tpu.memory_space<vmem>>, %arg6: memref<4x1x32xf32, #tpu.memory_space<vmem>>, %arg7: memref<4x128x32xf32, #tpu.memory_space<vmem>>, %arg8: memref<4x1x32xf32, #tpu.memory_space<vmem>>, %arg9: memref<4x128x32xf32, #tpu.memory_space<vmem>>, %arg10: memref<4x1x32xf32, #tpu.memory_space<vmem>>, %arg11: memref<4x32x128xf32, #tpu.memory_space<vmem>>, %arg12: memref<1x128xf32, #tpu.memory_space<vmem>>, %arg13: memref<1x128xf32, #tpu.memory_space<vmem>>, %arg14: memref<1x128xf32, #tpu.memory_space<vmem>>, %arg15: memref<1x16x128xf32, #tpu.memory_space<vmem>>, %arg16: memref<1x4x16x32xf32, #tpu.memory_space<vmem>>, %arg17: memref<4x32x32xf32, #tpu.memory_space<vmem>>, %arg18: memref<4x32x32xf32, #tpu.memory_space<vmem>>) attributes {dimension_semantics = [#tpu.dimension_semantics<parallel>, #tpu.dimension_semantics<arbitrary>], iteration_bounds = array<i64: 2, 2>, scalar_prefetch = 0 : i64, scratch_operands = 2 : i64, tpu.core_type = #tpu.core_type<tc>, window_params = [{transform_indices = @transform_0, window_bounds = array<i64: 1, 16, 128>}, {transform_indices = @transform_1, window_bounds = array<i64: 1, 32, 128>}, {transform_indices = @transform_2, window_bounds = array<i64: 1, 32, 128>}, {pipeline_mode = #tpu.pipeline_mode<synchronous>, transform_indices = @transform_3, window_bounds = array<i64: 4, 128, 32>}, {pipeline_mode = #tpu.pipeline_mode<synchronous>, transform_indices = @transform_4, window_bounds = array<i64: 4, 1, 32>}, {pipeline_mode = #tpu.pipeline_mode<synchronous>, transform_indices = @transform_5, window_bounds = array<i64: 4, 128, 32>}, {pipeline_mode = #tpu.pipeline_mode<synchronous>, transform_indices = @transform_6, window_bounds = array<i64: 4, 1, 32>}, {pipeline_mode = #tpu.pipeline_mode<synchronous>, transform_indices = @transform_7, window_bounds = array<i64: 4, 128, 32>}, {pipeline_mode = #tpu.pipeline_mode<synchronous>, transform_indices = @transform_8, window_bounds = array<i64: 4, 1, 32>}, {pipeline_mode = #tpu.pipeline_mode<synchronous>, transform_indices = @transform_9, window_bounds = array<i64: 4, 32, 128>}, {pipeline_mode = #tpu.pipeline_mode<synchronous>, transform_indices = @transform_10, window_bounds = array<i64: 1, 128>}, {pipeline_mode = #tpu.pipeline_mode<synchronous>, transform_indices = @transform_11, window_bounds = array<i64: 1, 128>}, {pipeline_mode = #tpu.pipeline_mode<synchronous>, transform_indices = @transform_12, window_bounds = array<i64: 1, 128>}, {transform_indices = @transform_13, window_bounds = array<i64: 1, 16, 128>}, {transform_indices = @transform_14, window_bounds = array<i64: 1, 4, 16, 32>}]} {
    %c0 = arith.constant 0 : index
    %c0_0 = arith.constant 0 : index
    %c0_1 = arith.constant 0 : index
    %0 = vector.load %arg2[%c0, %c0_0, %c0_1] : memref<1x16x128xf32, #tpu.memory_space<vmem>>, vector<1x16x128xf32>
    %1 = vector.shape_cast %0 : vector<1x16x128xf32> to vector<16x128xf32>
    %c0_i32 = arith.constant 0 : i32
    %2 = arith.cmpi eq, %arg1, %c0_i32 : i32
    %3 = arith.extui %2 : i1 to i32
    %c0_i32_2 = arith.constant 0 : i32
    %4 = arith.cmpi ne, %3, %c0_i32_2 : i32
    scf.if %4 {
      %c0_117 = arith.constant 0 : index
      %c0_118 = arith.constant 0 : index
      %c0_119 = arith.constant 0 : index
      %161 = vector.load %arg3[%c0_117, %c0_118, %c0_119] : memref<1x32x128xf32, #tpu.memory_space<vmem>>, vector<1x32x128xf32>
      %162 = vector.shape_cast %161 : vector<1x32x128xf32> to vector<32x128xf32>
      %c0_120 = arith.constant 0 : index
      %c0_121 = arith.constant 0 : index
      %c0_122 = arith.constant 0 : index
      %163 = vector.load %arg4[%c0_120, %c0_121, %c0_122] : memref<1x32x128xf32, #tpu.memory_space<vmem>>, vector<1x32x128xf32>
      %164 = vector.shape_cast %163 : vector<1x32x128xf32> to vector<32x128xf32>
      %c0_123 = arith.constant 0 : index
      %c0_124 = arith.constant 0 : index
      %c0_125 = arith.constant 0 : index
      %165 = vector.load %arg7[%c0_123, %c0_124, %c0_125] : memref<4x128x32xf32, #tpu.memory_space<vmem>>, vector<1x128x32xf32>
      %166 = vector.shape_cast %165 : vector<1x128x32xf32> to vector<128x32xf32>
      %cst_126 = arith.constant dense<0.000000e+00> : vector<32x32xf32>
      %167 = tpu.matmul %162, %166, %cst_126 {dimension_numbers = #tpu.dot_dimension_numbers<[1], [0], [0], [1], [0, 0, 1, 1], [], []>} : vector<32x128xf32>, vector<128x32xf32>, vector<32x32xf32> -> vector<32x32xf32>
      %c0_127 = arith.constant 0 : index
      %c0_128 = arith.constant 0 : index
      %c0_129 = arith.constant 0 : index
      %168 = vector.load %arg8[%c0_127, %c0_128, %c0_129] : memref<4x1x32xf32, #tpu.memory_space<vmem>>, vector<1x1x32xf32>
      %169 = vector.shape_cast %168 : vector<1x1x32xf32> to vector<1x32xf32>
      %170 = vector.broadcast %169 : vector<1x32xf32> to vector<32x32xf32>
      %171 = arith.addf %167, %170 : vector<32x32xf32>
      %c0_130 = arith.constant 0 : index
      %c0_131 = arith.constant 0 : index
      %c0_132 = arith.constant 0 : index
      %172 = vector.load %arg9[%c0_130, %c0_131, %c0_132] : memref<4x128x32xf32, #tpu.memory_space<vmem>>, vector<1x128x32xf32>
      %173 = vector.shape_cast %172 : vector<1x128x32xf32> to vector<128x32xf32>
      %cst_133 = arith.constant dense<0.000000e+00> : vector<32x32xf32>
      %174 = tpu.matmul %164, %173, %cst_133 {dimension_numbers = #tpu.dot_dimension_numbers<[1], [0], [0], [1], [0, 0, 1, 1], [], []>} : vector<32x128xf32>, vector<128x32xf32>, vector<32x32xf32> -> vector<32x32xf32>
      %c0_134 = arith.constant 0 : index
      %c0_135 = arith.constant 0 : index
      %c0_136 = arith.constant 0 : index
      %175 = vector.load %arg10[%c0_134, %c0_135, %c0_136] : memref<4x1x32xf32, #tpu.memory_space<vmem>>, vector<1x1x32xf32>
      %176 = vector.shape_cast %175 : vector<1x1x32xf32> to vector<1x32xf32>
      %177 = vector.broadcast %176 : vector<1x32xf32> to vector<32x32xf32>
      %178 = arith.addf %174, %177 : vector<32x32xf32>
      %c0_137 = arith.constant 0 : index
      %c0_138 = arith.constant 0 : index
      %c0_139 = arith.constant 0 : index
      %179 = vector.load %arg17[%c0_137, %c0_138, %c0_139] : memref<4x32x32xf32, #tpu.memory_space<vmem>>, vector<1x32x32xf32>
      %180 = vector.shape_cast %179 : vector<1x32x32xf32> to vector<32x32xf32>
      %181 = vector.shape_cast %171 : vector<32x32xf32> to vector<1x32x32xf32>
      tpu.vector_store %arg17[%c0_137, %c0_138, %c0_139], %181 {strides = array<i32>} : memref<4x32x32xf32, #tpu.memory_space<vmem>>, vector<1x32x32xf32>,
      %c0_140 = arith.constant 0 : index
      %c0_141 = arith.constant 0 : index
      %c0_142 = arith.constant 0 : index
      %182 = vector.load %arg18[%c0_140, %c0_141, %c0_142] : memref<4x32x32xf32, #tpu.memory_space<vmem>>, vector<1x32x32xf32>
      %183 = vector.shape_cast %182 : vector<1x32x32xf32> to vector<32x32xf32>
      %184 = vector.shape_cast %178 : vector<32x32xf32> to vector<1x32x32xf32>
      tpu.vector_store %arg18[%c0_140, %c0_141, %c0_142], %184 {strides = array<i32>} : memref<4x32x32xf32, #tpu.memory_space<vmem>>, vector<1x32x32xf32>,
      %c1_143 = arith.constant 1 : index
      %c0_144 = arith.constant 0 : index
      %c0_145 = arith.constant 0 : index
      %185 = vector.load %arg7[%c1_143, %c0_144, %c0_145] : memref<4x128x32xf32, #tpu.memory_space<vmem>>, vector<1x128x32xf32>
      %186 = vector.shape_cast %185 : vector<1x128x32xf32> to vector<128x32xf32>
      %cst_146 = arith.constant dense<0.000000e+00> : vector<32x32xf32>
      %187 = tpu.matmul %162, %186, %cst_146 {dimension_numbers = #tpu.dot_dimension_numbers<[1], [0], [0], [1], [0, 0, 1, 1], [], []>} : vector<32x128xf32>, vector<128x32xf32>, vector<32x32xf32> -> vector<32x32xf32>
      %c1_147 = arith.constant 1 : index
      %c0_148 = arith.constant 0 : index
      %c0_149 = arith.constant 0 : index
      %188 = vector.load %arg8[%c1_147, %c0_148, %c0_149] : memref<4x1x32xf32, #tpu.memory_space<vmem>>, vector<1x1x32xf32>
      %189 = vector.shape_cast %188 : vector<1x1x32xf32> to vector<1x32xf32>
      %190 = vector.broadcast %189 : vector<1x32xf32> to vector<32x32xf32>
      %191 = arith.addf %187, %190 : vector<32x32xf32>
      %c1_150 = arith.constant 1 : index
      %c0_151 = arith.constant 0 : index
      %c0_152 = arith.constant 0 : index
      %192 = vector.load %arg9[%c1_150, %c0_151, %c0_152] : memref<4x128x32xf32, #tpu.memory_space<vmem>>, vector<1x128x32xf32>
      %193 = vector.shape_cast %192 : vector<1x128x32xf32> to vector<128x32xf32>
      %cst_153 = arith.constant dense<0.000000e+00> : vector<32x32xf32>
      %194 = tpu.matmul %164, %193, %cst_153 {dimension_numbers = #tpu.dot_dimension_numbers<[1], [0], [0], [1], [0, 0, 1, 1], [], []>} : vector<32x128xf32>, vector<128x32xf32>, vector<32x32xf32> -> vector<32x32xf32>
      %c1_154 = arith.constant 1 : index
      %c0_155 = arith.constant 0 : index
      %c0_156 = arith.constant 0 : index
      %195 = vector.load %arg10[%c1_154, %c0_155, %c0_156] : memref<4x1x32xf32, #tpu.memory_space<vmem>>, vector<1x1x32xf32>
      %196 = vector.shape_cast %195 : vector<1x1x32xf32> to vector<1x32xf32>
      %197 = vector.broadcast %196 : vector<1x32xf32> to vector<32x32xf32>
      %198 = arith.addf %194, %197 : vector<32x32xf32>
      %c1_157 = arith.constant 1 : index
      %c0_158 = arith.constant 0 : index
      %c0_159 = arith.constant 0 : index
      %199 = vector.load %arg17[%c1_157, %c0_158, %c0_159] : memref<4x32x32xf32, #tpu.memory_space<vmem>>, vector<1x32x32xf32>
      %200 = vector.shape_cast %199 : vector<1x32x32xf32> to vector<32x32xf32>
      %201 = vector.shape_cast %191 : vector<32x32xf32> to vector<1x32x32xf32>
      tpu.vector_store %arg17[%c1_157, %c0_158, %c0_159], %201 {strides = array<i32>} : memref<4x32x32xf32, #tpu.memory_space<vmem>>, vector<1x32x32xf32>,
      %c1_160 = arith.constant 1 : index
      %c0_161 = arith.constant 0 : index
      %c0_162 = arith.constant 0 : index
      %202 = vector.load %arg18[%c1_160, %c0_161, %c0_162] : memref<4x32x32xf32, #tpu.memory_space<vmem>>, vector<1x32x32xf32>
      %203 = vector.shape_cast %202 : vector<1x32x32xf32> to vector<32x32xf32>
      %204 = vector.shape_cast %198 : vector<32x32xf32> to vector<1x32x32xf32>
      tpu.vector_store %arg18[%c1_160, %c0_161, %c0_162], %204 {strides = array<i32>} : memref<4x32x32xf32, #tpu.memory_space<vmem>>, vector<1x32x32xf32>,
      %c2_163 = arith.constant 2 : index
      %c0_164 = arith.constant 0 : index
      %c0_165 = arith.constant 0 : index
      %205 = vector.load %arg7[%c2_163, %c0_164, %c0_165] : memref<4x128x32xf32, #tpu.memory_space<vmem>>, vector<1x128x32xf32>
      %206 = vector.shape_cast %205 : vector<1x128x32xf32> to vector<128x32xf32>
      %cst_166 = arith.constant dense<0.000000e+00> : vector<32x32xf32>
      %207 = tpu.matmul %162, %206, %cst_166 {dimension_numbers = #tpu.dot_dimension_numbers<[1], [0], [0], [1], [0, 0, 1, 1], [], []>} : vector<32x128xf32>, vector<128x32xf32>, vector<32x32xf32> -> vector<32x32xf32>
      %c2_167 = arith.constant 2 : index
      %c0_168 = arith.constant 0 : index
      %c0_169 = arith.constant 0 : index
      %208 = vector.load %arg8[%c2_167, %c0_168, %c0_169] : memref<4x1x32xf32, #tpu.memory_space<vmem>>, vector<1x1x32xf32>
      %209 = vector.shape_cast %208 : vector<1x1x32xf32> to vector<1x32xf32>
      %210 = vector.broadcast %209 : vector<1x32xf32> to vector<32x32xf32>
      %211 = arith.addf %207, %210 : vector<32x32xf32>
      %c2_170 = arith.constant 2 : index
      %c0_171 = arith.constant 0 : index
      %c0_172 = arith.constant 0 : index
      %212 = vector.load %arg9[%c2_170, %c0_171, %c0_172] : memref<4x128x32xf32, #tpu.memory_space<vmem>>, vector<1x128x32xf32>
      %213 = vector.shape_cast %212 : vector<1x128x32xf32> to vector<128x32xf32>
      %cst_173 = arith.constant dense<0.000000e+00> : vector<32x32xf32>
      %214 = tpu.matmul %164, %213, %cst_173 {dimension_numbers = #tpu.dot_dimension_numbers<[1], [0], [0], [1], [0, 0, 1, 1], [], []>} : vector<32x128xf32>, vector<128x32xf32>, vector<32x32xf32> -> vector<32x32xf32>
      %c2_174 = arith.constant 2 : index
      %c0_175 = arith.constant 0 : index
      %c0_176 = arith.constant 0 : index
      %215 = vector.load %arg10[%c2_174, %c0_175, %c0_176] : memref<4x1x32xf32, #tpu.memory_space<vmem>>, vector<1x1x32xf32>
      %216 = vector.shape_cast %215 : vector<1x1x32xf32> to vector<1x32xf32>
      %217 = vector.broadcast %216 : vector<1x32xf32> to vector<32x32xf32>
      %218 = arith.addf %214, %217 : vector<32x32xf32>
      %c2_177 = arith.constant 2 : index
      %c0_178 = arith.constant 0 : index
      %c0_179 = arith.constant 0 : index
      %219 = vector.load %arg17[%c2_177, %c0_178, %c0_179] : memref<4x32x32xf32, #tpu.memory_space<vmem>>, vector<1x32x32xf32>
      %220 = vector.shape_cast %219 : vector<1x32x32xf32> to vector<32x32xf32>
      %221 = vector.shape_cast %211 : vector<32x32xf32> to vector<1x32x32xf32>
      tpu.vector_store %arg17[%c2_177, %c0_178, %c0_179], %221 {strides = array<i32>} : memref<4x32x32xf32, #tpu.memory_space<vmem>>, vector<1x32x32xf32>,
      %c2_180 = arith.constant 2 : index
      %c0_181 = arith.constant 0 : index
      %c0_182 = arith.constant 0 : index
      %222 = vector.load %arg18[%c2_180, %c0_181, %c0_182] : memref<4x32x32xf32, #tpu.memory_space<vmem>>, vector<1x32x32xf32>
      %223 = vector.shape_cast %222 : vector<1x32x32xf32> to vector<32x32xf32>
      %224 = vector.shape_cast %218 : vector<32x32xf32> to vector<1x32x32xf32>
      tpu.vector_store %arg18[%c2_180, %c0_181, %c0_182], %224 {strides = array<i32>} : memref<4x32x32xf32, #tpu.memory_space<vmem>>, vector<1x32x32xf32>,
      %c3_183 = arith.constant 3 : index
      %c0_184 = arith.constant 0 : index
      %c0_185 = arith.constant 0 : index
      %225 = vector.load %arg7[%c3_183, %c0_184, %c0_185] : memref<4x128x32xf32, #tpu.memory_space<vmem>>, vector<1x128x32xf32>
      %226 = vector.shape_cast %225 : vector<1x128x32xf32> to vector<128x32xf32>
      %cst_186 = arith.constant dense<0.000000e+00> : vector<32x32xf32>
      %227 = tpu.matmul %162, %226, %cst_186 {dimension_numbers = #tpu.dot_dimension_numbers<[1], [0], [0], [1], [0, 0, 1, 1], [], []>} : vector<32x128xf32>, vector<128x32xf32>, vector<32x32xf32> -> vector<32x32xf32>
      %c3_187 = arith.constant 3 : index
      %c0_188 = arith.constant 0 : index
      %c0_189 = arith.constant 0 : index
      %228 = vector.load %arg8[%c3_187, %c0_188, %c0_189] : memref<4x1x32xf32, #tpu.memory_space<vmem>>, vector<1x1x32xf32>
      %229 = vector.shape_cast %228 : vector<1x1x32xf32> to vector<1x32xf32>
      %230 = vector.broadcast %229 : vector<1x32xf32> to vector<32x32xf32>
      %231 = arith.addf %227, %230 : vector<32x32xf32>
      %c3_190 = arith.constant 3 : index
      %c0_191 = arith.constant 0 : index
      %c0_192 = arith.constant 0 : index
      %232 = vector.load %arg9[%c3_190, %c0_191, %c0_192] : memref<4x128x32xf32, #tpu.memory_space<vmem>>, vector<1x128x32xf32>
      %233 = vector.shape_cast %232 : vector<1x128x32xf32> to vector<128x32xf32>
      %cst_193 = arith.constant dense<0.000000e+00> : vector<32x32xf32>
      %234 = tpu.matmul %164, %233, %cst_193 {dimension_numbers = #tpu.dot_dimension_numbers<[1], [0], [0], [1], [0, 0, 1, 1], [], []>} : vector<32x128xf32>, vector<128x32xf32>, vector<32x32xf32> -> vector<32x32xf32>
      %c3_194 = arith.constant 3 : index
      %c0_195 = arith.constant 0 : index
      %c0_196 = arith.constant 0 : index
      %235 = vector.load %arg10[%c3_194, %c0_195, %c0_196] : memref<4x1x32xf32, #tpu.memory_space<vmem>>, vector<1x1x32xf32>
      %236 = vector.shape_cast %235 : vector<1x1x32xf32> to vector<1x32xf32>
      %237 = vector.broadcast %236 : vector<1x32xf32> to vector<32x32xf32>
      %238 = arith.addf %234, %237 : vector<32x32xf32>
      %c3_197 = arith.constant 3 : index
      %c0_198 = arith.constant 0 : index
      %c0_199 = arith.constant 0 : index
      %239 = vector.load %arg17[%c3_197, %c0_198, %c0_199] : memref<4x32x32xf32, #tpu.memory_space<vmem>>, vector<1x32x32xf32>
      %240 = vector.shape_cast %239 : vector<1x32x32xf32> to vector<32x32xf32>
      %241 = vector.shape_cast %231 : vector<32x32xf32> to vector<1x32x32xf32>
      tpu.vector_store %arg17[%c3_197, %c0_198, %c0_199], %241 {strides = array<i32>} : memref<4x32x32xf32, #tpu.memory_space<vmem>>, vector<1x32x32xf32>,
      %c3_200 = arith.constant 3 : index
      %c0_201 = arith.constant 0 : index
      %c0_202 = arith.constant 0 : index
      %242 = vector.load %arg18[%c3_200, %c0_201, %c0_202] : memref<4x32x32xf32, #tpu.memory_space<vmem>>, vector<1x32x32xf32>
      %243 = vector.shape_cast %242 : vector<1x32x32xf32> to vector<32x32xf32>
      %244 = vector.shape_cast %238 : vector<32x32xf32> to vector<1x32x32xf32>
      tpu.vector_store %arg18[%c3_200, %c0_201, %c0_202], %244 {strides = array<i32>} : memref<4x32x32xf32, #tpu.memory_space<vmem>>, vector<1x32x32xf32>,
    } else {
    }
    %c0_3 = arith.constant 0 : index
    %c0_4 = arith.constant 0 : index
    %5 = vector.load %arg12[%c0_3, %c0_4] : memref<1x128xf32, #tpu.memory_space<vmem>>, vector<1x128xf32>
    %6 = vector.broadcast %5 : vector<1x128xf32> to vector<16x128xf32>
    %7 = arith.addf %1, %6 : vector<16x128xf32>
    %c0_5 = arith.constant 0 : index
    %c0_6 = arith.constant 0 : index
    %c0_7 = arith.constant 0 : index
    %8 = vector.load %arg5[%c0_5, %c0_6, %c0_7] : memref<4x128x32xf32, #tpu.memory_space<vmem>>, vector<1x128x32xf32>
    %9 = vector.shape_cast %8 : vector<1x128x32xf32> to vector<128x32xf32>
    %cst = arith.constant dense<0.000000e+00> : vector<16x32xf32>
    %10 = tpu.matmul %1, %9, %cst {dimension_numbers = #tpu.dot_dimension_numbers<[1], [0], [0], [1], [0, 0, 1, 1], [], []>} : vector<16x128xf32>, vector<128x32xf32>, vector<16x32xf32> -> vector<16x32xf32>
    %c0_8 = arith.constant 0 : index
    %c0_9 = arith.constant 0 : index
    %c0_10 = arith.constant 0 : index
    %11 = vector.load %arg6[%c0_8, %c0_9, %c0_10] : memref<4x1x32xf32, #tpu.memory_space<vmem>>, vector<1x1x32xf32>
    %12 = vector.shape_cast %11 : vector<1x1x32xf32> to vector<1x32xf32>
    %13 = vector.broadcast %12 : vector<1x32xf32> to vector<16x32xf32>
    %14 = arith.addf %10, %13 : vector<16x32xf32>
    %cst_11 = arith.constant 0.176776692 : f32
    %15 = vector.broadcast %cst_11 : f32 to vector<16x32xf32>
    %16 = arith.mulf %14, %15 : vector<16x32xf32>
    %c0_12 = arith.constant 0 : index
    %c0_13 = arith.constant 0 : index
    %c0_14 = arith.constant 0 : index
    %17 = vector.load %arg17[%c0_12, %c0_13, %c0_14] : memref<4x32x32xf32, #tpu.memory_space<vmem>>, vector<1x32x32xf32>
    %18 = vector.shape_cast %17 : vector<1x32x32xf32> to vector<32x32xf32>
    %cst_15 = arith.constant dense<0.000000e+00> : vector<16x32xf32>
    %19 = tpu.matmul %16, %18, %cst_15 {dimension_numbers = #tpu.dot_dimension_numbers<[1], [1], [0], [0], [0, 0, 1, 0], [], []>} : vector<16x32xf32>, vector<32x32xf32>, vector<16x32xf32> -> vector<16x32xf32>
    %cst_16 = arith.constant dense<0xFF800000> : vector<16xf32>
    %20 = vector.multi_reduction <maximumf>, %19, %cst_16 [1] : vector<16x32xf32> to vector<16xf32>
    %21 = vector.shape_cast %20 : vector<16xf32> to vector<16x1xf32>
    %22 = vector.broadcast %21 : vector<16x1xf32> to vector<16x32xf32>
    %23 = arith.subf %19, %22 : vector<16x32xf32>
    %24 = math.exp %23 : vector<16x32xf32>
    %cst_17 = arith.constant dense<0.000000e+00> : vector<16xf32>
    %25 = vector.multi_reduction <add>, %24, %cst_17 [1] : vector<16x32xf32> to vector<16xf32>
    %26 = vector.shape_cast %25 : vector<16xf32> to vector<16x1xf32>
    %27 = tpu.reciprocal %26 {approx = true} : vector<16x1xf32> -> vector<16x1xf32>
    %28 = vector.broadcast %27 : vector<16x1xf32> to vector<16x32xf32>
    %29 = arith.mulf %24, %28 : vector<16x32xf32>
    %c0_18 = arith.constant 0 : index
    %c0_19 = arith.constant 0 : index
    %c0_20 = arith.constant 0 : index
    %c0_21 = arith.constant 0 : index
    %30 = vector.load %arg16[%c0_18, %c0_19, %c0_20, %c0_21] : memref<1x4x16x32xf32, #tpu.memory_space<vmem>>, vector<1x1x16x32xf32>
    %31 = vector.shape_cast %30 : vector<1x1x16x32xf32> to vector<16x32xf32>
    %32 = vector.shape_cast %29 : vector<16x32xf32> to vector<1x1x16x32xf32>
    tpu.vector_store %arg16[%c0_18, %c0_19, %c0_20, %c0_21], %32 {strides = array<i32>} : memref<1x4x16x32xf32, #tpu.memory_space<vmem>>, vector<1x1x16x32xf32>,
    %c0_22 = arith.constant 0 : index
    %c0_23 = arith.constant 0 : index
    %c0_24 = arith.constant 0 : index
    %33 = vector.load %arg18[%c0_22, %c0_23, %c0_24] : memref<4x32x32xf32, #tpu.memory_space<vmem>>, vector<1x32x32xf32>
    %34 = vector.shape_cast %33 : vector<1x32x32xf32> to vector<32x32xf32>
    %cst_25 = arith.constant dense<0.000000e+00> : vector<16x32xf32>
    %35 = tpu.matmul %29, %34, %cst_25 {dimension_numbers = #tpu.dot_dimension_numbers<[1], [0], [0], [1], [0, 0, 1, 1], [], []>} : vector<16x32xf32>, vector<32x32xf32>, vector<16x32xf32> -> vector<16x32xf32>
    %c0_26 = arith.constant 0 : index
    %c0_27 = arith.constant 0 : index
    %c0_28 = arith.constant 0 : index
    %36 = vector.load %arg11[%c0_26, %c0_27, %c0_28] : memref<4x32x128xf32, #tpu.memory_space<vmem>>, vector<1x32x128xf32>
    %37 = vector.shape_cast %36 : vector<1x32x128xf32> to vector<32x128xf32>
    %cst_29 = arith.constant dense<0.000000e+00> : vector<16x128xf32>
    %38 = tpu.matmul %35, %37, %cst_29 {dimension_numbers = #tpu.dot_dimension_numbers<[1], [0], [0], [1], [0, 0, 1, 1], [], []>} : vector<16x32xf32>, vector<32x128xf32>, vector<16x128xf32> -> vector<16x128xf32>
    %39 = arith.addf %7, %38 : vector<16x128xf32>
    %c1 = arith.constant 1 : index
    %c0_30 = arith.constant 0 : index
    %c0_31 = arith.constant 0 : index
    %40 = vector.load %arg5[%c1, %c0_30, %c0_31] : memref<4x128x32xf32, #tpu.memory_space<vmem>>, vector<1x128x32xf32>
    %41 = vector.shape_cast %40 : vector<1x128x32xf32> to vector<128x32xf32>
    %cst_32 = arith.constant dense<0.000000e+00> : vector<16x32xf32>
    %42 = tpu.matmul %1, %41, %cst_32 {dimension_numbers = #tpu.dot_dimension_numbers<[1], [0], [0], [1], [0, 0, 1, 1], [], []>} : vector<16x128xf32>, vector<128x32xf32>, vector<16x32xf32> -> vector<16x32xf32>
    %c1_33 = arith.constant 1 : index
    %c0_34 = arith.constant 0 : index
    %c0_35 = arith.constant 0 : index
    %43 = vector.load %arg6[%c1_33, %c0_34, %c0_35] : memref<4x1x32xf32, #tpu.memory_space<vmem>>, vector<1x1x32xf32>
    %44 = vector.shape_cast %43 : vector<1x1x32xf32> to vector<1x32xf32>
    %45 = vector.broadcast %44 : vector<1x32xf32> to vector<16x32xf32>
    %46 = arith.addf %42, %45 : vector<16x32xf32>
    %cst_36 = arith.constant 0.176776692 : f32
    %47 = vector.broadcast %cst_36 : f32 to vector<16x32xf32>
    %48 = arith.mulf %46, %47 : vector<16x32xf32>
    %c1_37 = arith.constant 1 : index
    %c0_38 = arith.constant 0 : index
    %c0_39 = arith.constant 0 : index
    %49 = vector.load %arg17[%c1_37, %c0_38, %c0_39] : memref<4x32x32xf32, #tpu.memory_space<vmem>>, vector<1x32x32xf32>
    %50 = vector.shape_cast %49 : vector<1x32x32xf32> to vector<32x32xf32>
    %cst_40 = arith.constant dense<0.000000e+00> : vector<16x32xf32>
    %51 = tpu.matmul %48, %50, %cst_40 {dimension_numbers = #tpu.dot_dimension_numbers<[1], [1], [0], [0], [0, 0, 1, 0], [], []>} : vector<16x32xf32>, vector<32x32xf32>, vector<16x32xf32> -> vector<16x32xf32>
    %cst_41 = arith.constant dense<0xFF800000> : vector<16xf32>
    %52 = vector.multi_reduction <maximumf>, %51, %cst_41 [1] : vector<16x32xf32> to vector<16xf32>
    %53 = vector.shape_cast %52 : vector<16xf32> to vector<16x1xf32>
    %54 = vector.broadcast %53 : vector<16x1xf32> to vector<16x32xf32>
    %55 = arith.subf %51, %54 : vector<16x32xf32>
    %56 = math.exp %55 : vector<16x32xf32>
    %cst_42 = arith.constant dense<0.000000e+00> : vector<16xf32>
    %57 = vector.multi_reduction <add>, %56, %cst_42 [1] : vector<16x32xf32> to vector<16xf32>
    %58 = vector.shape_cast %57 : vector<16xf32> to vector<16x1xf32>
    %59 = tpu.reciprocal %58 {approx = true} : vector<16x1xf32> -> vector<16x1xf32>
    %60 = vector.broadcast %59 : vector<16x1xf32> to vector<16x32xf32>
    %61 = arith.mulf %56, %60 : vector<16x32xf32>
    %c0_43 = arith.constant 0 : index
    %c1_44 = arith.constant 1 : index
    %c0_45 = arith.constant 0 : index
    %c0_46 = arith.constant 0 : index
    %62 = vector.load %arg16[%c0_43, %c1_44, %c0_45, %c0_46] : memref<1x4x16x32xf32, #tpu.memory_space<vmem>>, vector<1x1x16x32xf32>
    %63 = vector.shape_cast %62 : vector<1x1x16x32xf32> to vector<16x32xf32>
    %64 = vector.shape_cast %61 : vector<16x32xf32> to vector<1x1x16x32xf32>
    tpu.vector_store %arg16[%c0_43, %c1_44, %c0_45, %c0_46], %64 {strides = array<i32>} : memref<1x4x16x32xf32, #tpu.memory_space<vmem>>, vector<1x1x16x32xf32>,
    %c1_47 = arith.constant 1 : index
    %c0_48 = arith.constant 0 : index
    %c0_49 = arith.constant 0 : index
    %65 = vector.load %arg18[%c1_47, %c0_48, %c0_49] : memref<4x32x32xf32, #tpu.memory_space<vmem>>, vector<1x32x32xf32>
    %66 = vector.shape_cast %65 : vector<1x32x32xf32> to vector<32x32xf32>
    %cst_50 = arith.constant dense<0.000000e+00> : vector<16x32xf32>
    %67 = tpu.matmul %61, %66, %cst_50 {dimension_numbers = #tpu.dot_dimension_numbers<[1], [0], [0], [1], [0, 0, 1, 1], [], []>} : vector<16x32xf32>, vector<32x32xf32>, vector<16x32xf32> -> vector<16x32xf32>
    %c1_51 = arith.constant 1 : index
    %c0_52 = arith.constant 0 : index
    %c0_53 = arith.constant 0 : index
    %68 = vector.load %arg11[%c1_51, %c0_52, %c0_53] : memref<4x32x128xf32, #tpu.memory_space<vmem>>, vector<1x32x128xf32>
    %69 = vector.shape_cast %68 : vector<1x32x128xf32> to vector<32x128xf32>
    %cst_54 = arith.constant dense<0.000000e+00> : vector<16x128xf32>
    %70 = tpu.matmul %67, %69, %cst_54 {dimension_numbers = #tpu.dot_dimension_numbers<[1], [0], [0], [1], [0, 0, 1, 1], [], []>} : vector<16x32xf32>, vector<32x128xf32>, vector<16x128xf32> -> vector<16x128xf32>
    %71 = arith.addf %39, %70 : vector<16x128xf32>
    %c2 = arith.constant 2 : index
    %c0_55 = arith.constant 0 : index
    %c0_56 = arith.constant 0 : index
    %72 = vector.load %arg5[%c2, %c0_55, %c0_56] : memref<4x128x32xf32, #tpu.memory_space<vmem>>, vector<1x128x32xf32>
    %73 = vector.shape_cast %72 : vector<1x128x32xf32> to vector<128x32xf32>
    %cst_57 = arith.constant dense<0.000000e+00> : vector<16x32xf32>
    %74 = tpu.matmul %1, %73, %cst_57 {dimension_numbers = #tpu.dot_dimension_numbers<[1], [0], [0], [1], [0, 0, 1, 1], [], []>} : vector<16x128xf32>, vector<128x32xf32>, vector<16x32xf32> -> vector<16x32xf32>
    %c2_58 = arith.constant 2 : index
    %c0_59 = arith.constant 0 : index
    %c0_60 = arith.constant 0 : index
    %75 = vector.load %arg6[%c2_58, %c0_59, %c0_60] : memref<4x1x32xf32, #tpu.memory_space<vmem>>, vector<1x1x32xf32>
    %76 = vector.shape_cast %75 : vector<1x1x32xf32> to vector<1x32xf32>
    %77 = vector.broadcast %76 : vector<1x32xf32> to vector<16x32xf32>
    %78 = arith.addf %74, %77 : vector<16x32xf32>
    %cst_61 = arith.constant 0.176776692 : f32
    %79 = vector.broadcast %cst_61 : f32 to vector<16x32xf32>
    %80 = arith.mulf %78, %79 : vector<16x32xf32>
    %c2_62 = arith.constant 2 : index
    %c0_63 = arith.constant 0 : index
    %c0_64 = arith.constant 0 : index
    %81 = vector.load %arg17[%c2_62, %c0_63, %c0_64] : memref<4x32x32xf32, #tpu.memory_space<vmem>>, vector<1x32x32xf32>
    %82 = vector.shape_cast %81 : vector<1x32x32xf32> to vector<32x32xf32>
    %cst_65 = arith.constant dense<0.000000e+00> : vector<16x32xf32>
    %83 = tpu.matmul %80, %82, %cst_65 {dimension_numbers = #tpu.dot_dimension_numbers<[1], [1], [0], [0], [0, 0, 1, 0], [], []>} : vector<16x32xf32>, vector<32x32xf32>, vector<16x32xf32> -> vector<16x32xf32>
    %cst_66 = arith.constant dense<0xFF800000> : vector<16xf32>
    %84 = vector.multi_reduction <maximumf>, %83, %cst_66 [1] : vector<16x32xf32> to vector<16xf32>
    %85 = vector.shape_cast %84 : vector<16xf32> to vector<16x1xf32>
    %86 = vector.broadcast %85 : vector<16x1xf32> to vector<16x32xf32>
    %87 = arith.subf %83, %86 : vector<16x32xf32>
    %88 = math.exp %87 : vector<16x32xf32>
    %cst_67 = arith.constant dense<0.000000e+00> : vector<16xf32>
    %89 = vector.multi_reduction <add>, %88, %cst_67 [1] : vector<16x32xf32> to vector<16xf32>
    %90 = vector.shape_cast %89 : vector<16xf32> to vector<16x1xf32>
    %91 = tpu.reciprocal %90 {approx = true} : vector<16x1xf32> -> vector<16x1xf32>
    %92 = vector.broadcast %91 : vector<16x1xf32> to vector<16x32xf32>
    %93 = arith.mulf %88, %92 : vector<16x32xf32>
    %c0_68 = arith.constant 0 : index
    %c2_69 = arith.constant 2 : index
    %c0_70 = arith.constant 0 : index
    %c0_71 = arith.constant 0 : index
    %94 = vector.load %arg16[%c0_68, %c2_69, %c0_70, %c0_71] : memref<1x4x16x32xf32, #tpu.memory_space<vmem>>, vector<1x1x16x32xf32>
    %95 = vector.shape_cast %94 : vector<1x1x16x32xf32> to vector<16x32xf32>
    %96 = vector.shape_cast %93 : vector<16x32xf32> to vector<1x1x16x32xf32>
    tpu.vector_store %arg16[%c0_68, %c2_69, %c0_70, %c0_71], %96 {strides = array<i32>} : memref<1x4x16x32xf32, #tpu.memory_space<vmem>>, vector<1x1x16x32xf32>,
    %c2_72 = arith.constant 2 : index
    %c0_73 = arith.constant 0 : index
    %c0_74 = arith.constant 0 : index
    %97 = vector.load %arg18[%c2_72, %c0_73, %c0_74] : memref<4x32x32xf32, #tpu.memory_space<vmem>>, vector<1x32x32xf32>
    %98 = vector.shape_cast %97 : vector<1x32x32xf32> to vector<32x32xf32>
    %cst_75 = arith.constant dense<0.000000e+00> : vector<16x32xf32>
    %99 = tpu.matmul %93, %98, %cst_75 {dimension_numbers = #tpu.dot_dimension_numbers<[1], [0], [0], [1], [0, 0, 1, 1], [], []>} : vector<16x32xf32>, vector<32x32xf32>, vector<16x32xf32> -> vector<16x32xf32>
    %c2_76 = arith.constant 2 : index
    %c0_77 = arith.constant 0 : index
    %c0_78 = arith.constant 0 : index
    %100 = vector.load %arg11[%c2_76, %c0_77, %c0_78] : memref<4x32x128xf32, #tpu.memory_space<vmem>>, vector<1x32x128xf32>
    %101 = vector.shape_cast %100 : vector<1x32x128xf32> to vector<32x128xf32>
    %cst_79 = arith.constant dense<0.000000e+00> : vector<16x128xf32>
    %102 = tpu.matmul %99, %101, %cst_79 {dimension_numbers = #tpu.dot_dimension_numbers<[1], [0], [0], [1], [0, 0, 1, 1], [], []>} : vector<16x32xf32>, vector<32x128xf32>, vector<16x128xf32> -> vector<16x128xf32>
    %103 = arith.addf %71, %102 : vector<16x128xf32>
    %c3 = arith.constant 3 : index
    %c0_80 = arith.constant 0 : index
    %c0_81 = arith.constant 0 : index
    %104 = vector.load %arg5[%c3, %c0_80, %c0_81] : memref<4x128x32xf32, #tpu.memory_space<vmem>>, vector<1x128x32xf32>
    %105 = vector.shape_cast %104 : vector<1x128x32xf32> to vector<128x32xf32>
    %cst_82 = arith.constant dense<0.000000e+00> : vector<16x32xf32>
    %106 = tpu.matmul %1, %105, %cst_82 {dimension_numbers = #tpu.dot_dimension_numbers<[1], [0], [0], [1], [0, 0, 1, 1], [], []>} : vector<16x128xf32>, vector<128x32xf32>, vector<16x32xf32> -> vector<16x32xf32>
    %c3_83 = arith.constant 3 : index
    %c0_84 = arith.constant 0 : index
    %c0_85 = arith.constant 0 : index
    %107 = vector.load %arg6[%c3_83, %c0_84, %c0_85] : memref<4x1x32xf32, #tpu.memory_space<vmem>>, vector<1x1x32xf32>
    %108 = vector.shape_cast %107 : vector<1x1x32xf32> to vector<1x32xf32>
    %109 = vector.broadcast %108 : vector<1x32xf32> to vector<16x32xf32>
    %110 = arith.addf %106, %109 : vector<16x32xf32>
    %cst_86 = arith.constant 0.176776692 : f32
    %111 = vector.broadcast %cst_86 : f32 to vector<16x32xf32>
    %112 = arith.mulf %110, %111 : vector<16x32xf32>
    %c3_87 = arith.constant 3 : index
    %c0_88 = arith.constant 0 : index
    %c0_89 = arith.constant 0 : index
    %113 = vector.load %arg17[%c3_87, %c0_88, %c0_89] : memref<4x32x32xf32, #tpu.memory_space<vmem>>, vector<1x32x32xf32>
    %114 = vector.shape_cast %113 : vector<1x32x32xf32> to vector<32x32xf32>
    %cst_90 = arith.constant dense<0.000000e+00> : vector<16x32xf32>
    %115 = tpu.matmul %112, %114, %cst_90 {dimension_numbers = #tpu.dot_dimension_numbers<[1], [1], [0], [0], [0, 0, 1, 0], [], []>} : vector<16x32xf32>, vector<32x32xf32>, vector<16x32xf32> -> vector<16x32xf32>
    %cst_91 = arith.constant dense<0xFF800000> : vector<16xf32>
    %116 = vector.multi_reduction <maximumf>, %115, %cst_91 [1] : vector<16x32xf32> to vector<16xf32>
    %117 = vector.shape_cast %116 : vector<16xf32> to vector<16x1xf32>
    %118 = vector.broadcast %117 : vector<16x1xf32> to vector<16x32xf32>
    %119 = arith.subf %115, %118 : vector<16x32xf32>
    %120 = math.exp %119 : vector<16x32xf32>
    %cst_92 = arith.constant dense<0.000000e+00> : vector<16xf32>
    %121 = vector.multi_reduction <add>, %120, %cst_92 [1] : vector<16x32xf32> to vector<16xf32>
    %122 = vector.shape_cast %121 : vector<16xf32> to vector<16x1xf32>
    %123 = tpu.reciprocal %122 {approx = true} : vector<16x1xf32> -> vector<16x1xf32>
    %124 = vector.broadcast %123 : vector<16x1xf32> to vector<16x32xf32>
    %125 = arith.mulf %120, %124 : vector<16x32xf32>
    %c0_93 = arith.constant 0 : index
    %c3_94 = arith.constant 3 : index
    %c0_95 = arith.constant 0 : index
    %c0_96 = arith.constant 0 : index
    %126 = vector.load %arg16[%c0_93, %c3_94, %c0_95, %c0_96] : memref<1x4x16x32xf32, #tpu.memory_space<vmem>>, vector<1x1x16x32xf32>
    %127 = vector.shape_cast %126 : vector<1x1x16x32xf32> to vector<16x32xf32>
    %128 = vector.shape_cast %125 : vector<16x32xf32> to vector<1x1x16x32xf32>
    tpu.vector_store %arg16[%c0_93, %c3_94, %c0_95, %c0_96], %128 {strides = array<i32>} : memref<1x4x16x32xf32, #tpu.memory_space<vmem>>, vector<1x1x16x32xf32>,
    %c3_97 = arith.constant 3 : index
    %c0_98 = arith.constant 0 : index
    %c0_99 = arith.constant 0 : index
    %129 = vector.load %arg18[%c3_97, %c0_98, %c0_99] : memref<4x32x32xf32, #tpu.memory_space<vmem>>, vector<1x32x32xf32>
    %130 = vector.shape_cast %129 : vector<1x32x32xf32> to vector<32x32xf32>
    %cst_100 = arith.constant dense<0.000000e+00> : vector<16x32xf32>
    %131 = tpu.matmul %125, %130, %cst_100 {dimension_numbers = #tpu.dot_dimension_numbers<[1], [0], [0], [1], [0, 0, 1, 1], [], []>} : vector<16x32xf32>, vector<32x32xf32>, vector<16x32xf32> -> vector<16x32xf32>
    %c3_101 = arith.constant 3 : index
    %c0_102 = arith.constant 0 : index
    %c0_103 = arith.constant 0 : index
    %132 = vector.load %arg11[%c3_101, %c0_102, %c0_103] : memref<4x32x128xf32, #tpu.memory_space<vmem>>, vector<1x32x128xf32>
    %133 = vector.shape_cast %132 : vector<1x32x128xf32> to vector<32x128xf32>
    %cst_104 = arith.constant dense<0.000000e+00> : vector<16x128xf32>
    %134 = tpu.matmul %131, %133, %cst_104 {dimension_numbers = #tpu.dot_dimension_numbers<[1], [0], [0], [1], [0, 0, 1, 1], [], []>} : vector<16x32xf32>, vector<32x128xf32>, vector<16x128xf32> -> vector<16x128xf32>
    %135 = arith.addf %103, %134 : vector<16x128xf32>
    %cst_105 = arith.constant dense<0.000000e+00> : vector<16xf32>
    %136 = vector.multi_reduction <add>, %135, %cst_105 [1] : vector<16x128xf32> to vector<16xf32>
    %137 = vector.shape_cast %136 : vector<16xf32> to vector<16x1xf32>
    %cst_106 = arith.constant 7.812500e-03 : f32
    %138 = vector.broadcast %cst_106 : f32 to vector<16x1xf32>
    %139 = arith.mulf %137, %138 : vector<16x1xf32>
    %140 = vector.broadcast %139 : vector<16x1xf32> to vector<16x128xf32>
    %141 = arith.subf %135, %140 : vector<16x128xf32>
    %142 = arith.mulf %141, %141 : vector<16x128xf32>
    %cst_107 = arith.constant dense<0.000000e+00> : vector<16xf32>
    %143 = vector.multi_reduction <add>, %142, %cst_107 [1] : vector<16x128xf32> to vector<16xf32>
    %144 = vector.shape_cast %143 : vector<16xf32> to vector<16x1xf32>
    %cst_108 = arith.constant 7.812500e-03 : f32
    %145 = vector.broadcast %cst_108 : f32 to vector<16x1xf32>
    %146 = arith.mulf %144, %145 : vector<16x1xf32>
    %cst_109 = arith.constant 9.99999974E-6 : f32
    %147 = vector.broadcast %cst_109 : f32 to vector<16x1xf32>
    %148 = arith.addf %146, %147 : vector<16x1xf32>
    %149 = math.rsqrt %148 : vector<16x1xf32>
    %150 = vector.broadcast %149 : vector<16x1xf32> to vector<16x128xf32>
    %151 = arith.mulf %141, %150 : vector<16x128xf32>
    %c0_110 = arith.constant 0 : index
    %c0_111 = arith.constant 0 : index
    %152 = vector.load %arg13[%c0_110, %c0_111] : memref<1x128xf32, #tpu.memory_space<vmem>>, vector<1x128xf32>
    %153 = vector.broadcast %152 : vector<1x128xf32> to vector<16x128xf32>
    %154 = arith.mulf %151, %153 : vector<16x128xf32>
    %c0_112 = arith.constant 0 : index
    %c0_113 = arith.constant 0 : index
    %155 = vector.load %arg14[%c0_112, %c0_113] : memref<1x128xf32, #tpu.memory_space<vmem>>, vector<1x128xf32>
    %156 = vector.broadcast %155 : vector<1x128xf32> to vector<16x128xf32>
    %157 = arith.addf %154, %156 : vector<16x128xf32>
    %c0_114 = arith.constant 0 : index
    %c0_115 = arith.constant 0 : index
    %c0_116 = arith.constant 0 : index
    %158 = vector.load %arg15[%c0_114, %c0_115, %c0_116] : memref<1x16x128xf32, #tpu.memory_space<vmem>>, vector<1x16x128xf32>
    %159 = vector.shape_cast %158 : vector<1x16x128xf32> to vector<16x128xf32>
    %160 = vector.shape_cast %157 : vector<16x128xf32> to vector<1x16x128xf32>
    tpu.vector_store %arg15[%c0_114, %c0_115, %c0_116], %160 {strides = array<i32>} : memref<1x16x128xf32, #tpu.memory_space<vmem>>, vector<1x16x128xf32>,
    return
  }
  func.func @transform_0(%arg0: i32, %arg1: i32) -> (i32, i32, i32) {
    %c0_i32 = arith.constant 0 : i32
    %c0_i32_0 = arith.constant 0 : i32
    return %arg0, %arg1, %c0_i32 : i32, i32, i32
  }
  func.func @transform_1(%arg0: i32, %arg1: i32) -> (i32, i32, i32) {
    %c0_i32 = arith.constant 0 : i32
    %c0_i32_0 = arith.constant 0 : i32
    %c0_i32_1 = arith.constant 0 : i32
    return %arg0, %c0_i32, %c0_i32_0 : i32, i32, i32
  }
  func.func @transform_2(%arg0: i32, %arg1: i32) -> (i32, i32, i32) {
    %c0_i32 = arith.constant 0 : i32
    %c0_i32_0 = arith.constant 0 : i32
    %c0_i32_1 = arith.constant 0 : i32
    return %arg0, %c0_i32, %c0_i32_0 : i32, i32, i32
  }
  func.func @transform_3(%arg0: i32, %arg1: i32) -> (i32, i32, i32) {
    %c0_i32 = arith.constant 0 : i32
    %c0_i32_0 = arith.constant 0 : i32
    %c0_i32_1 = arith.constant 0 : i32
    %c0_i32_2 = arith.constant 0 : i32
    return %c0_i32, %c0_i32_0, %c0_i32_1 : i32, i32, i32
  }
  func.func @transform_4(%arg0: i32, %arg1: i32) -> (i32, i32, i32) {
    %c0_i32 = arith.constant 0 : i32
    %c0_i32_0 = arith.constant 0 : i32
    %c0_i32_1 = arith.constant 0 : i32
    %c0_i32_2 = arith.constant 0 : i32
    return %c0_i32, %c0_i32_0, %c0_i32_1 : i32, i32, i32
  }
  func.func @transform_5(%arg0: i32, %arg1: i32) -> (i32, i32, i32) {
    %c0_i32 = arith.constant 0 : i32
    %c0_i32_0 = arith.constant 0 : i32
    %c0_i32_1 = arith.constant 0 : i32
    %c0_i32_2 = arith.constant 0 : i32
    return %c0_i32, %c0_i32_0, %c0_i32_1 : i32, i32, i32
  }
  func.func @transform_6(%arg0: i32, %arg1: i32) -> (i32, i32, i32) {
    %c0_i32 = arith.constant 0 : i32
    %c0_i32_0 = arith.constant 0 : i32
    %c0_i32_1 = arith.constant 0 : i32
    %c0_i32_2 = arith.constant 0 : i32
    return %c0_i32, %c0_i32_0, %c0_i32_1 : i32, i32, i32
  }
  func.func @transform_7(%arg0: i32, %arg1: i32) -> (i32, i32, i32) {
    %c0_i32 = arith.constant 0 : i32
    %c0_i32_0 = arith.constant 0 : i32
    %c0_i32_1 = arith.constant 0 : i32
    %c0_i32_2 = arith.constant 0 : i32
    return %c0_i32, %c0_i32_0, %c0_i32_1 : i32, i32, i32
  }
  func.func @transform_8(%arg0: i32, %arg1: i32) -> (i32, i32, i32) {
    %c0_i32 = arith.constant 0 : i32
    %c0_i32_0 = arith.constant 0 : i32
    %c0_i32_1 = arith.constant 0 : i32
    %c0_i32_2 = arith.constant 0 : i32
    return %c0_i32, %c0_i32_0, %c0_i32_1 : i32, i32, i32
  }
  func.func @transform_9(%arg0: i32, %arg1: i32) -> (i32, i32, i32) {
    %c0_i32 = arith.constant 0 : i32
    %c0_i32_0 = arith.constant 0 : i32
    %c0_i32_1 = arith.constant 0 : i32
    %c0_i32_2 = arith.constant 0 : i32
    return %c0_i32, %c0_i32_0, %c0_i32_1 : i32, i32, i32
  }
  func.func @transform_10(%arg0: i32, %arg1: i32) -> (i32, i32) {
    %c0_i32 = arith.constant 0 : i32
    %c0_i32_0 = arith.constant 0 : i32
    %c0_i32_1 = arith.constant 0 : i32
    return %c0_i32, %c0_i32_0 : i32, i32
  }
  func.func @transform_11(%arg0: i32, %arg1: i32) -> (i32, i32) {
    %c0_i32 = arith.constant 0 : i32
    %c0_i32_0 = arith.constant 0 : i32
    %c0_i32_1 = arith.constant 0 : i32
    return %c0_i32, %c0_i32_0 : i32, i32
  }
  func.func @transform_12(%arg0: i32, %arg1: i32) -> (i32, i32) {
    %c0_i32 = arith.constant 0 : i32
    %c0_i32_0 = arith.constant 0 : i32
    %c0_i32_1 = arith.constant 0 : i32
    return %c0_i32, %c0_i32_0 : i32, i32
  }
  func.func @transform_13(%arg0: i32, %arg1: i32) -> (i32, i32, i32) {
    %c0_i32 = arith.constant 0 : i32
    %c0_i32_0 = arith.constant 0 : i32
    return %arg0, %arg1, %c0_i32 : i32, i32, i32
  }
  func.func @transform_14(%arg0: i32, %arg1: i32) -> (i32, i32, i32, i32) {
    %c0_i32 = arith.constant 0 : i32
    %c0_i32_0 = arith.constant 0 : i32
    %c0_i32_1 = arith.constant 0 : i32
    return %arg0, %c0_i32, %arg1, %c0_i32_0 : i32, i32, i32, i32
  }
}

</mosaic_0001>

<llo_original>
// kernel: tpu_custom_call.1
$region0: #{tpu_custom_call.1}
  #allocation0 [shape = 'u32[]', space=smem, size = 0x4, offset = 0x4, fixed_abs, tag = 'smem constant byte address 0x4 - core index']
  #allocation1 [shape = 'u32[144,128]{1,0:T(1,128)}', space=vmem, size = 0x12000, scoped, tag = 'internal scratch']
  #allocation2 [shape = 'f32[4,32,32]{2,1,0:T(8,128)}', space=vmem, size = 0x10000, scoped, tag = 'scratch operand']
  #allocation3 [shape = 'f32[4,32,32]{2,1,0:T(8,128)}', space=vmem, size = 0x10000, scoped, tag = 'scratch operand']
  #allocation28 [shape = 's32[]', space=sflag, size = 0x4, offset = 0, fixed_abs, tag = 'sflag constant byte address 0x0 - dummy sync flag']
  %s0 = inlined_call_operand.hbm [shape: f32[2,32,128], index: 0, kind: input, shape index: {}]
  %s1 = inlined_call_operand.hbm [shape: f32[2,32,128], index: 1, kind: input, shape index: {}]
  %s2 = inlined_call_operand.hbm [shape: f32[2,32,128], index: 2, kind: input, shape index: {}]
  %s3 = inlined_call_operand.hbm [shape: f32[4,128,32], index: 3, kind: input, shape index: {}]
  %s4 = inlined_call_operand.hbm [shape: f32[4,1,32], index: 4, kind: input, shape index: {}]
  %s5 = inlined_call_operand.hbm [shape: f32[4,128,32], index: 5, kind: input, shape index: {}]
  %s6 = inlined_call_operand.hbm [shape: f32[4,1,32], index: 6, kind: input, shape index: {}]
  %s7 = inlined_call_operand.hbm [shape: f32[4,128,32], index: 7, kind: input, shape index: {}]
  %s8 = inlined_call_operand.hbm [shape: f32[4,1,32], index: 8, kind: input, shape index: {}]
  %s9 = inlined_call_operand.hbm [shape: f32[4,32,128], index: 9, kind: input, shape index: {}]
  %s10 = inlined_call_operand.hbm [shape: f32[1,128], index: 10, kind: input, shape index: {}]
  %s11 = inlined_call_operand.hbm [shape: f32[1,128], index: 11, kind: input, shape index: {}]
  %s12 = inlined_call_operand.hbm [shape: f32[1,128], index: 12, kind: input, shape index: {}]
  %s13 = inlined_call_operand.hbm [shape: f32[2,32,128], index: 13, kind: output, shape index: {0}]
  %s14 = inlined_call_operand.hbm [shape: f32[2,4,32,32], index: 14, kind: output, shape index: {1}]
  %15 = xla_tuple %s13, %s14
  %s16 = sld [smem:[#allocation0]]
  $region149: #{tpu_custom_call.1} parent=0
    _
  %s18 = ssub.s32 1, %s16
  %s19 = scalar_select 0, %s18, %s16
  $region1: #{tpu_custom_call.1} parent=0
    #allocation4 [shape = 'u8[16384]{0}', space=vmem, size = 0x4000, scoped, tag = 'input window, operand 0']
    #allocation5 [shape = 's32[2]{0}', space=sflag, size = 0x8, scoped, tag = 'scoped memory for tpu_custom_call.1']
    #allocation6 [shape = 's32[2]{0}', space=sflag, size = 0x8, scoped, tag = 'scoped memory for tpu_custom_call.1']
    #allocation7 [shape = 'u8[32768]{0}', space=vmem, size = 0x8000, scoped, tag = 'input window, operand 1']
    #allocation8 [shape = 's32[2]{0}', space=sflag, size = 0x8, scoped, tag = 'scoped memory for tpu_custom_call.1']
    #allocation9 [shape = 'u8[32768]{0}', space=vmem, size = 0x8000, scoped, tag = 'input window, operand 2']
    #allocation10 [shape = 'u8[262144]{0}', space=vmem, size = 0x40000, scoped, tag = 'input window, operand 3, single buffered']
    #allocation11 [shape = 's32[1]{0}', space=sflag, size = 0x4, scoped, tag = 'scoped memory for tpu_custom_call.1']
    #allocation12 [shape = 'u8[2048]{0}', space=vmem, size = 0x800, scoped, tag = 'input window, operand 4, single buffered']
    #allocation13 [shape = 'u8[262144]{0}', space=vmem, size = 0x40000, scoped, tag = 'input window, operand 5, single buffered']
    #allocation14 [shape = 's32[1]{0}', space=sflag, size = 0x4, scoped, tag = 'scoped memory for tpu_custom_call.1']
    #allocation15 [shape = 'u8[2048]{0}', space=vmem, size = 0x800, scoped, tag = 'input window, operand 6, single buffered']
    #allocation16 [shape = 'u8[262144]{0}', space=vmem, size = 0x40000, scoped, tag = 'input window, operand 7, single buffered']
    #allocation17 [shape = 's32[1]{0}', space=sflag, size = 0x4, scoped, tag = 'scoped memory for tpu_custom_call.1']
    #allocation18 [shape = 'u8[2048]{0}', space=vmem, size = 0x800, scoped, tag = 'input window, operand 8, single buffered']
    #allocation19 [shape = 'u8[65536]{0}', space=vmem, size = 0x10000, scoped, tag = 'input window, operand 9, single buffered']
    #allocation20 [shape = 's32[1]{0}', space=sflag, size = 0x4, scoped, tag = 'scoped memory for tpu_custom_call.1']
    #allocation21 [shape = 'u8[512]{0}', space=vmem, size = 0x400, scoped, tag = 'input window, operand 10, single buffered']
    #allocation22 [shape = 'u8[512]{0}', space=vmem, size = 0x400, scoped, tag = 'input window, operand 11, single buffered']
    #allocation23 [shape = 's32[1]{0}', space=sflag, size = 0x4, scoped, tag = 'scoped memory for tpu_custom_call.1']
    #allocation24 [shape = 'u8[512]{0}', space=vmem, size = 0x400, scoped, tag = 'input window, operand 12, single buffered']
    #allocation25 [shape = 'u8[16384]{0}', space=vmem, size = 0x4000, scoped, tag = 'output window, operand 0']
    #allocation26 [shape = 'u8[65536]{0}', space=vmem, size = 0x10000, scoped, tag = 'output window, operand 1']
    #allocation27 [shape = 's32[2]{0}', space=sflag, size = 0x8, scoped, tag = 'scoped memory for tpu_custom_call.1']
    %20 = vsyncpa [#allocation5], 0
    %s21 = scalar_lea.sflag [#allocation5], 1
    %22 = vsyncpa %s21, 0
    %23 = vsyncpa [#allocation8], 0
    %s24 = scalar_lea.sflag [#allocation8], 1
    %25 = vsyncpa %s24, 0
    %26 = vsyncpa [#allocation11], 0
    %27 = vsyncpa [#allocation14], 0
    %28 = vsyncpa [#allocation17], 0
    %29 = vsyncpa [#allocation20], 0
    %30 = vsyncpa [#allocation23], 0
    %31 = vsyncpa [#allocation6], 0
    %s32 = scalar_lea.sflag [#allocation6], 1
    %33 = vsyncpa %s32, 0
    %34 = vsyncpa [#allocation27], 0
    %s35 = scalar_lea.sflag [#allocation27], 1
    %36 = vsyncpa %s35, 0
    loop: start=0, step=1, limit=6
    $region2: #{tpu_custom_call.1} parent=1 // loop_pre_header
      _
    $region3: #{tpu_custom_call.1} parent=1 // loop_header
      %s38 = sphi 0, %s42
      %p39 = scmp.ge.s32.totalorder %s38, 6
      %s45 = sphi 0, %s57
      %s46 = sphi 0, %s53
      %s47 = sphi 0, %s45
      %s48 = sphi 0, %s46
      %s49 = sphi 0, %s47
      %s50 = sphi 0, %s48
      %s62 = sphi 0, %s64
      %s65 = sphi 0, %s62
      %s66 = sphi 0, %s65
      %s82 = sphi 0, %s66
      %s88 = sphi 0, %s90
      %s91 = sphi 0, %s88
      %s92 = sphi 0, %s91
      %s108 = sphi 0, %s92
      %s114 = sphi 0, %s116
      %s117 = sphi 0, %s114
      %s118 = sphi 0, %s117
      %s134 = sphi 0, %s118
      %s138 = sphi 0, %s138
      %s140 = sphi 0, %s138
      %s141 = sphi 0, %s140
      %s155 = sphi 0, %s141
      %s159 = sphi 0, %s159
      %s161 = sphi 0, %s159
      %s162 = sphi 0, %s161
      %s176 = sphi 0, %s162
      %s180 = sphi 0, %s180
      %s182 = sphi 0, %s180
      %s183 = sphi 0, %s182
      %s197 = sphi 0, %s183
      %s201 = sphi 0, %s201
      %s203 = sphi 0, %s201
      %s204 = sphi 0, %s203
      %s218 = sphi 0, %s204
      %s222 = sphi 0, %s222
      %s224 = sphi 0, %s222
      %s225 = sphi 0, %s224
      %s239 = sphi 0, %s225
      %s243 = sphi 0, %s243
      %s245 = sphi 0, %s243
      %s246 = sphi 0, %s245
      %s260 = sphi 0, %s246
      %s264 = sphi 0, %s264
      %s266 = sphi 0, %s264
      %s267 = sphi 0, %s266
      %s281 = sphi 0, %s267
      %s285 = sphi 0, %s285
      %s287 = sphi 0, %s285
      %s288 = sphi 0, %s287
      %s302 = sphi 0, %s288
      %s306 = sphi 0, %s306
      %s308 = sphi 0, %s306
      %s309 = sphi 0, %s308
      %s323 = sphi 0, %s309
      %s327 = sphi 0, %s327
      %s329 = sphi 0, %s327
      %s330 = sphi 0, %s329
      %s344 = sphi 0, %s330
      %s352 = sphi 0, %s354
      %s355 = sphi 0, %s352
      %s356 = sphi 0, %s355
      %s372 = sphi 0, %s356
      %s380 = sphi 0, %s382
      %s383 = sphi 0, %s380
      %s384 = sphi 0, %s383
      %s400 = sphi 0, %s384
    $region4: #{tpu_custom_call.1} parent=1 // loop_header_branch
      %41 = sbr.rel (%p39) target = $region8
    $region5: #{tpu_custom_call.1} parent=1 // loop_body
      %s43 = ssub.s32 %s38, 1
      %s44 = ssub.s32 %s38, 2
      %s51 = sadd.s32 1, %s46
      %p52 = scmp.ge.s32.totalorder %s51, 2
      %s53 = scalar_select %p52, 0, %s51
      %s54 = sadd.s32 1, %s45
      %s55 = scalar_select %p52, %s54, %s45
      %p56 = scmp.ge.s32.totalorder %s55, 2
      %s57 = scalar_select %p56, 0, %s55
      %s58 = ssub.s32 %s45, %s57
      %s59 = ssub.s32 %s46, %s53
      %s60 = sor.u32 %s58, %s59
      %p61 = scmp.eq.s32.totalorder %s60, 0
      %s63 = sadd.s32 %s62, 1
      %s64 = scalar_select %p61, %s62, %s63
      %p67 = pneg %p61
      %p68 = scmp.eq.s32.totalorder %s38, 3
      %p69 = por %p67, %p68
      %p70 = scmp.ne.s32.totalorder %s62, %s65
      %p71 = scmp.eq.s32.totalorder %s38, 0
      %p72 = por %p70, %p71
      %p73 = scmp.ne.s32.totalorder %s62, %s65
      %p74 = scmp.eq.s32.totalorder %s43, 3
      %p75 = por %p73, %p74
      %p76 = scmp.ne.s32.totalorder %s65, %s66
      %p77 = scmp.eq.s32.totalorder %s43, 0
      %p78 = por %p76, %p77
      %p79 = scmp.ne.s32.totalorder %s65, %s66
      %p80 = scmp.eq.s32.totalorder %s44, 3
      %p81 = por %p79, %p80
      %p83 = scmp.ne.s32.totalorder %s66, %s82
      %p84 = scmp.eq.s32.totalorder %s44, 0
      %p85 = por %p83, %p84
      %s86 = ssub.s32 %s45, %s57
      %p87 = scmp.eq.s32.totalorder %s86, 0
      %s89 = sadd.s32 %s88, 1
      %s90 = scalar_select %p87, %s88, %s89
      %p93 = pneg %p87
      %p94 = scmp.eq.s32.totalorder %s38, 3
      %p95 = por %p93, %p94
      %p96 = scmp.ne.s32.totalorder %s88, %s91
      %p97 = scmp.eq.s32.totalorder %s38, 0
      %p98 = por %p96, %p97
      %p99 = scmp.ne.s32.totalorder %s88, %s91
      %p100 = scmp.eq.s32.totalorder %s43, 3
      %p101 = por %p99, %p100
      %p102 = scmp.ne.s32.totalorder %s91, %s92
      %p103 = scmp.eq.s32.totalorder %s43, 0
      %p104 = por %p102, %p103
      %p105 = scmp.ne.s32.totalorder %s91, %s92
      %p106 = scmp.eq.s32.totalorder %s44, 3
      %p107 = por %p105, %p106
      %p109 = scmp.ne.s32.totalorder %s92, %s108
      %p110 = scmp.eq.s32.totalorder %s44, 0
      %p111 = por %p109, %p110
      %s112 = ssub.s32 %s45, %s57
      %p113 = scmp.eq.s32.totalorder %s112, 0
      %s115 = sadd.s32 %s114, 1
      %s116 = scalar_select %p113, %s114, %s115
      %p119 = pneg %p113
      %p120 = scmp.eq.s32.totalorder %s38, 3
      %p121 = por %p119, %p120
      %p122 = scmp.ne.s32.totalorder %s114, %s117
      %p123 = scmp.eq.s32.totalorder %s38, 0
      %p124 = por %p122, %p123
      %p125 = scmp.ne.s32.totalorder %s114, %s117
      %p126 = scmp.eq.s32.totalorder %s43, 3
      %p127 = por %p125, %p126
      %p128 = scmp.ne.s32.totalorder %s117, %s118
      %p129 = scmp.eq.s32.totalorder %s43, 0
      %p130 = por %p128, %p129
      %p131 = scmp.ne.s32.totalorder %s117, %s118
      %p132 = scmp.eq.s32.totalorder %s44, 3
      %p133 = por %p131, %p132
      %p135 = scmp.ne.s32.totalorder %s118, %s134
      %p136 = scmp.eq.s32.totalorder %s44, 0
      %p137 = por %p135, %p136
      %s139 = sadd.s32 %s138, 1
      %p142 = scmp.eq.s32.totalorder %s38, 3
      %p143 = scmp.ne.s32.totalorder %s138, %s140
      %p144 = scmp.eq.s32.totalorder %s38, 0
      %p145 = por %p143, %p144
      %p146 = scmp.ne.s32.totalorder %s138, %s140
      %p147 = scmp.eq.s32.totalorder %s43, 3
      %p148 = por %p146, %p147
      %p149 = scmp.ne.s32.totalorder %s140, %s141
      %p150 = scmp.eq.s32.totalorder %s43, 0
      %p151 = por %p149, %p150
      %p152 = scmp.ne.s32.totalorder %s140, %s141
      %p153 = scmp.eq.s32.totalorder %s44, 3
      %p154 = por %p152, %p153
      %p156 = scmp.ne.s32.totalorder %s141, %s155
      %p157 = scmp.eq.s32.totalorder %s44, 0
      %p158 = por %p156, %p157
      %s160 = sadd.s32 %s159, 1
      %p163 = scmp.eq.s32.totalorder %s38, 3
      %p164 = scmp.ne.s32.totalorder %s159, %s161
      %p165 = scmp.eq.s32.totalorder %s38, 0
      %p166 = por %p164, %p165
      %p167 = scmp.ne.s32.totalorder %s159, %s161
      %p168 = scmp.eq.s32.totalorder %s43, 3
      %p169 = por %p167, %p168
      %p170 = scmp.ne.s32.totalorder %s161, %s162
      %p171 = scmp.eq.s32.totalorder %s43, 0
      %p172 = por %p170, %p171
      %p173 = scmp.ne.s32.totalorder %s161, %s162
      %p174 = scmp.eq.s32.totalorder %s44, 3
      %p175 = por %p173, %p174
      %p177 = scmp.ne.s32.totalorder %s162, %s176
      %p178 = scmp.eq.s32.totalorder %s44, 0
      %p179 = por %p177, %p178
      %s181 = sadd.s32 %s180, 1
      %p184 = scmp.eq.s32.totalorder %s38, 3
      %p185 = scmp.ne.s32.totalorder %s180, %s182
      %p186 = scmp.eq.s32.totalorder %s38, 0
      %p187 = por %p185, %p186
      %p188 = scmp.ne.s32.totalorder %s180, %s182
      %p189 = scmp.eq.s32.totalorder %s43, 3
      %p190 = por %p188, %p189
      %p191 = scmp.ne.s32.totalorder %s182, %s183
      %p192 = scmp.eq.s32.totalorder %s43, 0
      %p193 = por %p191, %p192
      %p194 = scmp.ne.s32.totalorder %s182, %s183
      %p195 = scmp.eq.s32.totalorder %s44, 3
      %p196 = por %p194, %p195
      %p198 = scmp.ne.s32.totalorder %s183, %s197
      %p199 = scmp.eq.s32.totalorder %s44, 0
      %p200 = por %p198, %p199
      %s202 = sadd.s32 %s201, 1
      %p205 = scmp.eq.s32.totalorder %s38, 3
      %p206 = scmp.ne.s32.totalorder %s201, %s203
      %p207 = scmp.eq.s32.totalorder %s38, 0
      %p208 = por %p206, %p207
      %p209 = scmp.ne.s32.totalorder %s201, %s203
      %p210 = scmp.eq.s32.totalorder %s43, 3
      %p211 = por %p209, %p210
      %p212 = scmp.ne.s32.totalorder %s203, %s204
      %p213 = scmp.eq.s32.totalorder %s43, 0
      %p214 = por %p212, %p213
      %p215 = scmp.ne.s32.totalorder %s203, %s204
      %p216 = scmp.eq.s32.totalorder %s44, 3
      %p217 = por %p215, %p216
      %p219 = scmp.ne.s32.totalorder %s204, %s218
      %p220 = scmp.eq.s32.totalorder %s44, 0
      %p221 = por %p219, %p220
      %s223 = sadd.s32 %s222, 1
      %p226 = scmp.eq.s32.totalorder %s38, 3
      %p227 = scmp.ne.s32.totalorder %s222, %s224
      %p228 = scmp.eq.s32.totalorder %s38, 0
      %p229 = por %p227, %p228
      %p230 = scmp.ne.s32.totalorder %s222, %s224
      %p231 = scmp.eq.s32.totalorder %s43, 3
      %p232 = por %p230, %p231
      %p233 = scmp.ne.s32.totalorder %s224, %s225
      %p234 = scmp.eq.s32.totalorder %s43, 0
      %p235 = por %p233, %p234
      %p236 = scmp.ne.s32.totalorder %s224, %s225
      %p237 = scmp.eq.s32.totalorder %s44, 3
      %p238 = por %p236, %p237
      %p240 = scmp.ne.s32.totalorder %s225, %s239
      %p241 = scmp.eq.s32.totalorder %s44, 0
      %p242 = por %p240, %p241
      %s244 = sadd.s32 %s243, 1
      %p247 = scmp.eq.s32.totalorder %s38, 3
      %p248 = scmp.ne.s32.totalorder %s243, %s245
      %p249 = scmp.eq.s32.totalorder %s38, 0
      %p250 = por %p248, %p249
      %p251 = scmp.ne.s32.totalorder %s243, %s245
      %p252 = scmp.eq.s32.totalorder %s43, 3
      %p253 = por %p251, %p252
      %p254 = scmp.ne.s32.totalorder %s245, %s246
      %p255 = scmp.eq.s32.totalorder %s43, 0
      %p256 = por %p254, %p255
      %p257 = scmp.ne.s32.totalorder %s245, %s246
      %p258 = scmp.eq.s32.totalorder %s44, 3
      %p259 = por %p257, %p258
      %p261 = scmp.ne.s32.totalorder %s246, %s260
      %p262 = scmp.eq.s32.totalorder %s44, 0
      %p263 = por %p261, %p262
      %s265 = sadd.s32 %s264, 1
      %p268 = scmp.eq.s32.totalorder %s38, 3
      %p269 = scmp.ne.s32.totalorder %s264, %s266
      %p270 = scmp.eq.s32.totalorder %s38, 0
      %p271 = por %p269, %p270
      %p272 = scmp.ne.s32.totalorder %s264, %s266
      %p273 = scmp.eq.s32.totalorder %s43, 3
      %p274 = por %p272, %p273
      %p275 = scmp.ne.s32.totalorder %s266, %s267
      %p276 = scmp.eq.s32.totalorder %s43, 0
      %p277 = por %p275, %p276
      %p278 = scmp.ne.s32.totalorder %s266, %s267
      %p279 = scmp.eq.s32.totalorder %s44, 3
      %p280 = por %p278, %p279
      %p282 = scmp.ne.s32.totalorder %s267, %s281
      %p283 = scmp.eq.s32.totalorder %s44, 0
      %p284 = por %p282, %p283
      %s286 = sadd.s32 %s285, 1
      %p289 = scmp.eq.s32.totalorder %s38, 3
      %p290 = scmp.ne.s32.totalorder %s285, %s287
      %p291 = scmp.eq.s32.totalorder %s38, 0
      %p292 = por %p290, %p291
      %p293 = scmp.ne.s32.totalorder %s285, %s287
      %p294 = scmp.eq.s32.totalorder %s43, 3
      %p295 = por %p293, %p294
      %p296 = scmp.ne.s32.totalorder %s287, %s288
      %p297 = scmp.eq.s32.totalorder %s43, 0
      %p298 = por %p296, %p297
      %p299 = scmp.ne.s32.totalorder %s287, %s288
      %p300 = scmp.eq.s32.totalorder %s44, 3
      %p301 = por %p299, %p300
      %p303 = scmp.ne.s32.totalorder %s288, %s302
      %p304 = scmp.eq.s32.totalorder %s44, 0
      %p305 = por %p303, %p304
      %s307 = sadd.s32 %s306, 1
      %p310 = scmp.eq.s32.totalorder %s38, 3
      %p311 = scmp.ne.s32.totalorder %s306, %s308
      %p312 = scmp.eq.s32.totalorder %s38, 0
      %p313 = por %p311, %p312
      %p314 = scmp.ne.s32.totalorder %s306, %s308
      %p315 = scmp.eq.s32.totalorder %s43, 3
      %p316 = por %p314, %p315
      %p317 = scmp.ne.s32.totalorder %s308, %s309
      %p318 = scmp.eq.s32.totalorder %s43, 0
      %p319 = por %p317, %p318
      %p320 = scmp.ne.s32.totalorder %s308, %s309
      %p321 = scmp.eq.s32.totalorder %s44, 3
      %p322 = por %p320, %p321
      %p324 = scmp.ne.s32.totalorder %s309, %s323
      %p325 = scmp.eq.s32.totalorder %s44, 0
      %p326 = por %p324, %p325
      %s328 = sadd.s32 %s327, 1
      %p331 = scmp.eq.s32.totalorder %s38, 3
      %p332 = scmp.ne.s32.totalorder %s327, %s329
      %p333 = scmp.eq.s32.totalorder %s38, 0
      %p334 = por %p332, %p333
      %p335 = scmp.ne.s32.totalorder %s327, %s329
      %p336 = scmp.eq.s32.totalorder %s43, 3
      %p337 = por %p335, %p336
      %p338 = scmp.ne.s32.totalorder %s329, %s330
      %p339 = scmp.eq.s32.totalorder %s43, 0
      %p340 = por %p338, %p339
      %p341 = scmp.ne.s32.totalorder %s329, %s330
      %p342 = scmp.eq.s32.totalorder %s44, 3
      %p343 = por %p341, %p342
      %p345 = scmp.ne.s32.totalorder %s330, %s344
      %p346 = scmp.eq.s32.totalorder %s44, 0
      %p347 = por %p345, %p346
      %s348 = ssub.s32 %s45, %s57
      %s349 = ssub.s32 %s46, %s53
      %s350 = sor.u32 %s348, %s349
      %p351 = scmp.eq.s32.totalorder %s350, 0
      %s353 = sadd.s32 %s352, 1
      %s354 = scalar_select %p351, %s352, %s353
      %p357 = pneg %p351
      %p358 = scmp.eq.s32.totalorder %s38, 3
      %p359 = por %p357, %p358
      %p360 = scmp.ne.s32.totalorder %s352, %s355
      %p361 = scmp.eq.s32.totalorder %s38, 0
      %p362 = por %p360, %p361
      %p363 = scmp.ne.s32.totalorder %s352, %s355
      %p364 = scmp.eq.s32.totalorder %s43, 3
      %p365 = por %p363, %p364
      %p366 = scmp.ne.s32.totalorder %s355, %s356
      %p367 = scmp.eq.s32.totalorder %s43, 0
      %p368 = por %p366, %p367
      %p369 = scmp.ne.s32.totalorder %s355, %s356
      %p370 = scmp.eq.s32.totalorder %s44, 3
      %p371 = por %p369, %p370
      %p373 = scmp.ne.s32.totalorder %s356, %s372
      %p374 = scmp.eq.s32.totalorder %s44, 0
      %p375 = por %p373, %p374
      %s376 = ssub.s32 %s45, %s57
      %s377 = ssub.s32 %s46, %s53
      %s378 = sor.u32 %s376, %s377
      %p379 = scmp.eq.s32.totalorder %s378, 0
      %s381 = sadd.s32 %s380, 1
      %s382 = scalar_select %p379, %s380, %s381
      %p385 = pneg %p379
      %p386 = scmp.eq.s32.totalorder %s38, 3
      %p387 = por %p385, %p386
      %p388 = scmp.ne.s32.totalorder %s380, %s383
      %p389 = scmp.eq.s32.totalorder %s38, 0
      %p390 = por %p388, %p389
      %p391 = scmp.ne.s32.totalorder %s380, %s383
      %p392 = scmp.eq.s32.totalorder %s43, 3
      %p393 = por %p391, %p392
      %p394 = scmp.ne.s32.totalorder %s383, %s384
      %p395 = scmp.eq.s32.totalorder %s43, 0
      %p396 = por %p394, %p395
      %p397 = scmp.ne.s32.totalorder %s383, %s384
      %p398 = scmp.eq.s32.totalorder %s44, 3
      %p399 = por %p397, %p398
      %p401 = scmp.ne.s32.totalorder %s384, %s400
      %p402 = scmp.eq.s32.totalorder %s44, 0
      %p403 = por %p401, %p402
      %p404 = scmp.le.s32.totalorder 1, %s38
      %p405 = scmp.lt.s32.totalorder %s38, 5
      %p406 = pnand %p404, %p405
      %p407 = pneg %p406
      // Predicated region
      $region9: #{tpu_custom_call.1} parent=5 // pred_check
        _
      $region10: #{tpu_custom_call.1} parent=5 // pred_check_branch
        %409 = sbr.rel (%p406) target = $region12
      $region11: #{tpu_custom_call.1} parent=5 // pred_region
        %s410 = ssub.s32 %s38, 1
        // Predicated region
        $region13: #{tpu_custom_call.1} parent=11 // pred_check
          %p411 = pneg %p151
        $region14: #{tpu_custom_call.1} parent=11 // pred_check_branch
          %413 = sbr.rel (%p411) target = $region16
        $region15: #{tpu_custom_call.1} parent=11 // pred_region
          %s415 = ssub.s32 8192, 8192
          %416 = vsyncadd [#allocation11], %s415
          %s417 = sshll.u32 [#allocation10], 4
          %s418 = int_to_ptr.vmem [resolvable:$true] %s417
          %423 = dma.hbm_to_vmem [thread:$0]  %s3, 8192, %s418, [#allocation11], 128, 128, 8
        $region16: #{tpu_custom_call.1} parent=11 // pred_fallthru
          _
        // Predicated region
        $region17: #{tpu_custom_call.1} parent=11 // pred_check
          %p424 = pneg %p172
        $region18: #{tpu_custom_call.1} parent=11 // pred_check_branch
          %426 = sbr.rel (%p424) target = $region20
        $region19: #{tpu_custom_call.1} parent=11 // pred_region
          %s428 = ssub.s32 64, 64
          %429 = vsyncadd [#allocation11], %s428
          %s430 = sshll.u32 [#allocation12], 4
          %s431 = int_to_ptr.vmem [resolvable:$true] %s430
          %436 = dma.hbm_to_vmem [thread:$0]  %s4, 64, %s431, [#allocation11], 16, 16, 1
        $region20: #{tpu_custom_call.1} parent=11 // pred_fallthru
          _
        // Predicated region
        $region21: #{tpu_custom_call.1} parent=11 // pred_check
          %p437 = pneg %p193
        $region22: #{tpu_custom_call.1} parent=11 // pred_check_branch
          %439 = sbr.rel (%p437) target = $region24
        $region23: #{tpu_custom_call.1} parent=11 // pred_region
          %s441 = ssub.s32 8192, 8192
          %442 = vsyncadd [#allocation14], %s441
          %s443 = sshll.u32 [#allocation13], 4
          %s444 = int_to_ptr.vmem [resolvable:$true] %s443
          %449 = dma.hbm_to_vmem [thread:$0]  %s5, 8192, %s444, [#allocation14], 128, 128, 8
        $region24: #{tpu_custom_call.1} parent=11 // pred_fallthru
          _
        // Predicated region
        $region25: #{tpu_custom_call.1} parent=11 // pred_check
          %p450 = pneg %p214
        $region26: #{tpu_custom_call.1} parent=11 // pred_check_branch
          %452 = sbr.rel (%p450) target = $region28
        $region27: #{tpu_custom_call.1} parent=11 // pred_region
          %s454 = ssub.s32 64, 64
          %455 = vsyncadd [#allocation14], %s454
          %s456 = sshll.u32 [#allocation15], 4
          %s457 = int_to_ptr.vmem [resolvable:$true] %s456
          %462 = dma.hbm_to_vmem [thread:$0]  %s6, 64, %s457, [#allocation14], 16, 16, 1
        $region28: #{tpu_custom_call.1} parent=11 // pred_fallthru
          _
        // Predicated region
        $region29: #{tpu_custom_call.1} parent=11 // pred_check
          %p463 = pneg %p235
        $region30: #{tpu_custom_call.1} parent=11 // pred_check_branch
          %465 = sbr.rel (%p463) target = $region32
        $region31: #{tpu_custom_call.1} parent=11 // pred_region
          %s467 = ssub.s32 8192, 8192
          %468 = vsyncadd [#allocation17], %s467
          %s469 = sshll.u32 [#allocation16], 4
          %s470 = int_to_ptr.vmem [resolvable:$true] %s469
          %475 = dma.hbm_to_vmem [thread:$0]  %s7, 8192, %s470, [#allocation17], 128, 128, 8
        $region32: #{tpu_custom_call.1} parent=11 // pred_fallthru
          _
        // Predicated region
        $region33: #{tpu_custom_call.1} parent=11 // pred_check
          %p476 = pneg %p256
        $region34: #{tpu_custom_call.1} parent=11 // pred_check_branch
          %478 = sbr.rel (%p476) target = $region36
        $region35: #{tpu_custom_call.1} parent=11 // pred_region
          %s480 = ssub.s32 64, 64
          %481 = vsyncadd [#allocation17], %s480
          %s482 = sshll.u32 [#allocation18], 4
          %s483 = int_to_ptr.vmem [resolvable:$true] %s482
          %488 = dma.hbm_to_vmem [thread:$0]  %s8, 64, %s483, [#allocation17], 16, 16, 1
        $region36: #{tpu_custom_call.1} parent=11 // pred_fallthru
          _
        // Predicated region
        $region37: #{tpu_custom_call.1} parent=11 // pred_check
          %p489 = pneg %p277
        $region38: #{tpu_custom_call.1} parent=11 // pred_check_branch
          %491 = sbr.rel (%p489) target = $region40
        $region39: #{tpu_custom_call.1} parent=11 // pred_region
          %s493 = ssub.s32 2048, 2048
          %494 = vsyncadd [#allocation20], %s493
          %s495 = sshll.u32 [#allocation19], 4
          %s496 = int_to_ptr.vmem [resolvable:$true] %s495
          %501 = dma.hbm_to_vmem [thread:$0]  %s9, 2048, %s496, [#allocation20], 128, 128, 8
        $region40: #{tpu_custom_call.1} parent=11 // pred_fallthru
          _
        // Predicated region
        $region41: #{tpu_custom_call.1} parent=11 // pred_check
          %p502 = pneg %p298
        $region42: #{tpu_custom_call.1} parent=11 // pred_check_branch
          %504 = sbr.rel (%p502) target = $region44
        $region43: #{tpu_custom_call.1} parent=11 // pred_region
          %s506 = ssub.s32 16, 16
          %507 = vsyncadd [#allocation20], %s506
          %s509 = sshll.u32 [#allocation21], 4
          %s510 = int_to_ptr.vmem [resolvable:$true] %s509
          %512 = dma.hbm_to_vmem [thread:$0]  %s10, 16, %s510, [#allocation20]
        $region44: #{tpu_custom_call.1} parent=11 // pred_fallthru
          _
        // Predicated region
        $region45: #{tpu_custom_call.1} parent=11 // pred_check
          %p513 = pneg %p319
        $region46: #{tpu_custom_call.1} parent=11 // pred_check_branch
          %515 = sbr.rel (%p513) target = $region48
        $region47: #{tpu_custom_call.1} parent=11 // pred_region
          %s517 = ssub.s32 16, 16
          %518 = vsyncadd [#allocation23], %s517
          %s520 = sshll.u32 [#allocation22], 4
          %s521 = int_to_ptr.vmem [resolvable:$true] %s520
          %523 = dma.hbm_to_vmem [thread:$0]  %s11, 16, %s521, [#allocation23]
        $region48: #{tpu_custom_call.1} parent=11 // pred_fallthru
          _
        // Predicated region
        $region49: #{tpu_custom_call.1} parent=11 // pred_check
          %p524 = pneg %p340
        $region50: #{tpu_custom_call.1} parent=11 // pred_check_branch
          %526 = sbr.rel (%p524) target = $region52
        $region51: #{tpu_custom_call.1} parent=11 // pred_region
          %s528 = ssub.s32 16, 16
          %529 = vsyncadd [#allocation23], %s528
          %s531 = sshll.u32 [#allocation24], 4
          %s532 = int_to_ptr.vmem [resolvable:$true] %s531
          %534 = dma.hbm_to_vmem [thread:$0]  %s12, 16, %s532, [#allocation23]
        $region52: #{tpu_custom_call.1} parent=11 // pred_fallthru
          _
      $region12: #{tpu_custom_call.1} parent=5 // pred_fallthru
        _
      %p535 = scmp.lt.s32.totalorder %s38, 4
      // Predicated region
      $region53: #{tpu_custom_call.1} parent=5 // pred_check
        %p536 = pneg %p535
      $region54: #{tpu_custom_call.1} parent=5 // pred_check_branch
        %538 = sbr.rel (%p536) target = $region56
      $region55: #{tpu_custom_call.1} parent=5 // pred_region
        // Predicated region
        $region57: #{tpu_custom_call.1} parent=55 // pred_check
          %p539 = pneg %p72
        $region58: #{tpu_custom_call.1} parent=55 // pred_check_branch
          %541 = sbr.rel (%p539) target = $region60
        $region59: #{tpu_custom_call.1} parent=55 // pred_region
          %s542 = sand.u32 %s62, 1
          %s543 = scalar_lea.sflag [#allocation5], %s542
          %s544 = sand.u32 %s62, 1
          %s545 = smul.addr %s544, 16
          %s546 = scalar_lea.vmem [#allocation4], %s545
          %s547 = smul.u32 2, %s46
          %s549 = ssub.s32 256, 256
          %550 = vsyncadd %s543, %s549
          %s551 = smul.addr %s45, 4
          %s552 = sadd.s32 %s547, %s551
          %s553 = smul.addr %s552, 128
          %s554 = scalar_lea.hbm %s0, %s553
          %s555 = sshll.u32 %s546, 4
          %s556 = int_to_ptr.vmem [resolvable:$true] %s555
          %561 = dma.hbm_to_vmem [thread:$0]  %s554, 256, %s556, %s543, 128, 128, 8
        $region60: #{tpu_custom_call.1} parent=55 // pred_fallthru
          _
        // Predicated region
        $region61: #{tpu_custom_call.1} parent=55 // pred_check
          %p562 = pneg %p98
        $region62: #{tpu_custom_call.1} parent=55 // pred_check_branch
          %564 = sbr.rel (%p562) target = $region64
        $region63: #{tpu_custom_call.1} parent=55 // pred_region
          %s565 = sand.u32 %s38, 1
          %s566 = scalar_lea.sflag [#allocation8], %s565
          %s567 = sand.u32 %s88, 1
          %s568 = smul.addr %s567, 32
          %s569 = scalar_lea.vmem [#allocation7], %s568
          %s571 = ssub.s32 512, 512
          %572 = vsyncadd %s566, %s571
          %s573 = smul.addr %s45, 4
          %s574 = smul.addr %s573, 128
          %s575 = scalar_lea.hbm %s1, %s574
          %s576 = sshll.u32 %s569, 4
          %s577 = int_to_ptr.vmem [resolvable:$true] %s576
          %582 = dma.hbm_to_vmem [thread:$0]  %s575, 512, %s577, %s566, 128, 128, 8
        $region64: #{tpu_custom_call.1} parent=55 // pred_fallthru
          _
        // Predicated region
        $region65: #{tpu_custom_call.1} parent=55 // pred_check
          %p583 = pneg %p124
        $region66: #{tpu_custom_call.1} parent=55 // pred_check_branch
          %585 = sbr.rel (%p583) target = $region68
        $region67: #{tpu_custom_call.1} parent=55 // pred_region
          %s586 = sand.u32 %s38, 1
          %s587 = scalar_lea.sflag [#allocation8], %s586
          %s588 = sand.u32 %s114, 1
          %s589 = smul.addr %s588, 32
          %s590 = scalar_lea.vmem [#allocation9], %s589
          %s592 = ssub.s32 512, 512
          %593 = vsyncadd %s587, %s592
          %s594 = smul.addr %s45, 4
          %s595 = smul.addr %s594, 128
          %s596 = scalar_lea.hbm %s2, %s595
          %s597 = sshll.u32 %s590, 4
          %s598 = int_to_ptr.vmem [resolvable:$true] %s597
          %603 = dma.hbm_to_vmem [thread:$0]  %s596, 512, %s598, %s587, 128, 128, 8
        $region68: #{tpu_custom_call.1} parent=55 // pred_fallthru
          _
      $region56: #{tpu_custom_call.1} parent=5 // pred_fallthru
        _
      %p604 = scmp.le.s32.totalorder 1, %s38
      %p605 = scmp.lt.s32.totalorder %s38, 5
      %p606 = pnand %p604, %p605
      %p607 = pneg %p606
      // Predicated region
      $region69: #{tpu_custom_call.1} parent=5 // pred_check
        _
      $region70: #{tpu_custom_call.1} parent=5 // pred_check_branch
        %609 = sbr.rel (%p606) target = $region72
      $region71: #{tpu_custom_call.1} parent=5 // pred_region
        %s610 = ssub.s32 %s38, 1
        %s611 = sand.u32 %s65, 1
        %s612 = scalar_lea.sflag [#allocation5], %s611
        %s613 = sand.u32 %s65, 1
        %s614 = smul.addr %s613, 16
        %s615 = scalar_lea.vmem [#allocation4], %s614
        // Predicated region
        $region73: #{tpu_custom_call.1} parent=71 // pred_check
          %p616 = pneg %p78
        $region74: #{tpu_custom_call.1} parent=71 // pred_check_branch
          %618 = sbr.rel (%p616) target = $region76
        $region75: #{tpu_custom_call.1} parent=71 // pred_region
          %619 = dma.done %s612, 256
        $region76: #{tpu_custom_call.1} parent=71 // pred_fallthru
          _
        %s620 = sand.u32 %s43, 1
        %s621 = scalar_lea.sflag [#allocation8], %s620
        %s622 = sand.u32 %s91, 1
        %s623 = smul.addr %s622, 32
        %s624 = scalar_lea.vmem [#allocation7], %s623
        // Predicated region
        $region77: #{tpu_custom_call.1} parent=71 // pred_check
          %p625 = pneg %p104
        $region78: #{tpu_custom_call.1} parent=71 // pred_check_branch
          %627 = sbr.rel (%p625) target = $region80
        $region79: #{tpu_custom_call.1} parent=71 // pred_region
          %628 = dma.done %s621, 512
        $region80: #{tpu_custom_call.1} parent=71 // pred_fallthru
          _
        %s629 = sand.u32 %s43, 1
        %s630 = scalar_lea.sflag [#allocation8], %s629
        %s631 = sand.u32 %s117, 1
        %s632 = smul.addr %s631, 32
        %s633 = scalar_lea.vmem [#allocation9], %s632
        // Predicated region
        $region81: #{tpu_custom_call.1} parent=71 // pred_check
          %p634 = pneg %p130
        $region82: #{tpu_custom_call.1} parent=71 // pred_check_branch
          %636 = sbr.rel (%p634) target = $region84
        $region83: #{tpu_custom_call.1} parent=71 // pred_region
          %637 = dma.done %s630, 512
        $region84: #{tpu_custom_call.1} parent=71 // pred_fallthru
          _
        // Predicated region
        $region85: #{tpu_custom_call.1} parent=71 // pred_check
          %p638 = pneg %p151
        $region86: #{tpu_custom_call.1} parent=71 // pred_check_branch
          %640 = sbr.rel (%p638) target = $region88
        $region87: #{tpu_custom_call.1} parent=71 // pred_region
          %641 = dma.done [#allocation11], 8192
        $region88: #{tpu_custom_call.1} parent=71 // pred_fallthru
          _
        // Predicated region
        $region89: #{tpu_custom_call.1} parent=71 // pred_check
          %p642 = pneg %p172
        $region90: #{tpu_custom_call.1} parent=71 // pred_check_branch
          %644 = sbr.rel (%p642) target = $region92
        $region91: #{tpu_custom_call.1} parent=71 // pred_region
          %645 = dma.done [#allocation11], 64
        $region92: #{tpu_custom_call.1} parent=71 // pred_fallthru
          _
        // Predicated region
        $region93: #{tpu_custom_call.1} parent=71 // pred_check
          %p646 = pneg %p193
        $region94: #{tpu_custom_call.1} parent=71 // pred_check_branch
          %648 = sbr.rel (%p646) target = $region96
        $region95: #{tpu_custom_call.1} parent=71 // pred_region
          %649 = dma.done [#allocation14], 8192
        $region96: #{tpu_custom_call.1} parent=71 // pred_fallthru
          _
        // Predicated region
        $region97: #{tpu_custom_call.1} parent=71 // pred_check
          %p650 = pneg %p214
        $region98: #{tpu_custom_call.1} parent=71 // pred_check_branch
          %652 = sbr.rel (%p650) target = $region100
        $region99: #{tpu_custom_call.1} parent=71 // pred_region
          %653 = dma.done [#allocation14], 64
        $region100: #{tpu_custom_call.1} parent=71 // pred_fallthru
          _
        // Predicated region
        $region101: #{tpu_custom_call.1} parent=71 // pred_check
          %p654 = pneg %p235
        $region102: #{tpu_custom_call.1} parent=71 // pred_check_branch
          %656 = sbr.rel (%p654) target = $region104
        $region103: #{tpu_custom_call.1} parent=71 // pred_region
          %657 = dma.done [#allocation17], 8192
        $region104: #{tpu_custom_call.1} parent=71 // pred_fallthru
          _
        // Predicated region
        $region105: #{tpu_custom_call.1} parent=71 // pred_check
          %p658 = pneg %p256
        $region106: #{tpu_custom_call.1} parent=71 // pred_check_branch
          %660 = sbr.rel (%p658) target = $region108
        $region107: #{tpu_custom_call.1} parent=71 // pred_region
          %661 = dma.done [#allocation17], 64
        $region108: #{tpu_custom_call.1} parent=71 // pred_fallthru
          _
        // Predicated region
        $region109: #{tpu_custom_call.1} parent=71 // pred_check
          %p662 = pneg %p277
        $region110: #{tpu_custom_call.1} parent=71 // pred_check_branch
          %664 = sbr.rel (%p662) target = $region112
        $region111: #{tpu_custom_call.1} parent=71 // pred_region
          %665 = dma.done [#allocation20], 2048
        $region112: #{tpu_custom_call.1} parent=71 // pred_fallthru
          _
        // Predicated region
        $region113: #{tpu_custom_call.1} parent=71 // pred_check
          %p666 = pneg %p298
        $region114: #{tpu_custom_call.1} parent=71 // pred_check_branch
          %668 = sbr.rel (%p666) target = $region116
        $region115: #{tpu_custom_call.1} parent=71 // pred_region
          %669 = dma.done [#allocation20], 16
        $region116: #{tpu_custom_call.1} parent=71 // pred_fallthru
          _
        // Predicated region
        $region117: #{tpu_custom_call.1} parent=71 // pred_check
          %p670 = pneg %p319
        $region118: #{tpu_custom_call.1} parent=71 // pred_check_branch
          %672 = sbr.rel (%p670) target = $region120
        $region119: #{tpu_custom_call.1} parent=71 // pred_region
          %673 = dma.done [#allocation23], 16
        $region120: #{tpu_custom_call.1} parent=71 // pred_fallthru
          _
        // Predicated region
        $region121: #{tpu_custom_call.1} parent=71 // pred_check
          %p674 = pneg %p340
        $region122: #{tpu_custom_call.1} parent=71 // pred_check_branch
          %676 = sbr.rel (%p674) target = $region124
        $region123: #{tpu_custom_call.1} parent=71 // pred_region
          %677 = dma.done [#allocation23], 16
        $region124: #{tpu_custom_call.1} parent=71 // pred_fallthru
          _
        %s678 = sand.u32 %s65, 1
        %s679 = scalar_lea.sflag [#allocation5], %s678
        %s680 = sand.u32 %s65, 1
        %s681 = smul.addr %s680, 16
        %s682 = scalar_lea.vmem [#allocation4], %s681
        %p683 = pneg %p78
        %p684 = pneg %p75
        %s685 = sand.u32 %s43, 1
        %s686 = scalar_lea.sflag [#allocation8], %s685
        %s687 = sand.u32 %s91, 1
        %s688 = smul.addr %s687, 32
        %s689 = scalar_lea.vmem [#allocation7], %s688
        %p690 = pneg %p104
        %p691 = pneg %p101
        %s692 = sand.u32 %s43, 1
        %s693 = scalar_lea.sflag [#allocation8], %s692
        %s694 = sand.u32 %s117, 1
        %s695 = smul.addr %s694, 32
        %s696 = scalar_lea.vmem [#allocation9], %s695
        %p697 = pneg %p130
        %p698 = pneg %p127
        %p699 = pneg %p151
        %p700 = pneg %p148
        %p701 = pneg %p172
        %p702 = pneg %p169
        %p703 = pneg %p193
        %p704 = pneg %p190
        %p705 = pneg %p214
        %p706 = pneg %p211
        %p707 = pneg %p235
        %p708 = pneg %p232
        %p709 = pneg %p256
        %p710 = pneg %p253
        %p711 = pneg %p277
        %p712 = pneg %p274
        %p713 = pneg %p298
        %p714 = pneg %p295
        %p715 = pneg %p319
        %p716 = pneg %p316
        %p717 = pneg %p340
        %p718 = pneg %p337
        %p719 = pneg %p368
        %p720 = pneg %p365
        %s721 = sand.u32 %s355, 1
        %s722 = scalar_lea.sflag [#allocation6], %s721
        %s723 = sand.u32 %s355, 1
        %s724 = smul.addr %s723, 16
        %s725 = scalar_lea.vmem [#allocation25], %s724
        %p726 = pneg %p396
        %p727 = pneg %p393
        %s728 = sand.u32 %s383, 1
        %s729 = scalar_lea.sflag [#allocation27], %s728
        %s730 = sand.u32 %s383, 1
        %s731 = smul.addr %s730, 64
        %s732 = scalar_lea.vmem [#allocation26], %s731
        %s733 = smul.u32 2, %s48
        %s734 = smul.u32 2, %s48
        %s735 = smul.u32 2, %s48
        %v736 = vld [vmem:[%s615] sm:$0xff]
        %v737 = vld [vmem:[%s615 + $0x8] sm:$0xff]
        %p738 = scmp.eq.s32.totalorder %s48, 0
        // Predicated region
        $region125: #{tpu_custom_call.1} parent=71 // pred_check
          %p739 = pneg %p738
        $region126: #{tpu_custom_call.1} parent=71 // pred_check_branch
          %741 = sbr.rel (%p739) target = $region128
        $region127: #{tpu_custom_call.1} parent=71 // pred_region
          %v742 = vld [vmem:[%s624] sm:$0xff]
          %v743 = vld [vmem:[%s624 + $0x8] sm:$0xff]
          %v744 = vld [vmem:[%s624 + $0x10] sm:$0xff]
          %v745 = vld [vmem:[%s624 + $0x18] sm:$0xff]
          %v746 = vld [vmem:[%s633] sm:$0xff]
          %v747 = vld [vmem:[%s633 + $0x8] sm:$0xff]
          %v748 = vld [vmem:[%s633 + $0x10] sm:$0xff]
          %v749 = vld [vmem:[%s633 + $0x18] sm:$0xff]
          %v750 = vld [vmem:[#allocation13] sm:$0xff]
          %v751 = vld [vmem:[#allocation13 + $0x8] sm:$0xff]
          %v752 = vld [vmem:[#allocation13 + $0x10] sm:$0xff]
          %v753 = vld [vmem:[#allocation13 + $0x18] sm:$0xff]
          %v754 = vld [vmem:[#allocation13 + $0x20] sm:$0xff]
          %v755 = vld [vmem:[#allocation13 + $0x28] sm:$0xff]
          %v756 = vld [vmem:[#allocation13 + $0x30] sm:$0xff]
          %v757 = vld [vmem:[#allocation13 + $0x38] sm:$0xff]
          %v758 = vld [vmem:[#allocation13 + $0x40] sm:$0xff]
          %v759 = vld [vmem:[#allocation13 + $0x48] sm:$0xff]
          %v760 = vld [vmem:[#allocation13 + $0x50] sm:$0xff]
          %v761 = vld [vmem:[#allocation13 + $0x58] sm:$0xff]
          %v762 = vld [vmem:[#allocation13 + $0x60] sm:$0xff]
          %v763 = vld [vmem:[#allocation13 + $0x68] sm:$0xff]
          %v764 = vld [vmem:[#allocation13 + $0x70] sm:$0xff]
          %v765 = vld [vmem:[#allocation13 + $0x78] sm:$0xff]
          %v766 = vld [vmem:[#allocation15] sm:$0x1]
          %v768 = vlaneseq
          %v769 = vshrl.u32 %v768, 7
          %v770 = vsub.s32 0, %v769
          %v771 = vrot.slane %v766, %v770
          %773 = vmatprep.subr.mxu0 0.0
          %774 = vmatpush1.msra.mxu0 %v750
          %775 = vmatprep.subr.mxu0 0.0
          %776 = vmatpush1.msra.mxu0 %v751
          %777 = vmatprep.subr.mxu0 0.0
          %778 = vmatpush1.msra.mxu0 %v752
          %779 = vmatprep.subr.mxu0 0.0
          %780 = vmatpush1.msra.mxu0 %v753
          %781 = vmatprep.subr.mxu0 0.0
          %782 = vmatpush1.msra.mxu0 %v754
          %783 = vmatprep.subr.mxu0 0.0
          %784 = vmatpush1.msra.mxu0 %v755
          %785 = vmatprep.subr.mxu0 0.0
          %786 = vmatpush1.msra.mxu0 %v756
          %787 = vmatprep.subr.mxu0 0.0
          %788 = vmatpush1.msra.mxu0 %v757
          %789 = vmatprep.subr.mxu0 0.0
          %790 = vmatpush1.msra.mxu0 %v758
          %791 = vmatprep.subr.mxu0 0.0
          %792 = vmatpush1.msra.mxu0 %v759
          %793 = vmatprep.subr.mxu0 0.0
          %794 = vmatpush1.msra.mxu0 %v760
          %795 = vmatprep.subr.mxu0 0.0
          %796 = vmatpush1.msra.mxu0 %v761
          %797 = vmatprep.subr.mxu0 0.0
          %798 = vmatpush1.msra.mxu0 %v762
          %799 = vmatprep.subr.mxu0 0.0
          %800 = vmatpush1.msra.mxu0 %v763
          %801 = vmatprep.subr.mxu0 0.0
          %802 = vmatpush1.msra.mxu0 %v764
          %803 = vmatprep.subr.mxu0 0.0
          %804 = vmatpush1.msra.mxu0 %v765
          %805 = vmatprep.subr.mxu0 0.0
          %806 = vmatpush1.msra.mxu0 0.0
          %807 = vmatprep.subr.mxu0 0.0
          %808 = vmatpush1.msra.mxu0 0.0
          %809 = vmatprep.subr.mxu0 0.0
          %810 = vmatpush1.msra.mxu0 0.0
          %811 = vmatprep.subr.mxu0 0.0
          %812 = vmatpush1.msra.mxu0 0.0
          %813 = vmatprep.subr.mxu0 0.0
          %814 = vmatpush1.msra.mxu0 0.0
          %815 = vmatprep.subr.mxu0 0.0
          %816 = vmatpush1.msra.mxu0 0.0
          %817 = vmatprep.subr.mxu0 0.0
          %818 = vmatpush1.msra.mxu0 0.0
          %819 = vmatprep.subr.mxu0 0.0
          %820 = vmatpush1.msra.mxu0 0.0
          %821 = vmatprep.subr.mxu0 0.0
          %822 = vmatpush1.msra.mxu0 0.0
          %823 = vmatprep.subr.mxu0 0.0
          %824 = vmatpush1.msra.mxu0 0.0
          %825 = vmatprep.subr.mxu0 0.0
          %826 = vmatpush1.msra.mxu0 0.0
          %827 = vmatprep.subr.mxu0 0.0
          %828 = vmatpush1.msra.mxu0 0.0
          %829 = vmatprep.subr.mxu0 0.0
          %830 = vmatpush1.msra.mxu0 0.0
          %831 = vmatprep.subr.mxu0 0.0
          %832 = vmatpush1.msra.mxu0 0.0
          %833 = vmatprep.subr.mxu0 0.0
          %834 = vmatpush1.msra.mxu0 0.0
          %835 = vmatprep.subr.mxu0 0.0
          %836 = vmatpush1.msra.mxu0 0.0
          %837 = vmatprep.mubr.f32.mxu0 0.0
          %838 = vmatmul.mubr.f32.gmra.mrb[0].mxu0 %v742
          %v839 = vpop.f32.mrb[0].mxu0
          %v840 = vadd.f32 %v771, %v839
          %v841 = vpop.f32.mrb[0].mxu0
          %842 = vmatprep.mubr.f32.mxu0 0.0
          %843 = vmatmul.mubr.f32.gmra.mrb[0].mxu0 %v743
          %v844 = vpop.f32.mrb[0].mxu0
          %v845 = vadd.f32 %v771, %v844
          %v846 = vpop.f32.mrb[0].mxu0
          %847 = vmatprep.mubr.f32.mxu0 0.0
          %848 = vmatmul.mubr.f32.gmra.mrb[0].mxu0 %v744
          %v849 = vpop.f32.mrb[0].mxu0
          %v850 = vadd.f32 %v771, %v849
          %v851 = vpop.f32.mrb[0].mxu0
          %852 = vmatprep.mubr.f32.mxu0 0.0
          %853 = vmatmul.mubr.f32.gmra.mrb[0].mxu0 %v745
          %v854 = vpop.f32.mrb[0].mxu0
          %v855 = vadd.f32 %v771, %v854
          %v856 = vpop.f32.mrb[0].mxu0
          %857 = vdwg.mxu0
          %v858 = vld [vmem:[#allocation16] sm:$0xff]
          %v859 = vld [vmem:[#allocation16 + $0x8] sm:$0xff]
          %v860 = vld [vmem:[#allocation16 + $0x10] sm:$0xff]
          %v861 = vld [vmem:[#allocation16 + $0x18] sm:$0xff]
          %v862 = vld [vmem:[#allocation16 + $0x20] sm:$0xff]
          %v863 = vld [vmem:[#allocation16 + $0x28] sm:$0xff]
          %v864 = vld [vmem:[#allocation16 + $0x30] sm:$0xff]
          %v865 = vld [vmem:[#allocation16 + $0x38] sm:$0xff]
          %v866 = vld [vmem:[#allocation16 + $0x40] sm:$0xff]
          %v867 = vld [vmem:[#allocation16 + $0x48] sm:$0xff]
          %v868 = vld [vmem:[#allocation16 + $0x50] sm:$0xff]
          %v869 = vld [vmem:[#allocation16 + $0x58] sm:$0xff]
          %v870 = vld [vmem:[#allocation16 + $0x60] sm:$0xff]
          %v871 = vld [vmem:[#allocation16 + $0x68] sm:$0xff]
          %v872 = vld [vmem:[#allocation16 + $0x70] sm:$0xff]
          %v873 = vld [vmem:[#allocation16 + $0x78] sm:$0xff]
          %v874 = vld [vmem:[#allocation18] sm:$0x1]
          %v876 = vlaneseq
          %v877 = vshrl.u32 %v876, 7
          %v878 = vsub.s32 0, %v877
          %v879 = vrot.slane %v874, %v878
          %881 = vmatprep.subr.mxu0 0.0
          %882 = vmatpush1.msra.mxu0 %v858
          %883 = vmatprep.subr.mxu0 0.0
          %884 = vmatpush1.msra.mxu0 %v859
          %885 = vmatprep.subr.mxu0 0.0
          %886 = vmatpush1.msra.mxu0 %v860
          %887 = vmatprep.subr.mxu0 0.0
          %888 = vmatpush1.msra.mxu0 %v861
          %889 = vmatprep.subr.mxu0 0.0
          %890 = vmatpush1.msra.mxu0 %v862
          %891 = vmatprep.subr.mxu0 0.0
          %892 = vmatpush1.msra.mxu0 %v863
          %893 = vmatprep.subr.mxu0 0.0
          %894 = vmatpush1.msra.mxu0 %v864
          %895 = vmatprep.subr.mxu0 0.0
          %896 = vmatpush1.msra.mxu0 %v865
          %897 = vmatprep.subr.mxu0 0.0
          %898 = vmatpush1.msra.mxu0 %v866
          %899 = vmatprep.subr.mxu0 0.0
          %900 = vmatpush1.msra.mxu0 %v867
          %901 = vmatprep.subr.mxu0 0.0
          %902 = vmatpush1.msra.mxu0 %v868
          %903 = vmatprep.subr.mxu0 0.0
          %904 = vmatpush1.msra.mxu0 %v869
          %905 = vmatprep.subr.mxu0 0.0
          %906 = vmatpush1.msra.mxu0 %v870
          %907 = vmatprep.subr.mxu0 0.0
          %908 = vmatpush1.msra.mxu0 %v871
          %909 = vmatprep.subr.mxu0 0.0
          %910 = vmatpush1.msra.mxu0 %v872
          %911 = vmatprep.subr.mxu0 0.0
          %912 = vmatpush1.msra.mxu0 %v873
          %913 = vmatprep.subr.mxu0 0.0
          %914 = vmatpush1.msra.mxu0 0.0
          %915 = vmatprep.subr.mxu0 0.0
          %916 = vmatpush1.msra.mxu0 0.0
          %917 = vmatprep.subr.mxu0 0.0
          %918 = vmatpush1.msra.mxu0 0.0
          %919 = vmatprep.subr.mxu0 0.0
          %920 = vmatpush1.msra.mxu0 0.0
          %921 = vmatprep.subr.mxu0 0.0
          %922 = vmatpush1.msra.mxu0 0.0
          %923 = vmatprep.subr.mxu0 0.0
          %924 = vmatpush1.msra.mxu0 0.0
          %925 = vmatprep.subr.mxu0 0.0
          %926 = vmatpush1.msra.mxu0 0.0
          %927 = vmatprep.subr.mxu0 0.0
          %928 = vmatpush1.msra.mxu0 0.0
          %929 = vmatprep.subr.mxu0 0.0
          %930 = vmatpush1.msra.mxu0 0.0
          %931 = vmatprep.subr.mxu0 0.0
          %932 = vmatpush1.msra.mxu0 0.0
          %933 = vmatprep.subr.mxu0 0.0
          %934 = vmatpush1.msra.mxu0 0.0
          %935 = vmatprep.subr.mxu0 0.0
          %936 = vmatpush1.msra.mxu0 0.0
          %937 = vmatprep.subr.mxu0 0.0
          %938 = vmatpush1.msra.mxu0 0.0
          %939 = vmatprep.subr.mxu0 0.0
          %940 = vmatpush1.msra.mxu0 0.0
          %941 = vmatprep.subr.mxu0 0.0
          %942 = vmatpush1.msra.mxu0 0.0
          %943 = vmatprep.subr.mxu0 0.0
          %944 = vmatpush1.msra.mxu0 0.0
          %945 = vmatprep.mubr.f32.mxu0 0.0
          %946 = vmatmul.mubr.f32.gmra.mrb[0].mxu0 %v746
          %v947 = vpop.f32.mrb[0].mxu0
          %v948 = vadd.f32 %v879, %v947
          %v949 = vpop.f32.mrb[0].mxu0
          %950 = vmatprep.mubr.f32.mxu0 0.0
          %951 = vmatmul.mubr.f32.gmra.mrb[0].mxu0 %v747
          %v952 = vpop.f32.mrb[0].mxu0
          %v953 = vadd.f32 %v879, %v952
          %v954 = vpop.f32.mrb[0].mxu0
          %955 = vmatprep.mubr.f32.mxu0 0.0
          %956 = vmatmul.mubr.f32.gmra.mrb[0].mxu0 %v748
          %v957 = vpop.f32.mrb[0].mxu0
          %v958 = vadd.f32 %v879, %v957
          %v959 = vpop.f32.mrb[0].mxu0
          %960 = vmatprep.mubr.f32.mxu0 0.0
          %961 = vmatmul.mubr.f32.gmra.mrb[0].mxu0 %v749
          %v962 = vpop.f32.mrb[0].mxu0
          %v963 = vadd.f32 %v879, %v962
          %v964 = vpop.f32.mrb[0].mxu0
          %965 = vdwg.mxu0
          %vm966 = vcmask 261120
          %967 = vst.msk [vmem:[#allocation2] sm:$0xff] %vm966, %v840
          %968 = vst.msk [vmem:[#allocation2 + $0x8] sm:$0xff] %vm966, %v845
          %969 = vst.msk [vmem:[#allocation2 + $0x10] sm:$0xff] %vm966, %v850
          %970 = vst.msk [vmem:[#allocation2 + $0x18] sm:$0xff] %vm966, %v855
          %971 = vst.msk [vmem:[#allocation3] sm:$0xff] %vm966, %v948
          %972 = vst.msk [vmem:[#allocation3 + $0x8] sm:$0xff] %vm966, %v953
          %973 = vst.msk [vmem:[#allocation3 + $0x10] sm:$0xff] %vm966, %v958
          %974 = vst.msk [vmem:[#allocation3 + $0x18] sm:$0xff] %vm966, %v963
          %s975 = scalar_lea.vmem [#allocation13], 128
          %v976 = vld [vmem:[%s975] sm:$0xff]
          %v977 = vld [vmem:[%s975 + $0x8] sm:$0xff]
          %v978 = vld [vmem:[%s975 + $0x10] sm:$0xff]
          %v979 = vld [vmem:[%s975 + $0x18] sm:$0xff]
          %v980 = vld [vmem:[%s975 + $0x20] sm:$0xff]
          %v981 = vld [vmem:[%s975 + $0x28] sm:$0xff]
          %v982 = vld [vmem:[%s975 + $0x30] sm:$0xff]
          %v983 = vld [vmem:[%s975 + $0x38] sm:$0xff]
          %v984 = vld [vmem:[%s975 + $0x40] sm:$0xff]
          %v985 = vld [vmem:[%s975 + $0x48] sm:$0xff]
          %v986 = vld [vmem:[%s975 + $0x50] sm:$0xff]
          %v987 = vld [vmem:[%s975 + $0x58] sm:$0xff]
          %v988 = vld [vmem:[%s975 + $0x60] sm:$0xff]
          %v989 = vld [vmem:[%s975 + $0x68] sm:$0xff]
          %v990 = vld [vmem:[%s975 + $0x70] sm:$0xff]
          %v991 = vld [vmem:[%s975 + $0x78] sm:$0xff]
          %s992 = scalar_lea.vmem [#allocation15], 1
          %v993 = vld [vmem:[%s992] sm:$0x1]
          %v995 = vlaneseq
          %v996 = vshrl.u32 %v995, 7
          %v997 = vsub.s32 0, %v996
          %v998 = vrot.slane %v993, %v997
          %1000 = vmatprep.subr.mxu0 0.0
          %1001 = vmatpush1.msra.mxu0 %v976
          %1002 = vmatprep.subr.mxu0 0.0
          %1003 = vmatpush1.msra.mxu0 %v977
          %1004 = vmatprep.subr.mxu0 0.0
          %1005 = vmatpush1.msra.mxu0 %v978
          %1006 = vmatprep.subr.mxu0 0.0
          %1007 = vmatpush1.msra.mxu0 %v979
          %1008 = vmatprep.subr.mxu0 0.0
          %1009 = vmatpush1.msra.mxu0 %v980
          %1010 = vmatprep.subr.mxu0 0.0
          %1011 = vmatpush1.msra.mxu0 %v981
          %1012 = vmatprep.subr.mxu0 0.0
          %1013 = vmatpush1.msra.mxu0 %v982
          %1014 = vmatprep.subr.mxu0 0.0
          %1015 = vmatpush1.msra.mxu0 %v983
          %1016 = vmatprep.subr.mxu0 0.0
          %1017 = vmatpush1.msra.mxu0 %v984
          %1018 = vmatprep.subr.mxu0 0.0
          %1019 = vmatpush1.msra.mxu0 %v985
          %1020 = vmatprep.subr.mxu0 0.0
          %1021 = vmatpush1.msra.mxu0 %v986
          %1022 = vmatprep.subr.mxu0 0.0
          %1023 = vmatpush1.msra.mxu0 %v987
          %1024 = vmatprep.subr.mxu0 0.0
          %1025 = vmatpush1.msra.mxu0 %v988
          %1026 = vmatprep.subr.mxu0 0.0
          %1027 = vmatpush1.msra.mxu0 %v989
          %1028 = vmatprep.subr.mxu0 0.0
          %1029 = vmatpush1.msra.mxu0 %v990
          %1030 = vmatprep.subr.mxu0 0.0
          %1031 = vmatpush1.msra.mxu0 %v991
          %1032 = vmatprep.subr.mxu0 0.0
          %1033 = vmatpush1.msra.mxu0 0.0
          %1034 = vmatprep.subr.mxu0 0.0
          %1035 = vmatpush1.msra.mxu0 0.0
          %1036 = vmatprep.subr.mxu0 0.0
          %1037 = vmatpush1.msra.mxu0 0.0
          %1038 = vmatprep.subr.mxu0 0.0
          %1039 = vmatpush1.msra.mxu0 0.0
          %1040 = vmatprep.subr.mxu0 0.0
          %1041 = vmatpush1.msra.mxu0 0.0
          %1042 = vmatprep.subr.mxu0 0.0
          %1043 = vmatpush1.msra.mxu0 0.0
          %1044 = vmatprep.subr.mxu0 0.0
          %1045 = vmatpush1.msra.mxu0 0.0
          %1046 = vmatprep.subr.mxu0 0.0
          %1047 = vmatpush1.msra.mxu0 0.0
          %1048 = vmatprep.subr.mxu0 0.0
          %1049 = vmatpush1.msra.mxu0 0.0
          %1050 = vmatprep.subr.mxu0 0.0
          %1051 = vmatpush1.msra.mxu0 0.0
          %1052 = vmatprep.subr.mxu0 0.0
          %1053 = vmatpush1.msra.mxu0 0.0
          %1054 = vmatprep.subr.mxu0 0.0
          %1055 = vmatpush1.msra.mxu0 0.0
          %1056 = vmatprep.subr.mxu0 0.0
          %1057 = vmatpush1.msra.mxu0 0.0
          %1058 = vmatprep.subr.mxu0 0.0
          %1059 = vmatpush1.msra.mxu0 0.0
          %1060 = vmatprep.subr.mxu0 0.0
          %1061 = vmatpush1.msra.mxu0 0.0
          %1062 = vmatprep.subr.mxu0 0.0
          %1063 = vmatpush1.msra.mxu0 0.0
          %1064 = vmatprep.mubr.f32.mxu0 0.0
          %1065 = vmatmul.mubr.f32.gmra.mrb[0].mxu0 %v742
          %v1066 = vpop.f32.mrb[0].mxu0
          %v1067 = vadd.f32 %v998, %v1066
          %v1068 = vpop.f32.mrb[0].mxu0
          %1069 = vmatprep.mubr.f32.mxu0 0.0
          %1070 = vmatmul.mubr.f32.gmra.mrb[0].mxu0 %v743
          %v1071 = vpop.f32.mrb[0].mxu0
          %v1072 = vadd.f32 %v998, %v1071
          %v1073 = vpop.f32.mrb[0].mxu0
          %1074 = vmatprep.mubr.f32.mxu0 0.0
          %1075 = vmatmul.mubr.f32.gmra.mrb[0].mxu0 %v744
          %v1076 = vpop.f32.mrb[0].mxu0
          %v1077 = vadd.f32 %v998, %v1076
          %v1078 = vpop.f32.mrb[0].mxu0
          %1079 = vmatprep.mubr.f32.mxu0 0.0
          %1080 = vmatmul.mubr.f32.gmra.mrb[0].mxu0 %v745
          %v1081 = vpop.f32.mrb[0].mxu0
          %v1082 = vadd.f32 %v998, %v1081
          %v1083 = vpop.f32.mrb[0].mxu0
          %1084 = vdwg.mxu0
          %s1085 = scalar_lea.vmem [#allocation16], 128
          %v1086 = vld [vmem:[%s1085] sm:$0xff]
          %v1087 = vld [vmem:[%s1085 + $0x8] sm:$0xff]
          %v1088 = vld [vmem:[%s1085 + $0x10] sm:$0xff]
          %v1089 = vld [vmem:[%s1085 + $0x18] sm:$0xff]
          %v1090 = vld [vmem:[%s1085 + $0x20] sm:$0xff]
          %v1091 = vld [vmem:[%s1085 + $0x28] sm:$0xff]
          %v1092 = vld [vmem:[%s1085 + $0x30] sm:$0xff]
          %v1093 = vld [vmem:[%s1085 + $0x38] sm:$0xff]
          %v1094 = vld [vmem:[%s1085 + $0x40] sm:$0xff]
          %v1095 = vld [vmem:[%s1085 + $0x48] sm:$0xff]
          %v1096 = vld [vmem:[%s1085 + $0x50] sm:$0xff]
          %v1097 = vld [vmem:[%s1085 + $0x58] sm:$0xff]
          %v1098 = vld [vmem:[%s1085 + $0x60] sm:$0xff]
          %v1099 = vld [vmem:[%s1085 + $0x68] sm:$0xff]
          %v1100 = vld [vmem:[%s1085 + $0x70] sm:$0xff]
          %v1101 = vld [vmem:[%s1085 + $0x78] sm:$0xff]
          %s1102 = scalar_lea.vmem [#allocation18], 1
          %v1103 = vld [vmem:[%s1102] sm:$0x1]
          %v1105 = vlaneseq
          %v1106 = vshrl.u32 %v1105, 7
          %v1107 = vsub.s32 0, %v1106
          %v1108 = vrot.slane %v1103, %v1107
          %1110 = vmatprep.subr.mxu0 0.0
          %1111 = vmatpush1.msra.mxu0 %v1086
          %1112 = vmatprep.subr.mxu0 0.0
          %1113 = vmatpush1.msra.mxu0 %v1087
          %1114 = vmatprep.subr.mxu0 0.0
          %1115 = vmatpush1.msra.mxu0 %v1088
          %1116 = vmatprep.subr.mxu0 0.0
          %1117 = vmatpush1.msra.mxu0 %v1089
          %1118 = vmatprep.subr.mxu0 0.0
          %1119 = vmatpush1.msra.mxu0 %v1090
          %1120 = vmatprep.subr.mxu0 0.0
          %1121 = vmatpush1.msra.mxu0 %v1091
          %1122 = vmatprep.subr.mxu0 0.0
          %1123 = vmatpush1.msra.mxu0 %v1092
          %1124 = vmatprep.subr.mxu0 0.0
          %1125 = vmatpush1.msra.mxu0 %v1093
          %1126 = vmatprep.subr.mxu0 0.0
          %1127 = vmatpush1.msra.mxu0 %v1094
          %1128 = vmatprep.subr.mxu0 0.0
          %1129 = vmatpush1.msra.mxu0 %v1095
          %1130 = vmatprep.subr.mxu0 0.0
          %1131 = vmatpush1.msra.mxu0 %v1096
          %1132 = vmatprep.subr.mxu0 0.0
          %1133 = vmatpush1.msra.mxu0 %v1097
          %1134 = vmatprep.subr.mxu0 0.0
          %1135 = vmatpush1.msra.mxu0 %v1098
          %1136 = vmatprep.subr.mxu0 0.0
          %1137 = vmatpush1.msra.mxu0 %v1099
          %1138 = vmatprep.subr.mxu0 0.0
          %1139 = vmatpush1.msra.mxu0 %v1100
          %1140 = vmatprep.subr.mxu0 0.0
          %1141 = vmatpush1.msra.mxu0 %v1101
          %1142 = vmatprep.subr.mxu0 0.0
          %1143 = vmatpush1.msra.mxu0 0.0
          %1144 = vmatprep.subr.mxu0 0.0
          %1145 = vmatpush1.msra.mxu0 0.0
          %1146 = vmatprep.subr.mxu0 0.0
          %1147 = vmatpush1.msra.mxu0 0.0
          %1148 = vmatprep.subr.mxu0 0.0
          %1149 = vmatpush1.msra.mxu0 0.0
          %1150 = vmatprep.subr.mxu0 0.0
          %1151 = vmatpush1.msra.mxu0 0.0
          %1152 = vmatprep.subr.mxu0 0.0
          %1153 = vmatpush1.msra.mxu0 0.0
          %1154 = vmatprep.subr.mxu0 0.0
          %1155 = vmatpush1.msra.mxu0 0.0
          %1156 = vmatprep.subr.mxu0 0.0
          %1157 = vmatpush1.msra.mxu0 0.0
          %1158 = vmatprep.subr.mxu0 0.0
          %1159 = vmatpush1.msra.mxu0 0.0
          %1160 = vmatprep.subr.mxu0 0.0
          %1161 = vmatpush1.msra.mxu0 0.0
          %1162 = vmatprep.subr.mxu0 0.0
          %1163 = vmatpush1.msra.mxu0 0.0
          %1164 = vmatprep.subr.mxu0 0.0
          %1165 = vmatpush1.msra.mxu0 0.0
          %1166 = vmatprep.subr.mxu0 0.0
          %1167 = vmatpush1.msra.mxu0 0.0
          %1168 = vmatprep.subr.mxu0 0.0
          %1169 = vmatpush1.msra.mxu0 0.0
          %1170 = vmatprep.subr.mxu0 0.0
          %1171 = vmatpush1.msra.mxu0 0.0
          %1172 = vmatprep.subr.mxu0 0.0
          %1173 = vmatpush1.msra.mxu0 0.0
          %1174 = vmatprep.mubr.f32.mxu0 0.0
          %1175 = vmatmul.mubr.f32.gmra.mrb[0].mxu0 %v746
          %v1176 = vpop.f32.mrb[0].mxu0
          %v1177 = vadd.f32 %v1108, %v1176
          %v1178 = vpop.f32.mrb[0].mxu0
          %1179 = vmatprep.mubr.f32.mxu0 0.0
          %1180 = vmatmul.mubr.f32.gmra.mrb[0].mxu0 %v747
          %v1181 = vpop.f32.mrb[0].mxu0
          %v1182 = vadd.f32 %v1108, %v1181
          %v1183 = vpop.f32.mrb[0].mxu0
          %1184 = vmatprep.mubr.f32.mxu0 0.0
          %1185 = vmatmul.mubr.f32.gmra.mrb[0].mxu0 %v748
          %v1186 = vpop.f32.mrb[0].mxu0
          %v1187 = vadd.f32 %v1108, %v1186
          %v1188 = vpop.f32.mrb[0].mxu0
          %1189 = vmatprep.mubr.f32.mxu0 0.0
          %1190 = vmatmul.mubr.f32.gmra.mrb[0].mxu0 %v749
          %v1191 = vpop.f32.mrb[0].mxu0
          %v1192 = vadd.f32 %v1108, %v1191
          %v1193 = vpop.f32.mrb[0].mxu0
          %1194 = vdwg.mxu0
          %s1195 = scalar_lea.vmem [#allocation2], 32
          %1196 = vst.msk [vmem:[%s1195] sm:$0xff] %vm966, %v1067
          %1197 = vst.msk [vmem:[%s1195 + $0x8] sm:$0xff] %vm966, %v1072
          %1198 = vst.msk [vmem:[%s1195 + $0x10] sm:$0xff] %vm966, %v1077
          %1199 = vst.msk [vmem:[%s1195 + $0x18] sm:$0xff] %vm966, %v1082
          %s1200 = scalar_lea.vmem [#allocation3], 32
          %1201 = vst.msk [vmem:[%s1200] sm:$0xff] %vm966, %v1177
          %1202 = vst.msk [vmem:[%s1200 + $0x8] sm:$0xff] %vm966, %v1182
          %1203 = vst.msk [vmem:[%s1200 + $0x10] sm:$0xff] %vm966, %v1187
          %1204 = vst.msk [vmem:[%s1200 + $0x18] sm:$0xff] %vm966, %v1192
          %s1205 = scalar_lea.vmem [#allocation13], 256
          %v1206 = vld [vmem:[%s1205] sm:$0xff]
          %v1207 = vld [vmem:[%s1205 + $0x8] sm:$0xff]
          %v1208 = vld [vmem:[%s1205 + $0x10] sm:$0xff]
          %v1209 = vld [vmem:[%s1205 + $0x18] sm:$0xff]
          %v1210 = vld [vmem:[%s1205 + $0x20] sm:$0xff]
          %v1211 = vld [vmem:[%s1205 + $0x28] sm:$0xff]
          %v1212 = vld [vmem:[%s1205 + $0x30] sm:$0xff]
          %v1213 = vld [vmem:[%s1205 + $0x38] sm:$0xff]
          %v1214 = vld [vmem:[%s1205 + $0x40] sm:$0xff]
          %v1215 = vld [vmem:[%s1205 + $0x48] sm:$0xff]
          %v1216 = vld [vmem:[%s1205 + $0x50] sm:$0xff]
          %v1217 = vld [vmem:[%s1205 + $0x58] sm:$0xff]
          %v1218 = vld [vmem:[%s1205 + $0x60] sm:$0xff]
          %v1219 = vld [vmem:[%s1205 + $0x68] sm:$0xff]
          %v1220 = vld [vmem:[%s1205 + $0x70] sm:$0xff]
          %v1221 = vld [vmem:[%s1205 + $0x78] sm:$0xff]
          %s1222 = scalar_lea.vmem [#allocation15], 2
          %v1223 = vld [vmem:[%s1222] sm:$0x1]
          %v1225 = vlaneseq
          %v1226 = vshrl.u32 %v1225, 7
          %v1227 = vsub.s32 0, %v1226
          %v1228 = vrot.slane %v1223, %v1227
          %1230 = vmatprep.subr.mxu0 0.0
          %1231 = vmatpush1.msra.mxu0 %v1206
          %1232 = vmatprep.subr.mxu0 0.0
          %1233 = vmatpush1.msra.mxu0 %v1207
          %1234 = vmatprep.subr.mxu0 0.0
          %1235 = vmatpush1.msra.mxu0 %v1208
          %1236 = vmatprep.subr.mxu0 0.0
          %1237 = vmatpush1.msra.mxu0 %v1209
          %1238 = vmatprep.subr.mxu0 0.0
          %1239 = vmatpush1.msra.mxu0 %v1210
          %1240 = vmatprep.subr.mxu0 0.0
          %1241 = vmatpush1.msra.mxu0 %v1211
          %1242 = vmatprep.subr.mxu0 0.0
          %1243 = vmatpush1.msra.mxu0 %v1212
          %1244 = vmatprep.subr.mxu0 0.0
          %1245 = vmatpush1.msra.mxu0 %v1213
          %1246 = vmatprep.subr.mxu0 0.0
          %1247 = vmatpush1.msra.mxu0 %v1214
          %1248 = vmatprep.subr.mxu0 0.0
          %1249 = vmatpush1.msra.mxu0 %v1215
          %1250 = vmatprep.subr.mxu0 0.0
          %1251 = vmatpush1.msra.mxu0 %v1216
          %1252 = vmatprep.subr.mxu0 0.0
          %1253 = vmatpush1.msra.mxu0 %v1217
          %1254 = vmatprep.subr.mxu0 0.0
          %1255 = vmatpush1.msra.mxu0 %v1218
          %1256 = vmatprep.subr.mxu0 0.0
          %1257 = vmatpush1.msra.mxu0 %v1219
          %1258 = vmatprep.subr.mxu0 0.0
          %1259 = vmatpush1.msra.mxu0 %v1220
          %1260 = vmatprep.subr.mxu0 0.0
          %1261 = vmatpush1.msra.mxu0 %v1221
          %1262 = vmatprep.subr.mxu0 0.0
          %1263 = vmatpush1.msra.mxu0 0.0
          %1264 = vmatprep.subr.mxu0 0.0
          %1265 = vmatpush1.msra.mxu0 0.0
          %1266 = vmatprep.subr.mxu0 0.0
          %1267 = vmatpush1.msra.mxu0 0.0
          %1268 = vmatprep.subr.mxu0 0.0
          %1269 = vmatpush1.msra.mxu0 0.0
          %1270 = vmatprep.subr.mxu0 0.0
          %1271 = vmatpush1.msra.mxu0 0.0
          %1272 = vmatprep.subr.mxu0 0.0
          %1273 = vmatpush1.msra.mxu0 0.0
          %1274 = vmatprep.subr.mxu0 0.0
          %1275 = vmatpush1.msra.mxu0 0.0
          %1276 = vmatprep.subr.mxu0 0.0
          %1277 = vmatpush1.msra.mxu0 0.0
          %1278 = vmatprep.subr.mxu0 0.0
          %1279 = vmatpush1.msra.mxu0 0.0
          %1280 = vmatprep.subr.mxu0 0.0
          %1281 = vmatpush1.msra.mxu0 0.0
          %1282 = vmatprep.subr.mxu0 0.0
          %1283 = vmatpush1.msra.mxu0 0.0
          %1284 = vmatprep.subr.mxu0 0.0
          %1285 = vmatpush1.msra.mxu0 0.0
          %1286 = vmatprep.subr.mxu0 0.0
          %1287 = vmatpush1.msra.mxu0 0.0
          %1288 = vmatprep.subr.mxu0 0.0
          %1289 = vmatpush1.msra.mxu0 0.0
          %1290 = vmatprep.subr.mxu0 0.0
          %1291 = vmatpush1.msra.mxu0 0.0
          %1292 = vmatprep.subr.mxu0 0.0
          %1293 = vmatpush1.msra.mxu0 0.0
          %1294 = vmatprep.mubr.f32.mxu0 0.0
          %1295 = vmatmul.mubr.f32.gmra.mrb[0].mxu0 %v742
          %v1296 = vpop.f32.mrb[0].mxu0
          %v1297 = vadd.f32 %v1228, %v1296
          %v1298 = vpop.f32.mrb[0].mxu0
          %1299 = vmatprep.mubr.f32.mxu0 0.0
          %1300 = vmatmul.mubr.f32.gmra.mrb[0].mxu0 %v743
          %v1301 = vpop.f32.mrb[0].mxu0
          %v1302 = vadd.f32 %v1228, %v1301
          %v1303 = vpop.f32.mrb[0].mxu0
          %1304 = vmatprep.mubr.f32.mxu0 0.0
          %1305 = vmatmul.mubr.f32.gmra.mrb[0].mxu0 %v744
          %v1306 = vpop.f32.mrb[0].mxu0
          %v1307 = vadd.f32 %v1228, %v1306
          %v1308 = vpop.f32.mrb[0].mxu0
          %1309 = vmatprep.mubr.f32.mxu0 0.0
          %1310 = vmatmul.mubr.f32.gmra.mrb[0].mxu0 %v745
          %v1311 = vpop.f32.mrb[0].mxu0
          %v1312 = vadd.f32 %v1228, %v1311
          %v1313 = vpop.f32.mrb[0].mxu0
          %1314 = vdwg.mxu0
          %s1315 = scalar_lea.vmem [#allocation16], 256
          %v1316 = vld [vmem:[%s1315] sm:$0xff]
          %v1317 = vld [vmem:[%s1315 + $0x8] sm:$0xff]
          %v1318 = vld [vmem:[%s1315 + $0x10] sm:$0xff]
          %v1319 = vld [vmem:[%s1315 + $0x18] sm:$0xff]
          %v1320 = vld [vmem:[%s1315 + $0x20] sm:$0xff]
          %v1321 = vld [vmem:[%s1315 + $0x28] sm:$0xff]
          %v1322 = vld [vmem:[%s1315 + $0x30] sm:$0xff]
          %v1323 = vld [vmem:[%s1315 + $0x38] sm:$0xff]
          %v1324 = vld [vmem:[%s1315 + $0x40] sm:$0xff]
          %v1325 = vld [vmem:[%s1315 + $0x48] sm:$0xff]
          %v1326 = vld [vmem:[%s1315 + $0x50] sm:$0xff]
          %v1327 = vld [vmem:[%s1315 + $0x58] sm:$0xff]
          %v1328 = vld [vmem:[%s1315 + $0x60] sm:$0xff]
          %v1329 = vld [vmem:[%s1315 + $0x68] sm:$0xff]
          %v1330 = vld [vmem:[%s1315 + $0x70] sm:$0xff]
          %v1331 = vld [vmem:[%s1315 + $0x78] sm:$0xff]
          %s1332 = scalar_lea.vmem [#allocation18], 2
          %v1333 = vld [vmem:[%s1332] sm:$0x1]
          %v1335 = vlaneseq
          %v1336 = vshrl.u32 %v1335, 7
          %v1337 = vsub.s32 0, %v1336
          %v1338 = vrot.slane %v1333, %v1337
          %1340 = vmatprep.subr.mxu0 0.0
          %1341 = vmatpush1.msra.mxu0 %v1316
          %1342 = vmatprep.subr.mxu0 0.0
          %1343 = vmatpush1.msra.mxu0 %v1317
          %1344 = vmatprep.subr.mxu0 0.0
          %1345 = vmatpush1.msra.mxu0 %v1318
          %1346 = vmatprep.subr.mxu0 0.0
          %1347 = vmatpush1.msra.mxu0 %v1319
          %1348 = vmatprep.subr.mxu0 0.0
          %1349 = vmatpush1.msra.mxu0 %v1320
          %1350 = vmatprep.subr.mxu0 0.0
          %1351 = vmatpush1.msra.mxu0 %v1321
          %1352 = vmatprep.subr.mxu0 0.0
          %1353 = vmatpush1.msra.mxu0 %v1322
          %1354 = vmatprep.subr.mxu0 0.0
          %1355 = vmatpush1.msra.mxu0 %v1323
          %1356 = vmatprep.subr.mxu0 0.0
          %1357 = vmatpush1.msra.mxu0 %v1324
          %1358 = vmatprep.subr.mxu0 0.0
          %1359 = vmatpush1.msra.mxu0 %v1325
          %1360 = vmatprep.subr.mxu0 0.0
          %1361 = vmatpush1.msra.mxu0 %v1326
          %1362 = vmatprep.subr.mxu0 0.0
          %1363 = vmatpush1.msra.mxu0 %v1327
          %1364 = vmatprep.subr.mxu0 0.0
          %1365 = vmatpush1.msra.mxu0 %v1328
          %1366 = vmatprep.subr.mxu0 0.0
          %1367 = vmatpush1.msra.mxu0 %v1329
          %1368 = vmatprep.subr.mxu0 0.0
          %1369 = vmatpush1.msra.mxu0 %v1330
          %1370 = vmatprep.subr.mxu0 0.0
          %1371 = vmatpush1.msra.mxu0 %v1331
          %1372 = vmatprep.subr.mxu0 0.0
          %1373 = vmatpush1.msra.mxu0 0.0
          %1374 = vmatprep.subr.mxu0 0.0
          %1375 = vmatpush1.msra.mxu0 0.0
          %1376 = vmatprep.subr.mxu0 0.0
          %1377 = vmatpush1.msra.mxu0 0.0
          %1378 = vmatprep.subr.mxu0 0.0
          %1379 = vmatpush1.msra.mxu0 0.0
          %1380 = vmatprep.subr.mxu0 0.0
          %1381 = vmatpush1.msra.mxu0 0.0
          %1382 = vmatprep.subr.mxu0 0.0
          %1383 = vmatpush1.msra.mxu0 0.0
          %1384 = vmatprep.subr.mxu0 0.0
          %1385 = vmatpush1.msra.mxu0 0.0
          %1386 = vmatprep.subr.mxu0 0.0
          %1387 = vmatpush1.msra.mxu0 0.0
          %1388 = vmatprep.subr.mxu0 0.0
          %1389 = vmatpush1.msra.mxu0 0.0
          %1390 = vmatprep.subr.mxu0 0.0
          %1391 = vmatpush1.msra.mxu0 0.0
          %1392 = vmatprep.subr.mxu0 0.0
          %1393 = vmatpush1.msra.mxu0 0.0
          %1394 = vmatprep.subr.mxu0 0.0
          %1395 = vmatpush1.msra.mxu0 0.0
          %1396 = vmatprep.subr.mxu0 0.0
          %1397 = vmatpush1.msra.mxu0 0.0
          %1398 = vmatprep.subr.mxu0 0.0
          %1399 = vmatpush1.msra.mxu0 0.0
          %1400 = vmatprep.subr.mxu0 0.0
          %1401 = vmatpush1.msra.mxu0 0.0
          %1402 = vmatprep.subr.mxu0 0.0
          %1403 = vmatpush1.msra.mxu0 0.0
          %1404 = vmatprep.mubr.f32.mxu0 0.0
          %1405 = vmatmul.mubr.f32.gmra.mrb[0].mxu0 %v746
          %v1406 = vpop.f32.mrb[0].mxu0
          %v1407 = vadd.f32 %v1338, %v1406
          %v1408 = vpop.f32.mrb[0].mxu0
          %1409 = vmatprep.mubr.f32.mxu0 0.0
          %1410 = vmatmul.mubr.f32.gmra.mrb[0].mxu0 %v747
          %v1411 = vpop.f32.mrb[0].mxu0
          %v1412 = vadd.f32 %v1338, %v1411
          %v1413 = vpop.f32.mrb[0].mxu0
          %1414 = vmatprep.mubr.f32.mxu0 0.0
          %1415 = vmatmul.mubr.f32.gmra.mrb[0].mxu0 %v748
          %v1416 = vpop.f32.mrb[0].mxu0
          %v1417 = vadd.f32 %v1338, %v1416
          %v1418 = vpop.f32.mrb[0].mxu0
          %1419 = vmatprep.mubr.f32.mxu0 0.0
          %1420 = vmatmul.mubr.f32.gmra.mrb[0].mxu0 %v749
          %v1421 = vpop.f32.mrb[0].mxu0
          %v1422 = vadd.f32 %v1338, %v1421
          %v1423 = vpop.f32.mrb[0].mxu0
          %1424 = vdwg.mxu0
          %s1425 = scalar_lea.vmem [#allocation2], 64
          %1426 = vst.msk [vmem:[%s1425] sm:$0xff] %vm966, %v1297
          %1427 = vst.msk [vmem:[%s1425 + $0x8] sm:$0xff] %vm966, %v1302
          %1428 = vst.msk [vmem:[%s1425 + $0x10] sm:$0xff] %vm966, %v1307
          %1429 = vst.msk [vmem:[%s1425 + $0x18] sm:$0xff] %vm966, %v1312
          %s1430 = scalar_lea.vmem [#allocation3], 64
          %1431 = vst.msk [vmem:[%s1430] sm:$0xff] %vm966, %v1407
          %1432 = vst.msk [vmem:[%s1430 + $0x8] sm:$0xff] %vm966, %v1412
          %1433 = vst.msk [vmem:[%s1430 + $0x10] sm:$0xff] %vm966, %v1417
          %1434 = vst.msk [vmem:[%s1430 + $0x18] sm:$0xff] %vm966, %v1422
          %s1435 = scalar_lea.vmem [#allocation13], 384
          %v1436 = vld [vmem:[%s1435] sm:$0xff]
          %v1437 = vld [vmem:[%s1435 + $0x8] sm:$0xff]
          %v1438 = vld [vmem:[%s1435 + $0x10] sm:$0xff]
          %v1439 = vld [vmem:[%s1435 + $0x18] sm:$0xff]
          %v1440 = vld [vmem:[%s1435 + $0x20] sm:$0xff]
          %v1441 = vld [vmem:[%s1435 + $0x28] sm:$0xff]
          %v1442 = vld [vmem:[%s1435 + $0x30] sm:$0xff]
          %v1443 = vld [vmem:[%s1435 + $0x38] sm:$0xff]
          %v1444 = vld [vmem:[%s1435 + $0x40] sm:$0xff]
          %v1445 = vld [vmem:[%s1435 + $0x48] sm:$0xff]
          %v1446 = vld [vmem:[%s1435 + $0x50] sm:$0xff]
          %v1447 = vld [vmem:[%s1435 + $0x58] sm:$0xff]
          %v1448 = vld [vmem:[%s1435 + $0x60] sm:$0xff]
          %v1449 = vld [vmem:[%s1435 + $0x68] sm:$0xff]
          %v1450 = vld [vmem:[%s1435 + $0x70] sm:$0xff]
          %v1451 = vld [vmem:[%s1435 + $0x78] sm:$0xff]
          %s1452 = scalar_lea.vmem [#allocation15], 3
          %v1453 = vld [vmem:[%s1452] sm:$0x1]
          %v1455 = vlaneseq
          %v1456 = vshrl.u32 %v1455, 7
          %v1457 = vsub.s32 0, %v1456
          %v1458 = vrot.slane %v1453, %v1457
          %1460 = vmatprep.subr.mxu0 0.0
          %1461 = vmatpush1.msra.mxu0 %v1436
          %1462 = vmatprep.subr.mxu0 0.0
          %1463 = vmatpush1.msra.mxu0 %v1437
          %1464 = vmatprep.subr.mxu0 0.0
          %1465 = vmatpush1.msra.mxu0 %v1438
          %1466 = vmatprep.subr.mxu0 0.0
          %1467 = vmatpush1.msra.mxu0 %v1439
          %1468 = vmatprep.subr.mxu0 0.0
          %1469 = vmatpush1.msra.mxu0 %v1440
          %1470 = vmatprep.subr.mxu0 0.0
          %1471 = vmatpush1.msra.mxu0 %v1441
          %1472 = vmatprep.subr.mxu0 0.0
          %1473 = vmatpush1.msra.mxu0 %v1442
          %1474 = vmatprep.subr.mxu0 0.0
          %1475 = vmatpush1.msra.mxu0 %v1443
          %1476 = vmatprep.subr.mxu0 0.0
          %1477 = vmatpush1.msra.mxu0 %v1444
          %1478 = vmatprep.subr.mxu0 0.0
          %1479 = vmatpush1.msra.mxu0 %v1445
          %1480 = vmatprep.subr.mxu0 0.0
          %1481 = vmatpush1.msra.mxu0 %v1446
          %1482 = vmatprep.subr.mxu0 0.0
          %1483 = vmatpush1.msra.mxu0 %v1447
          %1484 = vmatprep.subr.mxu0 0.0
          %1485 = vmatpush1.msra.mxu0 %v1448
          %1486 = vmatprep.subr.mxu0 0.0
          %1487 = vmatpush1.msra.mxu0 %v1449
          %1488 = vmatprep.subr.mxu0 0.0
          %1489 = vmatpush1.msra.mxu0 %v1450
          %1490 = vmatprep.subr.mxu0 0.0
          %1491 = vmatpush1.msra.mxu0 %v1451
          %1492 = vmatprep.subr.mxu0 0.0
          %1493 = vmatpush1.msra.mxu0 0.0
          %1494 = vmatprep.subr.mxu0 0.0
          %1495 = vmatpush1.msra.mxu0 0.0
          %1496 = vmatprep.subr.mxu0 0.0
          %1497 = vmatpush1.msra.mxu0 0.0
          %1498 = vmatprep.subr.mxu0 0.0
          %1499 = vmatpush1.msra.mxu0 0.0
          %1500 = vmatprep.subr.mxu0 0.0
          %1501 = vmatpush1.msra.mxu0 0.0
          %1502 = vmatprep.subr.mxu0 0.0
          %1503 = vmatpush1.msra.mxu0 0.0
          %1504 = vmatprep.subr.mxu0 0.0
          %1505 = vmatpush1.msra.mxu0 0.0
          %1506 = vmatprep.subr.mxu0 0.0
          %1507 = vmatpush1.msra.mxu0 0.0
          %1508 = vmatprep.subr.mxu0 0.0
          %1509 = vmatpush1.msra.mxu0 0.0
          %1510 = vmatprep.subr.mxu0 0.0
          %1511 = vmatpush1.msra.mxu0 0.0
          %1512 = vmatprep.subr.mxu0 0.0
          %1513 = vmatpush1.msra.mxu0 0.0
          %1514 = vmatprep.subr.mxu0 0.0
          %1515 = vmatpush1.msra.mxu0 0.0
          %1516 = vmatprep.subr.mxu0 0.0
          %1517 = vmatpush1.msra.mxu0 0.0
          %1518 = vmatprep.subr.mxu0 0.0
          %1519 = vmatpush1.msra.mxu0 0.0
          %1520 = vmatprep.subr.mxu0 0.0
          %1521 = vmatpush1.msra.mxu0 0.0
          %1522 = vmatprep.subr.mxu0 0.0
          %1523 = vmatpush1.msra.mxu0 0.0
          %1524 = vmatprep.mubr.f32.mxu0 0.0
          %1525 = vmatmul.mubr.f32.gmra.mrb[0].mxu0 %v742
          %v1526 = vpop.f32.mrb[0].mxu0
          %v1527 = vadd.f32 %v1458, %v1526
          %v1528 = vpop.f32.mrb[0].mxu0
          %1529 = vmatprep.mubr.f32.mxu0 0.0
          %1530 = vmatmul.mubr.f32.gmra.mrb[0].mxu0 %v743
          %v1531 = vpop.f32.mrb[0].mxu0
          %v1532 = vadd.f32 %v1458, %v1531
          %v1533 = vpop.f32.mrb[0].mxu0
          %1534 = vmatprep.mubr.f32.mxu0 0.0
          %1535 = vmatmul.mubr.f32.gmra.mrb[0].mxu0 %v744
          %v1536 = vpop.f32.mrb[0].mxu0
          %v1537 = vadd.f32 %v1458, %v1536
          %v1538 = vpop.f32.mrb[0].mxu0
          %1539 = vmatprep.mubr.f32.mxu0 0.0
          %1540 = vmatmul.mubr.f32.gmra.mrb[0].mxu0 %v745
          %v1541 = vpop.f32.mrb[0].mxu0
          %v1542 = vadd.f32 %v1458, %v1541
          %v1543 = vpop.f32.mrb[0].mxu0
          %1544 = vdwg.mxu0
          %s1545 = scalar_lea.vmem [#allocation16], 384
          %v1546 = vld [vmem:[%s1545] sm:$0xff]
          %v1547 = vld [vmem:[%s1545 + $0x8] sm:$0xff]
          %v1548 = vld [vmem:[%s1545 + $0x10] sm:$0xff]
          %v1549 = vld [vmem:[%s1545 + $0x18] sm:$0xff]
          %v1550 = vld [vmem:[%s1545 + $0x20] sm:$0xff]
          %v1551 = vld [vmem:[%s1545 + $0x28] sm:$0xff]
          %v1552 = vld [vmem:[%s1545 + $0x30] sm:$0xff]
          %v1553 = vld [vmem:[%s1545 + $0x38] sm:$0xff]
          %v1554 = vld [vmem:[%s1545 + $0x40] sm:$0xff]
          %v1555 = vld [vmem:[%s1545 + $0x48] sm:$0xff]
          %v1556 = vld [vmem:[%s1545 + $0x50] sm:$0xff]
          %v1557 = vld [vmem:[%s1545 + $0x58] sm:$0xff]
          %v1558 = vld [vmem:[%s1545 + $0x60] sm:$0xff]
          %v1559 = vld [vmem:[%s1545 + $0x68] sm:$0xff]
          %v1560 = vld [vmem:[%s1545 + $0x70] sm:$0xff]
          %v1561 = vld [vmem:[%s1545 + $0x78] sm:$0xff]
          %s1562 = scalar_lea.vmem [#allocation18], 3
          %v1563 = vld [vmem:[%s1562] sm:$0x1]
          %v1565 = vlaneseq
          %v1566 = vshrl.u32 %v1565, 7
          %v1567 = vsub.s32 0, %v1566
          %v1568 = vrot.slane %v1563, %v1567
          %1570 = vmatprep.subr.mxu0 0.0
          %1571 = vmatpush1.msra.mxu0 %v1546
          %1572 = vmatprep.subr.mxu0 0.0
          %1573 = vmatpush1.msra.mxu0 %v1547
          %1574 = vmatprep.subr.mxu0 0.0
          %1575 = vmatpush1.msra.mxu0 %v1548
          %1576 = vmatprep.subr.mxu0 0.0
          %1577 = vmatpush1.msra.mxu0 %v1549
          %1578 = vmatprep.subr.mxu0 0.0
          %1579 = vmatpush1.msra.mxu0 %v1550
          %1580 = vmatprep.subr.mxu0 0.0
          %1581 = vmatpush1.msra.mxu0 %v1551
          %1582 = vmatprep.subr.mxu0 0.0
          %1583 = vmatpush1.msra.mxu0 %v1552
          %1584 = vmatprep.subr.mxu0 0.0
          %1585 = vmatpush1.msra.mxu0 %v1553
          %1586 = vmatprep.subr.mxu0 0.0
          %1587 = vmatpush1.msra.mxu0 %v1554
          %1588 = vmatprep.subr.mxu0 0.0
          %1589 = vmatpush1.msra.mxu0 %v1555
          %1590 = vmatprep.subr.mxu0 0.0
          %1591 = vmatpush1.msra.mxu0 %v1556
          %1592 = vmatprep.subr.mxu0 0.0
          %1593 = vmatpush1.msra.mxu0 %v1557
          %1594 = vmatprep.subr.mxu0 0.0
          %1595 = vmatpush1.msra.mxu0 %v1558
          %1596 = vmatprep.subr.mxu0 0.0
          %1597 = vmatpush1.msra.mxu0 %v1559
          %1598 = vmatprep.subr.mxu0 0.0
          %1599 = vmatpush1.msra.mxu0 %v1560
          %1600 = vmatprep.subr.mxu0 0.0
          %1601 = vmatpush1.msra.mxu0 %v1561
          %1602 = vmatprep.subr.mxu0 0.0
          %1603 = vmatpush1.msra.mxu0 0.0
          %1604 = vmatprep.subr.mxu0 0.0
          %1605 = vmatpush1.msra.mxu0 0.0
          %1606 = vmatprep.subr.mxu0 0.0
          %1607 = vmatpush1.msra.mxu0 0.0
          %1608 = vmatprep.subr.mxu0 0.0
          %1609 = vmatpush1.msra.mxu0 0.0
          %1610 = vmatprep.subr.mxu0 0.0
          %1611 = vmatpush1.msra.mxu0 0.0
          %1612 = vmatprep.subr.mxu0 0.0
          %1613 = vmatpush1.msra.mxu0 0.0
          %1614 = vmatprep.subr.mxu0 0.0
          %1615 = vmatpush1.msra.mxu0 0.0
          %1616 = vmatprep.subr.mxu0 0.0
          %1617 = vmatpush1.msra.mxu0 0.0
          %1618 = vmatprep.subr.mxu0 0.0
          %1619 = vmatpush1.msra.mxu0 0.0
          %1620 = vmatprep.subr.mxu0 0.0
          %1621 = vmatpush1.msra.mxu0 0.0
          %1622 = vmatprep.subr.mxu0 0.0
          %1623 = vmatpush1.msra.mxu0 0.0
          %1624 = vmatprep.subr.mxu0 0.0
          %1625 = vmatpush1.msra.mxu0 0.0
          %1626 = vmatprep.subr.mxu0 0.0
          %1627 = vmatpush1.msra.mxu0 0.0
          %1628 = vmatprep.subr.mxu0 0.0
          %1629 = vmatpush1.msra.mxu0 0.0
          %1630 = vmatprep.subr.mxu0 0.0
          %1631 = vmatpush1.msra.mxu0 0.0
          %1632 = vmatprep.subr.mxu0 0.0
          %1633 = vmatpush1.msra.mxu0 0.0
          %1634 = vmatprep.mubr.f32.mxu0 0.0
          %1635 = vmatmul.mubr.f32.gmra.mrb[0].mxu0 %v746
          %v1636 = vpop.f32.mrb[0].mxu0
          %v1637 = vadd.f32 %v1568, %v1636
          %v1638 = vpop.f32.mrb[0].mxu0
          %1639 = vmatprep.mubr.f32.mxu0 0.0
          %1640 = vmatmul.mubr.f32.gmra.mrb[0].mxu0 %v747
          %v1641 = vpop.f32.mrb[0].mxu0
          %v1642 = vadd.f32 %v1568, %v1641
          %v1643 = vpop.f32.mrb[0].mxu0
          %1644 = vmatprep.mubr.f32.mxu0 0.0
          %1645 = vmatmul.mubr.f32.gmra.mrb[0].mxu0 %v748
          %v1646 = vpop.f32.mrb[0].mxu0
          %v1647 = vadd.f32 %v1568, %v1646
          %v1648 = vpop.f32.mrb[0].mxu0
          %1649 = vmatprep.mubr.f32.mxu0 0.0
          %1650 = vmatmul.mubr.f32.gmra.mrb[0].mxu0 %v749
          %v1651 = vpop.f32.mrb[0].mxu0
          %v1652 = vadd.f32 %v1568, %v1651
          %v1653 = vpop.f32.mrb[0].mxu0
          %1654 = vdwg.mxu0
          %s1655 = scalar_lea.vmem [#allocation2], 96
          %1656 = vst.msk [vmem:[%s1655] sm:$0xff] %vm966, %v1527
          %1657 = vst.msk [vmem:[%s1655 + $0x8] sm:$0xff] %vm966, %v1532
          %1658 = vst.msk [vmem:[%s1655 + $0x10] sm:$0xff] %vm966, %v1537
          %1659 = vst.msk [vmem:[%s1655 + $0x18] sm:$0xff] %vm966, %v1542
          %s1660 = scalar_lea.vmem [#allocation3], 96
          %1661 = vst.msk [vmem:[%s1660] sm:$0xff] %vm966, %v1637
          %1662 = vst.msk [vmem:[%s1660 + $0x8] sm:$0xff] %vm966, %v1642
          %1663 = vst.msk [vmem:[%s1660 + $0x10] sm:$0xff] %vm966, %v1647
          %1664 = vst.msk [vmem:[%s1660 + $0x18] sm:$0xff] %vm966, %v1652
        $region128: #{tpu_custom_call.1} parent=71 // pred_fallthru
          _
        %v1665 = vld [vmem:[#allocation21] sm:$0x1]
        %v1667 = vlaneseq
        %v1668 = vshrl.u32 %v1667, 7
        %v1669 = vsub.s32 0, %v1668
        %v1670 = vrot.slane %v1665, %v1669
        %v1672 = vadd.f32 %v736, %v1670
        %v1673 = vadd.f32 %v737, %v1670
        %v1674 = vld [vmem:[#allocation10] sm:$0xff]
        %v1675 = vld [vmem:[#allocation10 + $0x8] sm:$0xff]
        %v1676 = vld [vmem:[#allocation10 + $0x10] sm:$0xff]
        %v1677 = vld [vmem:[#allocation10 + $0x18] sm:$0xff]
        %v1678 = vld [vmem:[#allocation10 + $0x20] sm:$0xff]
        %v1679 = vld [vmem:[#allocation10 + $0x28] sm:$0xff]
        %v1680 = vld [vmem:[#allocation10 + $0x30] sm:$0xff]
        %v1681 = vld [vmem:[#allocation10 + $0x38] sm:$0xff]
        %v1682 = vld [vmem:[#allocation10 + $0x40] sm:$0xff]
        %v1683 = vld [vmem:[#allocation10 + $0x48] sm:$0xff]
        %v1684 = vld [vmem:[#allocation10 + $0x50] sm:$0xff]
        %v1685 = vld [vmem:[#allocation10 + $0x58] sm:$0xff]
        %v1686 = vld [vmem:[#allocation10 + $0x60] sm:$0xff]
        %v1687 = vld [vmem:[#allocation10 + $0x68] sm:$0xff]
        %v1688 = vld [vmem:[#allocation10 + $0x70] sm:$0xff]
        %v1689 = vld [vmem:[#allocation10 + $0x78] sm:$0xff]
        %v1690 = vld [vmem:[#allocation12] sm:$0x1]
        %v1692 = vlaneseq
        %v1693 = vshrl.u32 %v1692, 7
        %v1694 = vsub.s32 0, %v1693
        %v1695 = vrot.slane %v1690, %v1694
        %1697 = vmatprep.subr.mxu0 0.0
        %1698 = vmatpush1.msra.mxu0 %v1674
        %1699 = vmatprep.subr.mxu0 0.0
        %1700 = vmatpush1.msra.mxu0 %v1675
        %1701 = vmatprep.subr.mxu0 0.0
        %1702 = vmatpush1.msra.mxu0 %v1676
        %1703 = vmatprep.subr.mxu0 0.0
        %1704 = vmatpush1.msra.mxu0 %v1677
        %1705 = vmatprep.subr.mxu0 0.0
        %1706 = vmatpush1.msra.mxu0 %v1678
        %1707 = vmatprep.subr.mxu0 0.0
        %1708 = vmatpush1.msra.mxu0 %v1679
        %1709 = vmatprep.subr.mxu0 0.0
        %1710 = vmatpush1.msra.mxu0 %v1680
        %1711 = vmatprep.subr.mxu0 0.0
        %1712 = vmatpush1.msra.mxu0 %v1681
        %1713 = vmatprep.subr.mxu0 0.0
        %1714 = vmatpush1.msra.mxu0 %v1682
        %1715 = vmatprep.subr.mxu0 0.0
        %1716 = vmatpush1.msra.mxu0 %v1683
        %1717 = vmatprep.subr.mxu0 0.0
        %1718 = vmatpush1.msra.mxu0 %v1684
        %1719 = vmatprep.subr.mxu0 0.0
        %1720 = vmatpush1.msra.mxu0 %v1685
        %1721 = vmatprep.subr.mxu0 0.0
        %1722 = vmatpush1.msra.mxu0 %v1686
        %1723 = vmatprep.subr.mxu0 0.0
        %1724 = vmatpush1.msra.mxu0 %v1687
        %1725 = vmatprep.subr.mxu0 0.0
        %1726 = vmatpush1.msra.mxu0 %v1688
        %1727 = vmatprep.subr.mxu0 0.0
        %1728 = vmatpush1.msra.mxu0 %v1689
        %1729 = vmatprep.subr.mxu0 0.0
        %1730 = vmatpush1.msra.mxu0 0.0
        %1731 = vmatprep.subr.mxu0 0.0
        %1732 = vmatpush1.msra.mxu0 0.0
        %1733 = vmatprep.subr.mxu0 0.0
        %1734 = vmatpush1.msra.mxu0 0.0
        %1735 = vmatprep.subr.mxu0 0.0
        %1736 = vmatpush1.msra.mxu0 0.0
        %1737 = vmatprep.subr.mxu0 0.0
        %1738 = vmatpush1.msra.mxu0 0.0
        %1739 = vmatprep.subr.mxu0 0.0
        %1740 = vmatpush1.msra.mxu0 0.0
        %1741 = vmatprep.subr.mxu0 0.0
        %1742 = vmatpush1.msra.mxu0 0.0
        %1743 = vmatprep.subr.mxu0 0.0
        %1744 = vmatpush1.msra.mxu0 0.0
        %1745 = vmatprep.subr.mxu0 0.0
        %1746 = vmatpush1.msra.mxu0 0.0
        %1747 = vmatprep.subr.mxu0 0.0
        %1748 = vmatpush1.msra.mxu0 0.0
        %1749 = vmatprep.subr.mxu0 0.0
        %1750 = vmatpush1.msra.mxu0 0.0
        %1751 = vmatprep.subr.mxu0 0.0
        %1752 = vmatpush1.msra.mxu0 0.0
        %1753 = vmatprep.subr.mxu0 0.0
        %1754 = vmatpush1.msra.mxu0 0.0
        %1755 = vmatprep.subr.mxu0 0.0
        %1756 = vmatpush1.msra.mxu0 0.0
        %1757 = vmatprep.subr.mxu0 0.0
        %1758 = vmatpush1.msra.mxu0 0.0
        %1759 = vmatprep.subr.mxu0 0.0
        %1760 = vmatpush1.msra.mxu0 0.0
        %1761 = vmatprep.mubr.f32.mxu0 0.0
        %1762 = vmatmul.mubr.f32.gmra.mrb[0].mxu0 %v736
        %v1763 = vpop.f32.mrb[0].mxu0
        %v1764 = vadd.f32 %v1695, %v1763
        %v1765 = vpop.f32.mrb[0].mxu0
        %1766 = vmatprep.mubr.f32.mxu0 0.0
        %1767 = vmatmul.mubr.f32.gmra.mrb[0].mxu0 %v737
        %v1768 = vpop.f32.mrb[0].mxu0
        %v1769 = vadd.f32 %v1695, %v1768
        %v1770 = vpop.f32.mrb[0].mxu0
        %1771 = vdwg.mxu0
        %v1772 = vmul.f32 %v1764, 0.17677669
        %v1773 = vmul.f32 %v1769, 0.17677669
        %v1774 = vld [vmem:[#allocation2] sm:$0xff]
        %v1775 = vld [vmem:[#allocation2 + $0x8] sm:$0xff]
        %v1776 = vld [vmem:[#allocation2 + $0x10] sm:$0xff]
        %v1777 = vld [vmem:[#allocation2 + $0x18] sm:$0xff]
        %vm1778 = vcmask 261120
        %v1780 = vsel %vm1778, %v1772, 0
        %v1783 = vsel %vm1778, %v1773, 0
        %v1786 = vsel %vm1778, %v1774, 0
        %v1789 = vsel %vm1778, %v1775, 0
        %v1792 = vsel %vm1778, %v1776, 0
        %v1795 = vsel %vm1778, %v1777, 0
        %1797 = vmatprep.subr.mxu0 0.0
        %1798 = vmatpush1.xpose.msra.mxu0 %v1786
        %1799 = vmatprep.subr.mxu0 0.0
        %1800 = vmatpush1.xpose.msra.mxu0 %v1789
        %1801 = vmatprep.subr.mxu0 0.0
        %1802 = vmatpush1.xpose.msra.mxu0 %v1792
        %1803 = vmatprep.subr.mxu0 0.0
        %1804 = vmatpush1.xpose.msra.mxu0 %v1795
        %1805 = vmatprep.subr.mxu0 0.0
        %1806 = vmatpush1.xpose.msra.mxu0 0.0
        %1807 = vmatprep.subr.mxu0 0.0
        %1808 = vmatpush1.xpose.msra.mxu0 0.0
        %1809 = vmatprep.subr.mxu0 0.0
        %1810 = vmatpush1.xpose.msra.mxu0 0.0
        %1811 = vmatprep.subr.mxu0 0.0
        %1812 = vmatpush1.xpose.msra.mxu0 0.0
        %1813 = vmatprep.subr.mxu0 0.0
        %1814 = vmatpush1.xpose.msra.mxu0 0.0
        %1815 = vmatprep.subr.mxu0 0.0
        %1816 = vmatpush1.xpose.msra.mxu0 0.0
        %1817 = vmatprep.subr.mxu0 0.0
        %1818 = vmatpush1.xpose.msra.mxu0 0.0
        %1819 = vmatprep.subr.mxu0 0.0
        %1820 = vmatpush1.xpose.msra.mxu0 0.0
        %1821 = vmatprep.subr.mxu0 0.0
        %1822 = vmatpush1.xpose.msra.mxu0 0.0
        %1823 = vmatprep.subr.mxu0 0.0
        %1824 = vmatpush1.xpose.msra.mxu0 0.0
        %1825 = vmatprep.subr.mxu0 0.0
        %1826 = vmatpush1.xpose.msra.mxu0 0.0
        %1827 = vmatprep.subr.mxu0 0.0
        %1828 = vmatpush1.xpose.msra.mxu0 0.0
        %1829 = vmatprep.subr.mxu0 0.0
        %1830 = vmatpush1.xpose.msra.mxu0 0.0
        %1831 = vmatprep.subr.mxu0 0.0
        %1832 = vmatpush1.xpose.msra.mxu0 0.0
        %1833 = vmatprep.subr.mxu0 0.0
        %1834 = vmatpush1.xpose.msra.mxu0 0.0
        %1835 = vmatprep.subr.mxu0 0.0
        %1836 = vmatpush1.xpose.msra.mxu0 0.0
        %1837 = vmatprep.subr.mxu0 0.0
        %1838 = vmatpush1.xpose.msra.mxu0 0.0
        %1839 = vmatprep.subr.mxu0 0.0
        %1840 = vmatpush1.xpose.msra.mxu0 0.0
        %1841 = vmatprep.subr.mxu0 0.0
        %1842 = vmatpush1.xpose.msra.mxu0 0.0
        %1843 = vmatprep.subr.mxu0 0.0
        %1844 = vmatpush1.xpose.msra.mxu0 0.0
        %1845 = vmatprep.subr.mxu0 0.0
        %1846 = vmatpush1.xpose.msra.mxu0 0.0
        %1847 = vmatprep.subr.mxu0 0.0
        %1848 = vmatpush1.xpose.msra.mxu0 0.0
        %1849 = vmatprep.subr.mxu0 0.0
        %1850 = vmatpush1.xpose.msra.mxu0 0.0
        %1851 = vmatprep.subr.mxu0 0.0
        %1852 = vmatpush1.xpose.msra.mxu0 0.0
        %1853 = vmatprep.subr.mxu0 0.0
        %1854 = vmatpush1.xpose.msra.mxu0 0.0
        %1855 = vmatprep.subr.mxu0 0.0
        %1856 = vmatpush1.xpose.msra.mxu0 0.0
        %1857 = vmatprep.subr.mxu0 0.0
        %1858 = vmatpush1.xpose.msra.mxu0 0.0
        %1859 = vmatprep.subr.mxu0 0.0
        %1860 = vmatpush1.xpose.msra.mxu0 0.0
        %1861 = vmatprep.mubr.f32.mxu0 0.0
        %1862 = vmatmul.mubr.f32.gmra.mrb[0].mxu0 %v1780
        %v1863 = vpop.f32.mrb[0].mxu0
        %v1864 = vadd.f32 0.0, %v1863
        %v1865 = vpop.f32.mrb[0].mxu0
        %1866 = vmatprep.mubr.f32.mxu0 0.0
        %1867 = vmatmul.mubr.f32.gmra.mrb[0].mxu0 %v1783
        %v1868 = vpop.f32.mrb[0].mxu0
        %v1869 = vadd.f32 0.0, %v1868
        %v1870 = vpop.f32.mrb[0].mxu0
        %1871 = vdwg.mxu0
        %v1872 = vsel %vm1778, %v1864, -inf
        %1873 = vmax.xlane.f32.xlu0 %v1872
        %v1874 = vpop.xlane.xlu0 %1873
        %v1875 = vsel %vm1778, %v1869, -inf
        %1876 = vmax.xlane.f32.xlu0 %v1875
        %v1877 = vpop.xlane.xlu0 %1876
        %v1878 = vsub.f32 %v1864, %v1874
        %v1879 = vsub.f32 %v1869, %v1877
        %v1880 = vmul.f32 %v1878, 1.442695
        %v1881 = vpow.pop %v1880
        %v1882 = vmul.f32 %v1879, 1.442695
        %v1883 = vpow.pop %v1882
        %v1884 = vsel %vm1778, %v1881, 0.0
        %1885 = vadd.xlane.f32.xlu0 %v1884
        %v1886 = vpop.xlane.xlu0 %1885
        %v1887 = vsel %vm1778, %v1883, 0.0
        %1888 = vadd.xlane.f32.xlu0 %v1887
        %v1889 = vpop.xlane.xlu0 %1888
        %v1890 = vrcp.pop %v1886
        %v1891 = vrcp.pop %v1889
        %v1892 = vmul.f32 %v1881, %v1890
        %v1893 = vmul.f32 %v1883, %v1891
        %1894 = vst.msk [vmem:[%s732] sm:$0xff] %vm1778, %v1892
        %1895 = vst.msk [vmem:[%s732 + $0x8] sm:$0xff] %vm1778, %v1893
        %v1896 = vld [vmem:[#allocation3] sm:$0xff]
        %v1897 = vld [vmem:[#allocation3 + $0x8] sm:$0xff]
        %v1898 = vld [vmem:[#allocation3 + $0x10] sm:$0xff]
        %v1899 = vld [vmem:[#allocation3 + $0x18] sm:$0xff]
        %v1901 = vsel %vm1778, %v1892, 0
        %v1904 = vsel %vm1778, %v1893, 0
        %1906 = vmatprep.subr.mxu0 0.0
        %1907 = vmatpush1.msra.mxu0 %v1896
        %1908 = vmatprep.subr.mxu0 0.0
        %1909 = vmatpush1.msra.mxu0 %v1897
        %1910 = vmatprep.subr.mxu0 0.0
        %1911 = vmatpush1.msra.mxu0 %v1898
        %1912 = vmatprep.subr.mxu0 0.0
        %1913 = vmatpush1.msra.mxu0 %v1899
        %1914 = vmatprep.subr.mxu0 0.0
        %1915 = vmatpush1.msra.mxu0 0.0
        %1916 = vmatprep.subr.mxu0 0.0
        %1917 = vmatpush1.msra.mxu0 0.0
        %1918 = vmatprep.subr.mxu0 0.0
        %1919 = vmatpush1.msra.mxu0 0.0
        %1920 = vmatprep.subr.mxu0 0.0
        %1921 = vmatpush1.msra.mxu0 0.0
        %1922 = vmatprep.subr.mxu0 0.0
        %1923 = vmatpush1.msra.mxu0 0.0
        %1924 = vmatprep.subr.mxu0 0.0
        %1925 = vmatpush1.msra.mxu0 0.0
        %1926 = vmatprep.subr.mxu0 0.0
        %1927 = vmatpush1.msra.mxu0 0.0
        %1928 = vmatprep.subr.mxu0 0.0
        %1929 = vmatpush1.msra.mxu0 0.0
        %1930 = vmatprep.subr.mxu0 0.0
        %1931 = vmatpush1.msra.mxu0 0.0
        %1932 = vmatprep.subr.mxu0 0.0
        %1933 = vmatpush1.msra.mxu0 0.0
        %1934 = vmatprep.subr.mxu0 0.0
        %1935 = vmatpush1.msra.mxu0 0.0
        %1936 = vmatprep.subr.mxu0 0.0
        %1937 = vmatpush1.msra.mxu0 0.0
        %1938 = vmatprep.subr.mxu0 0.0
        %1939 = vmatpush1.msra.mxu0 0.0
        %1940 = vmatprep.subr.mxu0 0.0
        %1941 = vmatpush1.msra.mxu0 0.0
        %1942 = vmatprep.subr.mxu0 0.0
        %1943 = vmatpush1.msra.mxu0 0.0
        %1944 = vmatprep.subr.mxu0 0.0
        %1945 = vmatpush1.msra.mxu0 0.0
        %1946 = vmatprep.subr.mxu0 0.0
        %1947 = vmatpush1.msra.mxu0 0.0
        %1948 = vmatprep.subr.mxu0 0.0
        %1949 = vmatpush1.msra.mxu0 0.0
        %1950 = vmatprep.subr.mxu0 0.0
        %1951 = vmatpush1.msra.mxu0 0.0
        %1952 = vmatprep.subr.mxu0 0.0
        %1953 = vmatpush1.msra.mxu0 0.0
        %1954 = vmatprep.subr.mxu0 0.0
        %1955 = vmatpush1.msra.mxu0 0.0
        %1956 = vmatprep.subr.mxu0 0.0
        %1957 = vmatpush1.msra.mxu0 0.0
        %1958 = vmatprep.subr.mxu0 0.0
        %1959 = vmatpush1.msra.mxu0 0.0
        %1960 = vmatprep.subr.mxu0 0.0
        %1961 = vmatpush1.msra.mxu0 0.0
        %1962 = vmatprep.subr.mxu0 0.0
        %1963 = vmatpush1.msra.mxu0 0.0
        %1964 = vmatprep.subr.mxu0 0.0
        %1965 = vmatpush1.msra.mxu0 0.0
        %1966 = vmatprep.subr.mxu0 0.0
        %1967 = vmatpush1.msra.mxu0 0.0
        %1968 = vmatprep.subr.mxu0 0.0
        %1969 = vmatpush1.msra.mxu0 0.0
        %1970 = vmatprep.mubr.f32.mxu0 0.0
        %1971 = vmatmul.mubr.f32.gmra.mrb[0].mxu0 %v1901
        %v1972 = vpop.f32.mrb[0].mxu0
        %v1973 = vadd.f32 0.0, %v1972
        %v1974 = vpop.f32.mrb[0].mxu0
        %1975 = vmatprep.mubr.f32.mxu0 0.0
        %1976 = vmatmul.mubr.f32.gmra.mrb[0].mxu0 %v1904
        %v1977 = vpop.f32.mrb[0].mxu0
        %v1978 = vadd.f32 0.0, %v1977
        %v1979 = vpop.f32.mrb[0].mxu0
        %1980 = vdwg.mxu0
        %v1981 = vld [vmem:[#allocation19] sm:$0xff]
        %v1982 = vld [vmem:[#allocation19 + $0x8] sm:$0xff]
        %v1983 = vld [vmem:[#allocation19 + $0x10] sm:$0xff]
        %v1984 = vld [vmem:[#allocation19 + $0x18] sm:$0xff]
        %v1986 = vsel %vm1778, %v1973, 0
        %v1989 = vsel %vm1778, %v1978, 0
        %1991 = vmatprep.subr.mxu0 0.0
        %1992 = vmatpush1.msra.mxu0 %v1981
        %1993 = vmatprep.subr.mxu0 0.0
        %1994 = vmatpush1.msra.mxu0 %v1982
        %1995 = vmatprep.subr.mxu0 0.0
        %1996 = vmatpush1.msra.mxu0 %v1983
        %1997 = vmatprep.subr.mxu0 0.0
        %1998 = vmatpush1.msra.mxu0 %v1984
        %1999 = vmatprep.subr.mxu0 0.0
        %2000 = vmatpush1.msra.mxu0 0.0
        %2001 = vmatprep.subr.mxu0 0.0
        %2002 = vmatpush1.msra.mxu0 0.0
        %2003 = vmatprep.subr.mxu0 0.0
        %2004 = vmatpush1.msra.mxu0 0.0
        %2005 = vmatprep.subr.mxu0 0.0
        %2006 = vmatpush1.msra.mxu0 0.0
        %2007 = vmatprep.subr.mxu0 0.0
        %2008 = vmatpush1.msra.mxu0 0.0
        %2009 = vmatprep.subr.mxu0 0.0
        %2010 = vmatpush1.msra.mxu0 0.0
        %2011 = vmatprep.subr.mxu0 0.0
        %2012 = vmatpush1.msra.mxu0 0.0
        %2013 = vmatprep.subr.mxu0 0.0
        %2014 = vmatpush1.msra.mxu0 0.0
        %2015 = vmatprep.subr.mxu0 0.0
        %2016 = vmatpush1.msra.mxu0 0.0
        %2017 = vmatprep.subr.mxu0 0.0
        %2018 = vmatpush1.msra.mxu0 0.0
        %2019 = vmatprep.subr.mxu0 0.0
        %2020 = vmatpush1.msra.mxu0 0.0
        %2021 = vmatprep.subr.mxu0 0.0
        %2022 = vmatpush1.msra.mxu0 0.0
        %2023 = vmatprep.subr.mxu0 0.0
        %2024 = vmatpush1.msra.mxu0 0.0
        %2025 = vmatprep.subr.mxu0 0.0
        %2026 = vmatpush1.msra.mxu0 0.0
        %2027 = vmatprep.subr.mxu0 0.0
        %2028 = vmatpush1.msra.mxu0 0.0
        %2029 = vmatprep.subr.mxu0 0.0
        %2030 = vmatpush1.msra.mxu0 0.0
        %2031 = vmatprep.subr.mxu0 0.0
        %2032 = vmatpush1.msra.mxu0 0.0
        %2033 = vmatprep.subr.mxu0 0.0
        %2034 = vmatpush1.msra.mxu0 0.0
        %2035 = vmatprep.subr.mxu0 0.0
        %2036 = vmatpush1.msra.mxu0 0.0
        %2037 = vmatprep.subr.mxu0 0.0
        %2038 = vmatpush1.msra.mxu0 0.0
        %2039 = vmatprep.subr.mxu0 0.0
        %2040 = vmatpush1.msra.mxu0 0.0
        %2041 = vmatprep.subr.mxu0 0.0
        %2042 = vmatpush1.msra.mxu0 0.0
        %2043 = vmatprep.subr.mxu0 0.0
        %2044 = vmatpush1.msra.mxu0 0.0
        %2045 = vmatprep.subr.mxu0 0.0
        %2046 = vmatpush1.msra.mxu0 0.0
        %2047 = vmatprep.subr.mxu0 0.0
        %2048 = vmatpush1.msra.mxu0 0.0
        %2049 = vmatprep.subr.mxu0 0.0
        %2050 = vmatpush1.msra.mxu0 0.0
        %2051 = vmatprep.subr.mxu0 0.0
        %2052 = vmatpush1.msra.mxu0 0.0
        %2053 = vmatprep.subr.mxu0 0.0
        %2054 = vmatpush1.msra.mxu0 0.0
        %2055 = vmatprep.mubr.f32.mxu0 0.0
        %2056 = vmatmul.mubr.f32.gmra.mrb[0].mxu0 %v1986
        %v2057 = vpop.f32.mrb[0].mxu0
        %v2058 = vadd.f32 0.0, %v2057
        %v2059 = vpop.f32.mrb[0].mxu0
        %2060 = vmatprep.mubr.f32.mxu0 0.0
        %2061 = vmatmul.mubr.f32.gmra.mrb[0].mxu0 %v1989
        %v2062 = vpop.f32.mrb[0].mxu0
        %v2063 = vadd.f32 0.0, %v2062
        %v2064 = vpop.f32.mrb[0].mxu0
        %2065 = vdwg.mxu0
        %v2066 = vadd.f32 %v1672, %v2058
        %v2067 = vadd.f32 %v1673, %v2063
        %s2068 = scalar_lea.vmem [#allocation10], 128
        %v2069 = vld [vmem:[%s2068] sm:$0xff]
        %v2070 = vld [vmem:[%s2068 + $0x8] sm:$0xff]
        %v2071 = vld [vmem:[%s2068 + $0x10] sm:$0xff]
        %v2072 = vld [vmem:[%s2068 + $0x18] sm:$0xff]
        %v2073 = vld [vmem:[%s2068 + $0x20] sm:$0xff]
        %v2074 = vld [vmem:[%s2068 + $0x28] sm:$0xff]
        %v2075 = vld [vmem:[%s2068 + $0x30] sm:$0xff]
        %v2076 = vld [vmem:[%s2068 + $0x38] sm:$0xff]
        %v2077 = vld [vmem:[%s2068 + $0x40] sm:$0xff]
        %v2078 = vld [vmem:[%s2068 + $0x48] sm:$0xff]
        %v2079 = vld [vmem:[%s2068 + $0x50] sm:$0xff]
        %v2080 = vld [vmem:[%s2068 + $0x58] sm:$0xff]
        %v2081 = vld [vmem:[%s2068 + $0x60] sm:$0xff]
        %v2082 = vld [vmem:[%s2068 + $0x68] sm:$0xff]
        %v2083 = vld [vmem:[%s2068 + $0x70] sm:$0xff]
        %v2084 = vld [vmem:[%s2068 + $0x78] sm:$0xff]
        %s2085 = scalar_lea.vmem [#allocation12], 1
        %v2086 = vld [vmem:[%s2085] sm:$0x1]
        %v2088 = vlaneseq
        %v2089 = vshrl.u32 %v2088, 7
        %v2090 = vsub.s32 0, %v2089
        %v2091 = vrot.slane %v2086, %v2090
        %2093 = vmatprep.subr.mxu0 0.0
        %2094 = vmatpush1.msra.mxu0 %v2069
        %2095 = vmatprep.subr.mxu0 0.0
        %2096 = vmatpush1.msra.mxu0 %v2070
        %2097 = vmatprep.subr.mxu0 0.0
        %2098 = vmatpush1.msra.mxu0 %v2071
        %2099 = vmatprep.subr.mxu0 0.0
        %2100 = vmatpush1.msra.mxu0 %v2072
        %2101 = vmatprep.subr.mxu0 0.0
        %2102 = vmatpush1.msra.mxu0 %v2073
        %2103 = vmatprep.subr.mxu0 0.0
        %2104 = vmatpush1.msra.mxu0 %v2074
        %2105 = vmatprep.subr.mxu0 0.0
        %2106 = vmatpush1.msra.mxu0 %v2075
        %2107 = vmatprep.subr.mxu0 0.0
        %2108 = vmatpush1.msra.mxu0 %v2076
        %2109 = vmatprep.subr.mxu0 0.0
        %2110 = vmatpush1.msra.mxu0 %v2077
        %2111 = vmatprep.subr.mxu0 0.0
        %2112 = vmatpush1.msra.mxu0 %v2078
        %2113 = vmatprep.subr.mxu0 0.0
        %2114 = vmatpush1.msra.mxu0 %v2079
        %2115 = vmatprep.subr.mxu0 0.0
        %2116 = vmatpush1.msra.mxu0 %v2080
        %2117 = vmatprep.subr.mxu0 0.0
        %2118 = vmatpush1.msra.mxu0 %v2081
        %2119 = vmatprep.subr.mxu0 0.0
        %2120 = vmatpush1.msra.mxu0 %v2082
        %2121 = vmatprep.subr.mxu0 0.0
        %2122 = vmatpush1.msra.mxu0 %v2083
        %2123 = vmatprep.subr.mxu0 0.0
        %2124 = vmatpush1.msra.mxu0 %v2084
        %2125 = vmatprep.subr.mxu0 0.0
        %2126 = vmatpush1.msra.mxu0 0.0
        %2127 = vmatprep.subr.mxu0 0.0
        %2128 = vmatpush1.msra.mxu0 0.0
        %2129 = vmatprep.subr.mxu0 0.0
        %2130 = vmatpush1.msra.mxu0 0.0
        %2131 = vmatprep.subr.mxu0 0.0
        %2132 = vmatpush1.msra.mxu0 0.0
        %2133 = vmatprep.subr.mxu0 0.0
        %2134 = vmatpush1.msra.mxu0 0.0
        %2135 = vmatprep.subr.mxu0 0.0
        %2136 = vmatpush1.msra.mxu0 0.0
        %2137 = vmatprep.subr.mxu0 0.0
        %2138 = vmatpush1.msra.mxu0 0.0
        %2139 = vmatprep.subr.mxu0 0.0
        %2140 = vmatpush1.msra.mxu0 0.0
        %2141 = vmatprep.subr.mxu0 0.0
        %2142 = vmatpush1.msra.mxu0 0.0
        %2143 = vmatprep.subr.mxu0 0.0
        %2144 = vmatpush1.msra.mxu0 0.0
        %2145 = vmatprep.subr.mxu0 0.0
        %2146 = vmatpush1.msra.mxu0 0.0
        %2147 = vmatprep.subr.mxu0 0.0
        %2148 = vmatpush1.msra.mxu0 0.0
        %2149 = vmatprep.subr.mxu0 0.0
        %2150 = vmatpush1.msra.mxu0 0.0
        %2151 = vmatprep.subr.mxu0 0.0
        %2152 = vmatpush1.msra.mxu0 0.0
        %2153 = vmatprep.subr.mxu0 0.0
        %2154 = vmatpush1.msra.mxu0 0.0
        %2155 = vmatprep.subr.mxu0 0.0
        %2156 = vmatpush1.msra.mxu0 0.0
        %2157 = vmatprep.mubr.f32.mxu0 0.0
        %2158 = vmatmul.mubr.f32.gmra.mrb[0].mxu0 %v736
        %v2159 = vpop.f32.mrb[0].mxu0
        %v2160 = vadd.f32 %v2091, %v2159
        %v2161 = vpop.f32.mrb[0].mxu0
        %2162 = vmatprep.mubr.f32.mxu0 0.0
        %2163 = vmatmul.mubr.f32.gmra.mrb[0].mxu0 %v737
        %v2164 = vpop.f32.mrb[0].mxu0
        %v2165 = vadd.f32 %v2091, %v2164
        %v2166 = vpop.f32.mrb[0].mxu0
        %2167 = vdwg.mxu0
        %v2168 = vmul.f32 %v2160, 0.17677669
        %v2169 = vmul.f32 %v2165, 0.17677669
        %s2170 = scalar_lea.vmem [#allocation2], 32
        %v2171 = vld [vmem:[%s2170] sm:$0xff]
        %v2172 = vld [vmem:[%s2170 + $0x8] sm:$0xff]
        %v2173 = vld [vmem:[%s2170 + $0x10] sm:$0xff]
        %v2174 = vld [vmem:[%s2170 + $0x18] sm:$0xff]
        %v2176 = vsel %vm1778, %v2168, 0
        %v2179 = vsel %vm1778, %v2169, 0
        %v2182 = vsel %vm1778, %v2171, 0
        %v2185 = vsel %vm1778, %v2172, 0
        %v2188 = vsel %vm1778, %v2173, 0
        %v2191 = vsel %vm1778, %v2174, 0
        %2193 = vmatprep.subr.mxu0 0.0
        %2194 = vmatpush1.xpose.msra.mxu0 %v2182
        %2195 = vmatprep.subr.mxu0 0.0
        %2196 = vmatpush1.xpose.msra.mxu0 %v2185
        %2197 = vmatprep.subr.mxu0 0.0
        %2198 = vmatpush1.xpose.msra.mxu0 %v2188
        %2199 = vmatprep.subr.mxu0 0.0
        %2200 = vmatpush1.xpose.msra.mxu0 %v2191
        %2201 = vmatprep.subr.mxu0 0.0
        %2202 = vmatpush1.xpose.msra.mxu0 0.0
        %2203 = vmatprep.subr.mxu0 0.0
        %2204 = vmatpush1.xpose.msra.mxu0 0.0
        %2205 = vmatprep.subr.mxu0 0.0
        %2206 = vmatpush1.xpose.msra.mxu0 0.0
        %2207 = vmatprep.subr.mxu0 0.0
        %2208 = vmatpush1.xpose.msra.mxu0 0.0
        %2209 = vmatprep.subr.mxu0 0.0
        %2210 = vmatpush1.xpose.msra.mxu0 0.0
        %2211 = vmatprep.subr.mxu0 0.0
        %2212 = vmatpush1.xpose.msra.mxu0 0.0
        %2213 = vmatprep.subr.mxu0 0.0
        %2214 = vmatpush1.xpose.msra.mxu0 0.0
        %2215 = vmatprep.subr.mxu0 0.0
        %2216 = vmatpush1.xpose.msra.mxu0 0.0
        %2217 = vmatprep.subr.mxu0 0.0
        %2218 = vmatpush1.xpose.msra.mxu0 0.0
        %2219 = vmatprep.subr.mxu0 0.0
        %2220 = vmatpush1.xpose.msra.mxu0 0.0
        %2221 = vmatprep.subr.mxu0 0.0
        %2222 = vmatpush1.xpose.msra.mxu0 0.0
        %2223 = vmatprep.subr.mxu0 0.0
        %2224 = vmatpush1.xpose.msra.mxu0 0.0
        %2225 = vmatprep.subr.mxu0 0.0
        %2226 = vmatpush1.xpose.msra.mxu0 0.0
        %2227 = vmatprep.subr.mxu0 0.0
        %2228 = vmatpush1.xpose.msra.mxu0 0.0
        %2229 = vmatprep.subr.mxu0 0.0
        %2230 = vmatpush1.xpose.msra.mxu0 0.0
        %2231 = vmatprep.subr.mxu0 0.0
        %2232 = vmatpush1.xpose.msra.mxu0 0.0
        %2233 = vmatprep.subr.mxu0 0.0
        %2234 = vmatpush1.xpose.msra.mxu0 0.0
        %2235 = vmatprep.subr.mxu0 0.0
        %2236 = vmatpush1.xpose.msra.mxu0 0.0
        %2237 = vmatprep.subr.mxu0 0.0
        %2238 = vmatpush1.xpose.msra.mxu0 0.0
        %2239 = vmatprep.subr.mxu0 0.0
        %2240 = vmatpush1.xpose.msra.mxu0 0.0
        %2241 = vmatprep.subr.mxu0 0.0
        %2242 = vmatpush1.xpose.msra.mxu0 0.0
        %2243 = vmatprep.subr.mxu0 0.0
        %2244 = vmatpush1.xpose.msra.mxu0 0.0
        %2245 = vmatprep.subr.mxu0 0.0
        %2246 = vmatpush1.xpose.msra.mxu0 0.0
        %2247 = vmatprep.subr.mxu0 0.0
        %2248 = vmatpush1.xpose.msra.mxu0 0.0
        %2249 = vmatprep.subr.mxu0 0.0
        %2250 = vmatpush1.xpose.msra.mxu0 0.0
        %2251 = vmatprep.subr.mxu0 0.0
        %2252 = vmatpush1.xpose.msra.mxu0 0.0
        %2253 = vmatprep.subr.mxu0 0.0
        %2254 = vmatpush1.xpose.msra.mxu0 0.0
        %2255 = vmatprep.subr.mxu0 0.0
        %2256 = vmatpush1.xpose.msra.mxu0 0.0
        %2257 = vmatprep.mubr.f32.mxu0 0.0
        %2258 = vmatmul.mubr.f32.gmra.mrb[0].mxu0 %v2176
        %v2259 = vpop.f32.mrb[0].mxu0
        %v2260 = vadd.f32 0.0, %v2259
        %v2261 = vpop.f32.mrb[0].mxu0
        %2262 = vmatprep.mubr.f32.mxu0 0.0
        %2263 = vmatmul.mubr.f32.gmra.mrb[0].mxu0 %v2179
        %v2264 = vpop.f32.mrb[0].mxu0
        %v2265 = vadd.f32 0.0, %v2264
        %v2266 = vpop.f32.mrb[0].mxu0
        %2267 = vdwg.mxu0
        %v2268 = vsel %vm1778, %v2260, -inf
        %2269 = vmax.xlane.f32.xlu0 %v2268
        %v2270 = vpop.xlane.xlu0 %2269
        %v2271 = vsel %vm1778, %v2265, -inf
        %2272 = vmax.xlane.f32.xlu0 %v2271
        %v2273 = vpop.xlane.xlu0 %2272
        %v2274 = vsub.f32 %v2260, %v2270
        %v2275 = vsub.f32 %v2265, %v2273
        %v2276 = vmul.f32 %v2274, 1.442695
        %v2277 = vpow.pop %v2276
        %v2278 = vmul.f32 %v2275, 1.442695
        %v2279 = vpow.pop %v2278
        %v2280 = vsel %vm1778, %v2277, 0.0
        %2281 = vadd.xlane.f32.xlu0 %v2280
        %v2282 = vpop.xlane.xlu0 %2281
        %v2283 = vsel %vm1778, %v2279, 0.0
        %2284 = vadd.xlane.f32.xlu0 %v2283
        %v2285 = vpop.xlane.xlu0 %2284
        %v2286 = vrcp.pop %v2282
        %v2287 = vrcp.pop %v2285
        %v2288 = vmul.f32 %v2277, %v2286
        %v2289 = vmul.f32 %v2279, %v2287
        %s2290 = scalar_lea.vmem %s732, 16 [#allocation26]
        %2291 = vst.msk [vmem:[%s2290] sm:$0xff] %vm1778, %v2288
        %2292 = vst.msk [vmem:[%s2290 + $0x8] sm:$0xff] %vm1778, %v2289
        %s2293 = scalar_lea.vmem [#allocation3], 32
        %v2294 = vld [vmem:[%s2293] sm:$0xff]
        %v2295 = vld [vmem:[%s2293 + $0x8] sm:$0xff]
        %v2296 = vld [vmem:[%s2293 + $0x10] sm:$0xff]
        %v2297 = vld [vmem:[%s2293 + $0x18] sm:$0xff]
        %v2299 = vsel %vm1778, %v2288, 0
        %v2302 = vsel %vm1778, %v2289, 0
        %2304 = vmatprep.subr.mxu0 0.0
        %2305 = vmatpush1.msra.mxu0 %v2294
        %2306 = vmatprep.subr.mxu0 0.0
        %2307 = vmatpush1.msra.mxu0 %v2295
        %2308 = vmatprep.subr.mxu0 0.0
        %2309 = vmatpush1.msra.mxu0 %v2296
        %2310 = vmatprep.subr.mxu0 0.0
        %2311 = vmatpush1.msra.mxu0 %v2297
        %2312 = vmatprep.subr.mxu0 0.0
        %2313 = vmatpush1.msra.mxu0 0.0
        %2314 = vmatprep.subr.mxu0 0.0
        %2315 = vmatpush1.msra.mxu0 0.0
        %2316 = vmatprep.subr.mxu0 0.0
        %2317 = vmatpush1.msra.mxu0 0.0
        %2318 = vmatprep.subr.mxu0 0.0
        %2319 = vmatpush1.msra.mxu0 0.0
        %2320 = vmatprep.subr.mxu0 0.0
        %2321 = vmatpush1.msra.mxu0 0.0
        %2322 = vmatprep.subr.mxu0 0.0
        %2323 = vmatpush1.msra.mxu0 0.0
        %2324 = vmatprep.subr.mxu0 0.0
        %2325 = vmatpush1.msra.mxu0 0.0
        %2326 = vmatprep.subr.mxu0 0.0
        %2327 = vmatpush1.msra.mxu0 0.0
        %2328 = vmatprep.subr.mxu0 0.0
        %2329 = vmatpush1.msra.mxu0 0.0
        %2330 = vmatprep.subr.mxu0 0.0
        %2331 = vmatpush1.msra.mxu0 0.0
        %2332 = vmatprep.subr.mxu0 0.0
        %2333 = vmatpush1.msra.mxu0 0.0
        %2334 = vmatprep.subr.mxu0 0.0
        %2335 = vmatpush1.msra.mxu0 0.0
        %2336 = vmatprep.subr.mxu0 0.0
        %2337 = vmatpush1.msra.mxu0 0.0
        %2338 = vmatprep.subr.mxu0 0.0
        %2339 = vmatpush1.msra.mxu0 0.0
        %2340 = vmatprep.subr.mxu0 0.0
        %2341 = vmatpush1.msra.mxu0 0.0
        %2342 = vmatprep.subr.mxu0 0.0
        %2343 = vmatpush1.msra.mxu0 0.0
        %2344 = vmatprep.subr.mxu0 0.0
        %2345 = vmatpush1.msra.mxu0 0.0
        %2346 = vmatprep.subr.mxu0 0.0
        %2347 = vmatpush1.msra.mxu0 0.0
        %2348 = vmatprep.subr.mxu0 0.0
        %2349 = vmatpush1.msra.mxu0 0.0
        %2350 = vmatprep.subr.mxu0 0.0
        %2351 = vmatpush1.msra.mxu0 0.0
        %2352 = vmatprep.subr.mxu0 0.0
        %2353 = vmatpush1.msra.mxu0 0.0
        %2354 = vmatprep.subr.mxu0 0.0
        %2355 = vmatpush1.msra.mxu0 0.0
        %2356 = vmatprep.subr.mxu0 0.0
        %2357 = vmatpush1.msra.mxu0 0.0
        %2358 = vmatprep.subr.mxu0 0.0
        %2359 = vmatpush1.msra.mxu0 0.0
        %2360 = vmatprep.subr.mxu0 0.0
        %2361 = vmatpush1.msra.mxu0 0.0
        %2362 = vmatprep.subr.mxu0 0.0
        %2363 = vmatpush1.msra.mxu0 0.0
        %2364 = vmatprep.subr.mxu0 0.0
        %2365 = vmatpush1.msra.mxu0 0.0
        %2366 = vmatprep.subr.mxu0 0.0
        %2367 = vmatpush1.msra.mxu0 0.0
        %2368 = vmatprep.mubr.f32.mxu0 0.0
        %2369 = vmatmul.mubr.f32.gmra.mrb[0].mxu0 %v2299
        %v2370 = vpop.f32.mrb[0].mxu0
        %v2371 = vadd.f32 0.0, %v2370
        %v2372 = vpop.f32.mrb[0].mxu0
        %2373 = vmatprep.mubr.f32.mxu0 0.0
        %2374 = vmatmul.mubr.f32.gmra.mrb[0].mxu0 %v2302
        %v2375 = vpop.f32.mrb[0].mxu0
        %v2376 = vadd.f32 0.0, %v2375
        %v2377 = vpop.f32.mrb[0].mxu0
        %2378 = vdwg.mxu0
        %s2379 = scalar_lea.vmem [#allocation19], 32
        %v2380 = vld [vmem:[%s2379] sm:$0xff]
        %v2381 = vld [vmem:[%s2379 + $0x8] sm:$0xff]
        %v2382 = vld [vmem:[%s2379 + $0x10] sm:$0xff]
        %v2383 = vld [vmem:[%s2379 + $0x18] sm:$0xff]
        %v2385 = vsel %vm1778, %v2371, 0
        %v2388 = vsel %vm1778, %v2376, 0
        %2390 = vmatprep.subr.mxu0 0.0
        %2391 = vmatpush1.msra.mxu0 %v2380
        %2392 = vmatprep.subr.mxu0 0.0
        %2393 = vmatpush1.msra.mxu0 %v2381
        %2394 = vmatprep.subr.mxu0 0.0
        %2395 = vmatpush1.msra.mxu0 %v2382
        %2396 = vmatprep.subr.mxu0 0.0
        %2397 = vmatpush1.msra.mxu0 %v2383
        %2398 = vmatprep.subr.mxu0 0.0
        %2399 = vmatpush1.msra.mxu0 0.0
        %2400 = vmatprep.subr.mxu0 0.0
        %2401 = vmatpush1.msra.mxu0 0.0
        %2402 = vmatprep.subr.mxu0 0.0
        %2403 = vmatpush1.msra.mxu0 0.0
        %2404 = vmatprep.subr.mxu0 0.0
        %2405 = vmatpush1.msra.mxu0 0.0
        %2406 = vmatprep.subr.mxu0 0.0
        %2407 = vmatpush1.msra.mxu0 0.0
        %2408 = vmatprep.subr.mxu0 0.0
        %2409 = vmatpush1.msra.mxu0 0.0
        %2410 = vmatprep.subr.mxu0 0.0
        %2411 = vmatpush1.msra.mxu0 0.0
        %2412 = vmatprep.subr.mxu0 0.0
        %2413 = vmatpush1.msra.mxu0 0.0
        %2414 = vmatprep.subr.mxu0 0.0
        %2415 = vmatpush1.msra.mxu0 0.0
        %2416 = vmatprep.subr.mxu0 0.0
        %2417 = vmatpush1.msra.mxu0 0.0
        %2418 = vmatprep.subr.mxu0 0.0
        %2419 = vmatpush1.msra.mxu0 0.0
        %2420 = vmatprep.subr.mxu0 0.0
        %2421 = vmatpush1.msra.mxu0 0.0
        %2422 = vmatprep.subr.mxu0 0.0
        %2423 = vmatpush1.msra.mxu0 0.0
        %2424 = vmatprep.subr.mxu0 0.0
        %2425 = vmatpush1.msra.mxu0 0.0
        %2426 = vmatprep.subr.mxu0 0.0
        %2427 = vmatpush1.msra.mxu0 0.0
        %2428 = vmatprep.subr.mxu0 0.0
        %2429 = vmatpush1.msra.mxu0 0.0
        %2430 = vmatprep.subr.mxu0 0.0
        %2431 = vmatpush1.msra.mxu0 0.0
        %2432 = vmatprep.subr.mxu0 0.0
        %2433 = vmatpush1.msra.mxu0 0.0
        %2434 = vmatprep.subr.mxu0 0.0
        %2435 = vmatpush1.msra.mxu0 0.0
        %2436 = vmatprep.subr.mxu0 0.0
        %2437 = vmatpush1.msra.mxu0 0.0
        %2438 = vmatprep.subr.mxu0 0.0
        %2439 = vmatpush1.msra.mxu0 0.0
        %2440 = vmatprep.subr.mxu0 0.0
        %2441 = vmatpush1.msra.mxu0 0.0
        %2442 = vmatprep.subr.mxu0 0.0
        %2443 = vmatpush1.msra.mxu0 0.0
        %2444 = vmatprep.subr.mxu0 0.0
        %2445 = vmatpush1.msra.mxu0 0.0
        %2446 = vmatprep.subr.mxu0 0.0
        %2447 = vmatpush1.msra.mxu0 0.0
        %2448 = vmatprep.subr.mxu0 0.0
        %2449 = vmatpush1.msra.mxu0 0.0
        %2450 = vmatprep.subr.mxu0 0.0
        %2451 = vmatpush1.msra.mxu0 0.0
        %2452 = vmatprep.subr.mxu0 0.0
        %2453 = vmatpush1.msra.mxu0 0.0
        %2454 = vmatprep.mubr.f32.mxu0 0.0
        %2455 = vmatmul.mubr.f32.gmra.mrb[0].mxu0 %v2385
        %v2456 = vpop.f32.mrb[0].mxu0
        %v2457 = vadd.f32 0.0, %v2456
        %v2458 = vpop.f32.mrb[0].mxu0
        %2459 = vmatprep.mubr.f32.mxu0 0.0
        %2460 = vmatmul.mubr.f32.gmra.mrb[0].mxu0 %v2388
        %v2461 = vpop.f32.mrb[0].mxu0
        %v2462 = vadd.f32 0.0, %v2461
        %v2463 = vpop.f32.mrb[0].mxu0
        %2464 = vdwg.mxu0
        %v2465 = vadd.f32 %v2066, %v2457
        %v2466 = vadd.f32 %v2067, %v2462
        %s2467 = scalar_lea.vmem [#allocation10], 256
        %v2468 = vld [vmem:[%s2467] sm:$0xff]
        %v2469 = vld [vmem:[%s2467 + $0x8] sm:$0xff]
        %v2470 = vld [vmem:[%s2467 + $0x10] sm:$0xff]
        %v2471 = vld [vmem:[%s2467 + $0x18] sm:$0xff]
        %v2472 = vld [vmem:[%s2467 + $0x20] sm:$0xff]
        %v2473 = vld [vmem:[%s2467 + $0x28] sm:$0xff]
        %v2474 = vld [vmem:[%s2467 + $0x30] sm:$0xff]
        %v2475 = vld [vmem:[%s2467 + $0x38] sm:$0xff]
        %v2476 = vld [vmem:[%s2467 + $0x40] sm:$0xff]
        %v2477 = vld [vmem:[%s2467 + $0x48] sm:$0xff]
        %v2478 = vld [vmem:[%s2467 + $0x50] sm:$0xff]
        %v2479 = vld [vmem:[%s2467 + $0x58] sm:$0xff]
        %v2480 = vld [vmem:[%s2467 + $0x60] sm:$0xff]
        %v2481 = vld [vmem:[%s2467 + $0x68] sm:$0xff]
        %v2482 = vld [vmem:[%s2467 + $0x70] sm:$0xff]
        %v2483 = vld [vmem:[%s2467 + $0x78] sm:$0xff]
        %s2484 = scalar_lea.vmem [#allocation12], 2
        %v2485 = vld [vmem:[%s2484] sm:$0x1]
        %v2487 = vlaneseq
        %v2488 = vshrl.u32 %v2487, 7
        %v2489 = vsub.s32 0, %v2488
        %v2490 = vrot.slane %v2485, %v2489
        %2492 = vmatprep.subr.mxu0 0.0
        %2493 = vmatpush1.msra.mxu0 %v2468
        %2494 = vmatprep.subr.mxu0 0.0
        %2495 = vmatpush1.msra.mxu0 %v2469
        %2496 = vmatprep.subr.mxu0 0.0
        %2497 = vmatpush1.msra.mxu0 %v2470
        %2498 = vmatprep.subr.mxu0 0.0
        %2499 = vmatpush1.msra.mxu0 %v2471
        %2500 = vmatprep.subr.mxu0 0.0
        %2501 = vmatpush1.msra.mxu0 %v2472
        %2502 = vmatprep.subr.mxu0 0.0
        %2503 = vmatpush1.msra.mxu0 %v2473
        %2504 = vmatprep.subr.mxu0 0.0
        %2505 = vmatpush1.msra.mxu0 %v2474
        %2506 = vmatprep.subr.mxu0 0.0
        %2507 = vmatpush1.msra.mxu0 %v2475
        %2508 = vmatprep.subr.mxu0 0.0
        %2509 = vmatpush1.msra.mxu0 %v2476
        %2510 = vmatprep.subr.mxu0 0.0
        %2511 = vmatpush1.msra.mxu0 %v2477
        %2512 = vmatprep.subr.mxu0 0.0
        %2513 = vmatpush1.msra.mxu0 %v2478
        %2514 = vmatprep.subr.mxu0 0.0
        %2515 = vmatpush1.msra.mxu0 %v2479
        %2516 = vmatprep.subr.mxu0 0.0
        %2517 = vmatpush1.msra.mxu0 %v2480
        %2518 = vmatprep.subr.mxu0 0.0
        %2519 = vmatpush1.msra.mxu0 %v2481
        %2520 = vmatprep.subr.mxu0 0.0
        %2521 = vmatpush1.msra.mxu0 %v2482
        %2522 = vmatprep.subr.mxu0 0.0
        %2523 = vmatpush1.msra.mxu0 %v2483
        %2524 = vmatprep.subr.mxu0 0.0
        %2525 = vmatpush1.msra.mxu0 0.0
        %2526 = vmatprep.subr.mxu0 0.0
        %2527 = vmatpush1.msra.mxu0 0.0
        %2528 = vmatprep.subr.mxu0 0.0
        %2529 = vmatpush1.msra.mxu0 0.0
        %2530 = vmatprep.subr.mxu0 0.0
        %2531 = vmatpush1.msra.mxu0 0.0
        %2532 = vmatprep.subr.mxu0 0.0
        %2533 = vmatpush1.msra.mxu0 0.0
        %2534 = vmatprep.subr.mxu0 0.0
        %2535 = vmatpush1.msra.mxu0 0.0
        %2536 = vmatprep.subr.mxu0 0.0
        %2537 = vmatpush1.msra.mxu0 0.0
        %2538 = vmatprep.subr.mxu0 0.0
        %2539 = vmatpush1.msra.mxu0 0.0
        %2540 = vmatprep.subr.mxu0 0.0
        %2541 = vmatpush1.msra.mxu0 0.0
        %2542 = vmatprep.subr.mxu0 0.0
        %2543 = vmatpush1.msra.mxu0 0.0
        %2544 = vmatprep.subr.mxu0 0.0
        %2545 = vmatpush1.msra.mxu0 0.0
        %2546 = vmatprep.subr.mxu0 0.0
        %2547 = vmatpush1.msra.mxu0 0.0
        %2548 = vmatprep.subr.mxu0 0.0
        %2549 = vmatpush1.msra.mxu0 0.0
        %2550 = vmatprep.subr.mxu0 0.0
        %2551 = vmatpush1.msra.mxu0 0.0
        %2552 = vmatprep.subr.mxu0 0.0
        %2553 = vmatpush1.msra.mxu0 0.0
        %2554 = vmatprep.subr.mxu0 0.0
        %2555 = vmatpush1.msra.mxu0 0.0
        %2556 = vmatprep.mubr.f32.mxu0 0.0
        %2557 = vmatmul.mubr.f32.gmra.mrb[0].mxu0 %v736
        %v2558 = vpop.f32.mrb[0].mxu0
        %v2559 = vadd.f32 %v2490, %v2558
        %v2560 = vpop.f32.mrb[0].mxu0
        %2561 = vmatprep.mubr.f32.mxu0 0.0
        %2562 = vmatmul.mubr.f32.gmra.mrb[0].mxu0 %v737
        %v2563 = vpop.f32.mrb[0].mxu0
        %v2564 = vadd.f32 %v2490, %v2563
        %v2565 = vpop.f32.mrb[0].mxu0
        %2566 = vdwg.mxu0
        %v2567 = vmul.f32 %v2559, 0.17677669
        %v2568 = vmul.f32 %v2564, 0.17677669
        %s2569 = scalar_lea.vmem [#allocation2], 64
        %v2570 = vld [vmem:[%s2569] sm:$0xff]
        %v2571 = vld [vmem:[%s2569 + $0x8] sm:$0xff]
        %v2572 = vld [vmem:[%s2569 + $0x10] sm:$0xff]
        %v2573 = vld [vmem:[%s2569 + $0x18] sm:$0xff]
        %v2575 = vsel %vm1778, %v2567, 0
        %v2578 = vsel %vm1778, %v2568, 0
        %v2581 = vsel %vm1778, %v2570, 0
        %v2584 = vsel %vm1778, %v2571, 0
        %v2587 = vsel %vm1778, %v2572, 0
        %v2590 = vsel %vm1778, %v2573, 0
        %2592 = vmatprep.subr.mxu0 0.0
        %2593 = vmatpush1.xpose.msra.mxu0 %v2581
        %2594 = vmatprep.subr.mxu0 0.0
        %2595 = vmatpush1.xpose.msra.mxu0 %v2584
        %2596 = vmatprep.subr.mxu0 0.0
        %2597 = vmatpush1.xpose.msra.mxu0 %v2587
        %2598 = vmatprep.subr.mxu0 0.0
        %2599 = vmatpush1.xpose.msra.mxu0 %v2590
        %2600 = vmatprep.subr.mxu0 0.0
        %2601 = vmatpush1.xpose.msra.mxu0 0.0
        %2602 = vmatprep.subr.mxu0 0.0
        %2603 = vmatpush1.xpose.msra.mxu0 0.0
        %2604 = vmatprep.subr.mxu0 0.0
        %2605 = vmatpush1.xpose.msra.mxu0 0.0
        %2606 = vmatprep.subr.mxu0 0.0
        %2607 = vmatpush1.xpose.msra.mxu0 0.0
        %2608 = vmatprep.subr.mxu0 0.0
        %2609 = vmatpush1.xpose.msra.mxu0 0.0
        %2610 = vmatprep.subr.mxu0 0.0
        %2611 = vmatpush1.xpose.msra.mxu0 0.0
        %2612 = vmatprep.subr.mxu0 0.0
        %2613 = vmatpush1.xpose.msra.mxu0 0.0
        %2614 = vmatprep.subr.mxu0 0.0
        %2615 = vmatpush1.xpose.msra.mxu0 0.0
        %2616 = vmatprep.subr.mxu0 0.0
        %2617 = vmatpush1.xpose.msra.mxu0 0.0
        %2618 = vmatprep.subr.mxu0 0.0
        %2619 = vmatpush1.xpose.msra.mxu0 0.0
        %2620 = vmatprep.subr.mxu0 0.0
        %2621 = vmatpush1.xpose.msra.mxu0 0.0
        %2622 = vmatprep.subr.mxu0 0.0
        %2623 = vmatpush1.xpose.msra.mxu0 0.0
        %2624 = vmatprep.subr.mxu0 0.0
        %2625 = vmatpush1.xpose.msra.mxu0 0.0
        %2626 = vmatprep.subr.mxu0 0.0
        %2627 = vmatpush1.xpose.msra.mxu0 0.0
        %2628 = vmatprep.subr.mxu0 0.0
        %2629 = vmatpush1.xpose.msra.mxu0 0.0
        %2630 = vmatprep.subr.mxu0 0.0
        %2631 = vmatpush1.xpose.msra.mxu0 0.0
        %2632 = vmatprep.subr.mxu0 0.0
        %2633 = vmatpush1.xpose.msra.mxu0 0.0
        %2634 = vmatprep.subr.mxu0 0.0
        %2635 = vmatpush1.xpose.msra.mxu0 0.0
        %2636 = vmatprep.subr.mxu0 0.0
        %2637 = vmatpush1.xpose.msra.mxu0 0.0
        %2638 = vmatprep.subr.mxu0 0.0
        %2639 = vmatpush1.xpose.msra.mxu0 0.0
        %2640 = vmatprep.subr.mxu0 0.0
        %2641 = vmatpush1.xpose.msra.mxu0 0.0
        %2642 = vmatprep.subr.mxu0 0.0
        %2643 = vmatpush1.xpose.msra.mxu0 0.0
        %2644 = vmatprep.subr.mxu0 0.0
        %2645 = vmatpush1.xpose.msra.mxu0 0.0
        %2646 = vmatprep.subr.mxu0 0.0
        %2647 = vmatpush1.xpose.msra.mxu0 0.0
        %2648 = vmatprep.subr.mxu0 0.0
        %2649 = vmatpush1.xpose.msra.mxu0 0.0
        %2650 = vmatprep.subr.mxu0 0.0
        %2651 = vmatpush1.xpose.msra.mxu0 0.0
        %2652 = vmatprep.subr.mxu0 0.0
        %2653 = vmatpush1.xpose.msra.mxu0 0.0
        %2654 = vmatprep.subr.mxu0 0.0
        %2655 = vmatpush1.xpose.msra.mxu0 0.0
        %2656 = vmatprep.mubr.f32.mxu0 0.0
        %2657 = vmatmul.mubr.f32.gmra.mrb[0].mxu0 %v2575
        %v2658 = vpop.f32.mrb[0].mxu0
        %v2659 = vadd.f32 0.0, %v2658
        %v2660 = vpop.f32.mrb[0].mxu0
        %2661 = vmatprep.mubr.f32.mxu0 0.0
        %2662 = vmatmul.mubr.f32.gmra.mrb[0].mxu0 %v2578
        %v2663 = vpop.f32.mrb[0].mxu0
        %v2664 = vadd.f32 0.0, %v2663
        %v2665 = vpop.f32.mrb[0].mxu0
        %2666 = vdwg.mxu0
        %v2667 = vsel %vm1778, %v2659, -inf
        %2668 = vmax.xlane.f32.xlu0 %v2667
        %v2669 = vpop.xlane.xlu0 %2668
        %v2670 = vsel %vm1778, %v2664, -inf
        %2671 = vmax.xlane.f32.xlu0 %v2670
        %v2672 = vpop.xlane.xlu0 %2671
        %v2673 = vsub.f32 %v2659, %v2669
        %v2674 = vsub.f32 %v2664, %v2672
        %v2675 = vmul.f32 %v2673, 1.442695
        %v2676 = vpow.pop %v2675
        %v2677 = vmul.f32 %v2674, 1.442695
        %v2678 = vpow.pop %v2677
        %v2679 = vsel %vm1778, %v2676, 0.0
        %2680 = vadd.xlane.f32.xlu0 %v2679
        %v2681 = vpop.xlane.xlu0 %2680
        %v2682 = vsel %vm1778, %v2678, 0.0
        %2683 = vadd.xlane.f32.xlu0 %v2682
        %v2684 = vpop.xlane.xlu0 %2683
        %v2685 = vrcp.pop %v2681
        %v2686 = vrcp.pop %v2684
        %v2687 = vmul.f32 %v2676, %v2685
        %v2688 = vmul.f32 %v2678, %v2686
        %s2689 = scalar_lea.vmem %s732, 32 [#allocation26]
        %2690 = vst.msk [vmem:[%s2689] sm:$0xff] %vm1778, %v2687
        %2691 = vst.msk [vmem:[%s2689 + $0x8] sm:$0xff] %vm1778, %v2688
        %s2692 = scalar_lea.vmem [#allocation3], 64
        %v2693 = vld [vmem:[%s2692] sm:$0xff]
        %v2694 = vld [vmem:[%s2692 + $0x8] sm:$0xff]
        %v2695 = vld [vmem:[%s2692 + $0x10] sm:$0xff]
        %v2696 = vld [vmem:[%s2692 + $0x18] sm:$0xff]
        %v2698 = vsel %vm1778, %v2687, 0
        %v2701 = vsel %vm1778, %v2688, 0
        %2703 = vmatprep.subr.mxu0 0.0
        %2704 = vmatpush1.msra.mxu0 %v2693
        %2705 = vmatprep.subr.mxu0 0.0
        %2706 = vmatpush1.msra.mxu0 %v2694
        %2707 = vmatprep.subr.mxu0 0.0
        %2708 = vmatpush1.msra.mxu0 %v2695
        %2709 = vmatprep.subr.mxu0 0.0
        %2710 = vmatpush1.msra.mxu0 %v2696
        %2711 = vmatprep.subr.mxu0 0.0
        %2712 = vmatpush1.msra.mxu0 0.0
        %2713 = vmatprep.subr.mxu0 0.0
        %2714 = vmatpush1.msra.mxu0 0.0
        %2715 = vmatprep.subr.mxu0 0.0
        %2716 = vmatpush1.msra.mxu0 0.0
        %2717 = vmatprep.subr.mxu0 0.0
        %2718 = vmatpush1.msra.mxu0 0.0
        %2719 = vmatprep.subr.mxu0 0.0
        %2720 = vmatpush1.msra.mxu0 0.0
        %2721 = vmatprep.subr.mxu0 0.0
        %2722 = vmatpush1.msra.mxu0 0.0
        %2723 = vmatprep.subr.mxu0 0.0
        %2724 = vmatpush1.msra.mxu0 0.0
        %2725 = vmatprep.subr.mxu0 0.0
        %2726 = vmatpush1.msra.mxu0 0.0
        %2727 = vmatprep.subr.mxu0 0.0
        %2728 = vmatpush1.msra.mxu0 0.0
        %2729 = vmatprep.subr.mxu0 0.0
        %2730 = vmatpush1.msra.mxu0 0.0
        %2731 = vmatprep.subr.mxu0 0.0
        %2732 = vmatpush1.msra.mxu0 0.0
        %2733 = vmatprep.subr.mxu0 0.0
        %2734 = vmatpush1.msra.mxu0 0.0
        %2735 = vmatprep.subr.mxu0 0.0
        %2736 = vmatpush1.msra.mxu0 0.0
        %2737 = vmatprep.subr.mxu0 0.0
        %2738 = vmatpush1.msra.mxu0 0.0
        %2739 = vmatprep.subr.mxu0 0.0
        %2740 = vmatpush1.msra.mxu0 0.0
        %2741 = vmatprep.subr.mxu0 0.0
        %2742 = vmatpush1.msra.mxu0 0.0
        %2743 = vmatprep.subr.mxu0 0.0
        %2744 = vmatpush1.msra.mxu0 0.0
        %2745 = vmatprep.subr.mxu0 0.0
        %2746 = vmatpush1.msra.mxu0 0.0
        %2747 = vmatprep.subr.mxu0 0.0
        %2748 = vmatpush1.msra.mxu0 0.0
        %2749 = vmatprep.subr.mxu0 0.0
        %2750 = vmatpush1.msra.mxu0 0.0
        %2751 = vmatprep.subr.mxu0 0.0
        %2752 = vmatpush1.msra.mxu0 0.0
        %2753 = vmatprep.subr.mxu0 0.0
        %2754 = vmatpush1.msra.mxu0 0.0
        %2755 = vmatprep.subr.mxu0 0.0
        %2756 = vmatpush1.msra.mxu0 0.0
        %2757 = vmatprep.subr.mxu0 0.0
        %2758 = vmatpush1.msra.mxu0 0.0
        %2759 = vmatprep.subr.mxu0 0.0
        %2760 = vmatpush1.msra.mxu0 0.0
        %2761 = vmatprep.subr.mxu0 0.0
        %2762 = vmatpush1.msra.mxu0 0.0
        %2763 = vmatprep.subr.mxu0 0.0
        %2764 = vmatpush1.msra.mxu0 0.0
        %2765 = vmatprep.subr.mxu0 0.0
        %2766 = vmatpush1.msra.mxu0 0.0
        %2767 = vmatprep.mubr.f32.mxu0 0.0
        %2768 = vmatmul.mubr.f32.gmra.mrb[0].mxu0 %v2698
        %v2769 = vpop.f32.mrb[0].mxu0
        %v2770 = vadd.f32 0.0, %v2769
        %v2771 = vpop.f32.mrb[0].mxu0
        %2772 = vmatprep.mubr.f32.mxu0 0.0
        %2773 = vmatmul.mubr.f32.gmra.mrb[0].mxu0 %v2701
        %v2774 = vpop.f32.mrb[0].mxu0
        %v2775 = vadd.f32 0.0, %v2774
        %v2776 = vpop.f32.mrb[0].mxu0
        %2777 = vdwg.mxu0
        %s2778 = scalar_lea.vmem [#allocation19], 64
        %v2779 = vld [vmem:[%s2778] sm:$0xff]
        %v2780 = vld [vmem:[%s2778 + $0x8] sm:$0xff]
        %v2781 = vld [vmem:[%s2778 + $0x10] sm:$0xff]
        %v2782 = vld [vmem:[%s2778 + $0x18] sm:$0xff]
        %v2784 = vsel %vm1778, %v2770, 0
        %v2787 = vsel %vm1778, %v2775, 0
        %2789 = vmatprep.subr.mxu0 0.0
        %2790 = vmatpush1.msra.mxu0 %v2779
        %2791 = vmatprep.subr.mxu0 0.0
        %2792 = vmatpush1.msra.mxu0 %v2780
        %2793 = vmatprep.subr.mxu0 0.0
        %2794 = vmatpush1.msra.mxu0 %v2781
        %2795 = vmatprep.subr.mxu0 0.0
        %2796 = vmatpush1.msra.mxu0 %v2782
        %2797 = vmatprep.subr.mxu0 0.0
        %2798 = vmatpush1.msra.mxu0 0.0
        %2799 = vmatprep.subr.mxu0 0.0
        %2800 = vmatpush1.msra.mxu0 0.0
        %2801 = vmatprep.subr.mxu0 0.0
        %2802 = vmatpush1.msra.mxu0 0.0
        %2803 = vmatprep.subr.mxu0 0.0
        %2804 = vmatpush1.msra.mxu0 0.0
        %2805 = vmatprep.subr.mxu0 0.0
        %2806 = vmatpush1.msra.mxu0 0.0
        %2807 = vmatprep.subr.mxu0 0.0
        %2808 = vmatpush1.msra.mxu0 0.0
        %2809 = vmatprep.subr.mxu0 0.0
        %2810 = vmatpush1.msra.mxu0 0.0
        %2811 = vmatprep.subr.mxu0 0.0
        %2812 = vmatpush1.msra.mxu0 0.0
        %2813 = vmatprep.subr.mxu0 0.0
        %2814 = vmatpush1.msra.mxu0 0.0
        %2815 = vmatprep.subr.mxu0 0.0
        %2816 = vmatpush1.msra.mxu0 0.0
        %2817 = vmatprep.subr.mxu0 0.0
        %2818 = vmatpush1.msra.mxu0 0.0
        %2819 = vmatprep.subr.mxu0 0.0
        %2820 = vmatpush1.msra.mxu0 0.0
        %2821 = vmatprep.subr.mxu0 0.0
        %2822 = vmatpush1.msra.mxu0 0.0
        %2823 = vmatprep.subr.mxu0 0.0
        %2824 = vmatpush1.msra.mxu0 0.0
        %2825 = vmatprep.subr.mxu0 0.0
        %2826 = vmatpush1.msra.mxu0 0.0
        %2827 = vmatprep.subr.mxu0 0.0
        %2828 = vmatpush1.msra.mxu0 0.0
        %2829 = vmatprep.subr.mxu0 0.0
        %2830 = vmatpush1.msra.mxu0 0.0
        %2831 = vmatprep.subr.mxu0 0.0
        %2832 = vmatpush1.msra.mxu0 0.0
        %2833 = vmatprep.subr.mxu0 0.0
        %2834 = vmatpush1.msra.mxu0 0.0
        %2835 = vmatprep.subr.mxu0 0.0
        %2836 = vmatpush1.msra.mxu0 0.0
        %2837 = vmatprep.subr.mxu0 0.0
        %2838 = vmatpush1.msra.mxu0 0.0
        %2839 = vmatprep.subr.mxu0 0.0
        %2840 = vmatpush1.msra.mxu0 0.0
        %2841 = vmatprep.subr.mxu0 0.0
        %2842 = vmatpush1.msra.mxu0 0.0
        %2843 = vmatprep.subr.mxu0 0.0
        %2844 = vmatpush1.msra.mxu0 0.0
        %2845 = vmatprep.subr.mxu0 0.0
        %2846 = vmatpush1.msra.mxu0 0.0
        %2847 = vmatprep.subr.mxu0 0.0
        %2848 = vmatpush1.msra.mxu0 0.0
        %2849 = vmatprep.subr.mxu0 0.0
        %2850 = vmatpush1.msra.mxu0 0.0
        %2851 = vmatprep.subr.mxu0 0.0
        %2852 = vmatpush1.msra.mxu0 0.0
        %2853 = vmatprep.mubr.f32.mxu0 0.0
        %2854 = vmatmul.mubr.f32.gmra.mrb[0].mxu0 %v2784
        %v2855 = vpop.f32.mrb[0].mxu0
        %v2856 = vadd.f32 0.0, %v2855
        %v2857 = vpop.f32.mrb[0].mxu0
        %2858 = vmatprep.mubr.f32.mxu0 0.0
        %2859 = vmatmul.mubr.f32.gmra.mrb[0].mxu0 %v2787
        %v2860 = vpop.f32.mrb[0].mxu0
        %v2861 = vadd.f32 0.0, %v2860
        %v2862 = vpop.f32.mrb[0].mxu0
        %2863 = vdwg.mxu0
        %v2864 = vadd.f32 %v2465, %v2856
        %v2865 = vadd.f32 %v2466, %v2861
        %s2866 = scalar_lea.vmem [#allocation10], 384
        %v2867 = vld [vmem:[%s2866] sm:$0xff]
        %v2868 = vld [vmem:[%s2866 + $0x8] sm:$0xff]
        %v2869 = vld [vmem:[%s2866 + $0x10] sm:$0xff]
        %v2870 = vld [vmem:[%s2866 + $0x18] sm:$0xff]
        %v2871 = vld [vmem:[%s2866 + $0x20] sm:$0xff]
        %v2872 = vld [vmem:[%s2866 + $0x28] sm:$0xff]
        %v2873 = vld [vmem:[%s2866 + $0x30] sm:$0xff]
        %v2874 = vld [vmem:[%s2866 + $0x38] sm:$0xff]
        %v2875 = vld [vmem:[%s2866 + $0x40] sm:$0xff]
        %v2876 = vld [vmem:[%s2866 + $0x48] sm:$0xff]
        %v2877 = vld [vmem:[%s2866 + $0x50] sm:$0xff]
        %v2878 = vld [vmem:[%s2866 + $0x58] sm:$0xff]
        %v2879 = vld [vmem:[%s2866 + $0x60] sm:$0xff]
        %v2880 = vld [vmem:[%s2866 + $0x68] sm:$0xff]
        %v2881 = vld [vmem:[%s2866 + $0x70] sm:$0xff]
        %v2882 = vld [vmem:[%s2866 + $0x78] sm:$0xff]
        %s2883 = scalar_lea.vmem [#allocation12], 3
        %v2884 = vld [vmem:[%s2883] sm:$0x1]
        %v2886 = vlaneseq
        %v2887 = vshrl.u32 %v2886, 7
        %v2888 = vsub.s32 0, %v2887
        %v2889 = vrot.slane %v2884, %v2888
        %2891 = vmatprep.subr.mxu0 0.0
        %2892 = vmatpush1.msra.mxu0 %v2867
        %2893 = vmatprep.subr.mxu0 0.0
        %2894 = vmatpush1.msra.mxu0 %v2868
        %2895 = vmatprep.subr.mxu0 0.0
        %2896 = vmatpush1.msra.mxu0 %v2869
        %2897 = vmatprep.subr.mxu0 0.0
        %2898 = vmatpush1.msra.mxu0 %v2870
        %2899 = vmatprep.subr.mxu0 0.0
        %2900 = vmatpush1.msra.mxu0 %v2871
        %2901 = vmatprep.subr.mxu0 0.0
        %2902 = vmatpush1.msra.mxu0 %v2872
        %2903 = vmatprep.subr.mxu0 0.0
        %2904 = vmatpush1.msra.mxu0 %v2873
        %2905 = vmatprep.subr.mxu0 0.0
        %2906 = vmatpush1.msra.mxu0 %v2874
        %2907 = vmatprep.subr.mxu0 0.0
        %2908 = vmatpush1.msra.mxu0 %v2875
        %2909 = vmatprep.subr.mxu0 0.0
        %2910 = vmatpush1.msra.mxu0 %v2876
        %2911 = vmatprep.subr.mxu0 0.0
        %2912 = vmatpush1.msra.mxu0 %v2877
        %2913 = vmatprep.subr.mxu0 0.0
        %2914 = vmatpush1.msra.mxu0 %v2878
        %2915 = vmatprep.subr.mxu0 0.0
        %2916 = vmatpush1.msra.mxu0 %v2879
        %2917 = vmatprep.subr.mxu0 0.0
        %2918 = vmatpush1.msra.mxu0 %v2880
        %2919 = vmatprep.subr.mxu0 0.0
        %2920 = vmatpush1.msra.mxu0 %v2881
        %2921 = vmatprep.subr.mxu0 0.0
        %2922 = vmatpush1.msra.mxu0 %v2882
        %2923 = vmatprep.subr.mxu0 0.0
        %2924 = vmatpush1.msra.mxu0 0.0
        %2925 = vmatprep.subr.mxu0 0.0
        %2926 = vmatpush1.msra.mxu0 0.0
        %2927 = vmatprep.subr.mxu0 0.0
        %2928 = vmatpush1.msra.mxu0 0.0
        %2929 = vmatprep.subr.mxu0 0.0
        %2930 = vmatpush1.msra.mxu0 0.0
        %2931 = vmatprep.subr.mxu0 0.0
        %2932 = vmatpush1.msra.mxu0 0.0
        %2933 = vmatprep.subr.mxu0 0.0
        %2934 = vmatpush1.msra.mxu0 0.0
        %2935 = vmatprep.subr.mxu0 0.0
        %2936 = vmatpush1.msra.mxu0 0.0
        %2937 = vmatprep.subr.mxu0 0.0
        %2938 = vmatpush1.msra.mxu0 0.0
        %2939 = vmatprep.subr.mxu0 0.0
        %2940 = vmatpush1.msra.mxu0 0.0
        %2941 = vmatprep.subr.mxu0 0.0
        %2942 = vmatpush1.msra.mxu0 0.0
        %2943 = vmatprep.subr.mxu0 0.0
        %2944 = vmatpush1.msra.mxu0 0.0
        %2945 = vmatprep.subr.mxu0 0.0
        %2946 = vmatpush1.msra.mxu0 0.0
        %2947 = vmatprep.subr.mxu0 0.0
        %2948 = vmatpush1.msra.mxu0 0.0
        %2949 = vmatprep.subr.mxu0 0.0
        %2950 = vmatpush1.msra.mxu0 0.0
        %2951 = vmatprep.subr.mxu0 0.0
        %2952 = vmatpush1.msra.mxu0 0.0
        %2953 = vmatprep.subr.mxu0 0.0
        %2954 = vmatpush1.msra.mxu0 0.0
        %2955 = vmatprep.mubr.f32.mxu0 0.0
        %2956 = vmatmul.mubr.f32.gmra.mrb[0].mxu0 %v736
        %v2957 = vpop.f32.mrb[0].mxu0
        %v2958 = vadd.f32 %v2889, %v2957
        %v2959 = vpop.f32.mrb[0].mxu0
        %2960 = vmatprep.mubr.f32.mxu0 0.0
        %2961 = vmatmul.mubr.f32.gmra.mrb[0].mxu0 %v737
        %v2962 = vpop.f32.mrb[0].mxu0
        %v2963 = vadd.f32 %v2889, %v2962
        %v2964 = vpop.f32.mrb[0].mxu0
        %2965 = vdwg.mxu0
        %v2966 = vmul.f32 %v2958, 0.17677669
        %v2967 = vmul.f32 %v2963, 0.17677669
        %s2968 = scalar_lea.vmem [#allocation2], 96
        %v2969 = vld [vmem:[%s2968] sm:$0xff]
        %v2970 = vld [vmem:[%s2968 + $0x8] sm:$0xff]
        %v2971 = vld [vmem:[%s2968 + $0x10] sm:$0xff]
        %v2972 = vld [vmem:[%s2968 + $0x18] sm:$0xff]
        %v2974 = vsel %vm1778, %v2966, 0
        %v2977 = vsel %vm1778, %v2967, 0
        %v2980 = vsel %vm1778, %v2969, 0
        %v2983 = vsel %vm1778, %v2970, 0
        %v2986 = vsel %vm1778, %v2971, 0
        %v2989 = vsel %vm1778, %v2972, 0
        %2991 = vmatprep.subr.mxu0 0.0
        %2992 = vmatpush1.xpose.msra.mxu0 %v2980
        %2993 = vmatprep.subr.mxu0 0.0
        %2994 = vmatpush1.xpose.msra.mxu0 %v2983
        %2995 = vmatprep.subr.mxu0 0.0
        %2996 = vmatpush1.xpose.msra.mxu0 %v2986
        %2997 = vmatprep.subr.mxu0 0.0
        %2998 = vmatpush1.xpose.msra.mxu0 %v2989
        %2999 = vmatprep.subr.mxu0 0.0
        %3000 = vmatpush1.xpose.msra.mxu0 0.0
        %3001 = vmatprep.subr.mxu0 0.0
        %3002 = vmatpush1.xpose.msra.mxu0 0.0
        %3003 = vmatprep.subr.mxu0 0.0
        %3004 = vmatpush1.xpose.msra.mxu0 0.0
        %3005 = vmatprep.subr.mxu0 0.0
        %3006 = vmatpush1.xpose.msra.mxu0 0.0
        %3007 = vmatprep.subr.mxu0 0.0
        %3008 = vmatpush1.xpose.msra.mxu0 0.0
        %3009 = vmatprep.subr.mxu0 0.0
        %3010 = vmatpush1.xpose.msra.mxu0 0.0
        %3011 = vmatprep.subr.mxu0 0.0
        %3012 = vmatpush1.xpose.msra.mxu0 0.0
        %3013 = vmatprep.subr.mxu0 0.0
        %3014 = vmatpush1.xpose.msra.mxu0 0.0
        %3015 = vmatprep.subr.mxu0 0.0
        %3016 = vmatpush1.xpose.msra.mxu0 0.0
        %3017 = vmatprep.subr.mxu0 0.0
        %3018 = vmatpush1.xpose.msra.mxu0 0.0
        %3019 = vmatprep.subr.mxu0 0.0
        %3020 = vmatpush1.xpose.msra.mxu0 0.0
        %3021 = vmatprep.subr.mxu0 0.0
        %3022 = vmatpush1.xpose.msra.mxu0 0.0
        %3023 = vmatprep.subr.mxu0 0.0
        %3024 = vmatpush1.xpose.msra.mxu0 0.0
        %3025 = vmatprep.subr.mxu0 0.0
        %3026 = vmatpush1.xpose.msra.mxu0 0.0
        %3027 = vmatprep.subr.mxu0 0.0
        %3028 = vmatpush1.xpose.msra.mxu0 0.0
        %3029 = vmatprep.subr.mxu0 0.0
        %3030 = vmatpush1.xpose.msra.mxu0 0.0
        %3031 = vmatprep.subr.mxu0 0.0
        %3032 = vmatpush1.xpose.msra.mxu0 0.0
        %3033 = vmatprep.subr.mxu0 0.0
        %3034 = vmatpush1.xpose.msra.mxu0 0.0
        %3035 = vmatprep.subr.mxu0 0.0
        %3036 = vmatpush1.xpose.msra.mxu0 0.0
        %3037 = vmatprep.subr.mxu0 0.0
        %3038 = vmatpush1.xpose.msra.mxu0 0.0
        %3039 = vmatprep.subr.mxu0 0.0
        %3040 = vmatpush1.xpose.msra.mxu0 0.0
        %3041 = vmatprep.subr.mxu0 0.0
        %3042 = vmatpush1.xpose.msra.mxu0 0.0
        %3043 = vmatprep.subr.mxu0 0.0
        %3044 = vmatpush1.xpose.msra.mxu0 0.0
        %3045 = vmatprep.subr.mxu0 0.0
        %3046 = vmatpush1.xpose.msra.mxu0 0.0
        %3047 = vmatprep.subr.mxu0 0.0
        %3048 = vmatpush1.xpose.msra.mxu0 0.0
        %3049 = vmatprep.subr.mxu0 0.0
        %3050 = vmatpush1.xpose.msra.mxu0 0.0
        %3051 = vmatprep.subr.mxu0 0.0
        %3052 = vmatpush1.xpose.msra.mxu0 0.0
        %3053 = vmatprep.subr.mxu0 0.0
        %3054 = vmatpush1.xpose.msra.mxu0 0.0
        %3055 = vmatprep.mubr.f32.mxu0 0.0
        %3056 = vmatmul.mubr.f32.gmra.mrb[0].mxu0 %v2974
        %v3057 = vpop.f32.mrb[0].mxu0
        %v3058 = vadd.f32 0.0, %v3057
        %v3059 = vpop.f32.mrb[0].mxu0
        %3060 = vmatprep.mubr.f32.mxu0 0.0
        %3061 = vmatmul.mubr.f32.gmra.mrb[0].mxu0 %v2977
        %v3062 = vpop.f32.mrb[0].mxu0
        %v3063 = vadd.f32 0.0, %v3062
        %v3064 = vpop.f32.mrb[0].mxu0
        %3065 = vdwg.mxu0
        %v3066 = vsel %vm1778, %v3058, -inf
        %3067 = vmax.xlane.f32.xlu0 %v3066
        %v3068 = vpop.xlane.xlu0 %3067
        %v3069 = vsel %vm1778, %v3063, -inf
        %3070 = vmax.xlane.f32.xlu0 %v3069
        %v3071 = vpop.xlane.xlu0 %3070
        %v3072 = vsub.f32 %v3058, %v3068
        %v3073 = vsub.f32 %v3063, %v3071
        %v3074 = vmul.f32 %v3072, 1.442695
        %v3075 = vpow.pop %v3074
        %v3076 = vmul.f32 %v3073, 1.442695
        %v3077 = vpow.pop %v3076
        %v3078 = vsel %vm1778, %v3075, 0.0
        %3079 = vadd.xlane.f32.xlu0 %v3078
        %v3080 = vpop.xlane.xlu0 %3079
        %v3081 = vsel %vm1778, %v3077, 0.0
        %3082 = vadd.xlane.f32.xlu0 %v3081
        %v3083 = vpop.xlane.xlu0 %3082
        %v3084 = vrcp.pop %v3080
        %v3085 = vrcp.pop %v3083
        %v3086 = vmul.f32 %v3075, %v3084
        %v3087 = vmul.f32 %v3077, %v3085
        %s3088 = scalar_lea.vmem %s732, 48 [#allocation26]
        %3089 = vst.msk [vmem:[%s3088] sm:$0xff] %vm1778, %v3086
        %3090 = vst.msk [vmem:[%s3088 + $0x8] sm:$0xff] %vm1778, %v3087
        %s3091 = scalar_lea.vmem [#allocation3], 96
        %v3092 = vld [vmem:[%s3091] sm:$0xff]
        %v3093 = vld [vmem:[%s3091 + $0x8] sm:$0xff]
        %v3094 = vld [vmem:[%s3091 + $0x10] sm:$0xff]
        %v3095 = vld [vmem:[%s3091 + $0x18] sm:$0xff]
        %v3097 = vsel %vm1778, %v3086, 0
        %v3100 = vsel %vm1778, %v3087, 0
        %3102 = vmatprep.subr.mxu0 0.0
        %3103 = vmatpush1.msra.mxu0 %v3092
        %3104 = vmatprep.subr.mxu0 0.0
        %3105 = vmatpush1.msra.mxu0 %v3093
        %3106 = vmatprep.subr.mxu0 0.0
        %3107 = vmatpush1.msra.mxu0 %v3094
        %3108 = vmatprep.subr.mxu0 0.0
        %3109 = vmatpush1.msra.mxu0 %v3095
        %3110 = vmatprep.subr.mxu0 0.0
        %3111 = vmatpush1.msra.mxu0 0.0
        %3112 = vmatprep.subr.mxu0 0.0
        %3113 = vmatpush1.msra.mxu0 0.0
        %3114 = vmatprep.subr.mxu0 0.0
        %3115 = vmatpush1.msra.mxu0 0.0
        %3116 = vmatprep.subr.mxu0 0.0
        %3117 = vmatpush1.msra.mxu0 0.0
        %3118 = vmatprep.subr.mxu0 0.0
        %3119 = vmatpush1.msra.mxu0 0.0
        %3120 = vmatprep.subr.mxu0 0.0
        %3121 = vmatpush1.msra.mxu0 0.0
        %3122 = vmatprep.subr.mxu0 0.0
        %3123 = vmatpush1.msra.mxu0 0.0
        %3124 = vmatprep.subr.mxu0 0.0
        %3125 = vmatpush1.msra.mxu0 0.0
        %3126 = vmatprep.subr.mxu0 0.0
        %3127 = vmatpush1.msra.mxu0 0.0
        %3128 = vmatprep.subr.mxu0 0.0
        %3129 = vmatpush1.msra.mxu0 0.0
        %3130 = vmatprep.subr.mxu0 0.0
        %3131 = vmatpush1.msra.mxu0 0.0
        %3132 = vmatprep.subr.mxu0 0.0
        %3133 = vmatpush1.msra.mxu0 0.0
        %3134 = vmatprep.subr.mxu0 0.0
        %3135 = vmatpush1.msra.mxu0 0.0
        %3136 = vmatprep.subr.mxu0 0.0
        %3137 = vmatpush1.msra.mxu0 0.0
        %3138 = vmatprep.subr.mxu0 0.0
        %3139 = vmatpush1.msra.mxu0 0.0
        %3140 = vmatprep.subr.mxu0 0.0
        %3141 = vmatpush1.msra.mxu0 0.0
        %3142 = vmatprep.subr.mxu0 0.0
        %3143 = vmatpush1.msra.mxu0 0.0
        %3144 = vmatprep.subr.mxu0 0.0
        %3145 = vmatpush1.msra.mxu0 0.0
        %3146 = vmatprep.subr.mxu0 0.0
        %3147 = vmatpush1.msra.mxu0 0.0
        %3148 = vmatprep.subr.mxu0 0.0
        %3149 = vmatpush1.msra.mxu0 0.0
        %3150 = vmatprep.subr.mxu0 0.0
        %3151 = vmatpush1.msra.mxu0 0.0
        %3152 = vmatprep.subr.mxu0 0.0
        %3153 = vmatpush1.msra.mxu0 0.0
        %3154 = vmatprep.subr.mxu0 0.0
        %3155 = vmatpush1.msra.mxu0 0.0
        %3156 = vmatprep.subr.mxu0 0.0
        %3157 = vmatpush1.msra.mxu0 0.0
        %3158 = vmatprep.subr.mxu0 0.0
        %3159 = vmatpush1.msra.mxu0 0.0
        %3160 = vmatprep.subr.mxu0 0.0
        %3161 = vmatpush1.msra.mxu0 0.0
        %3162 = vmatprep.subr.mxu0 0.0
        %3163 = vmatpush1.msra.mxu0 0.0
        %3164 = vmatprep.subr.mxu0 0.0
        %3165 = vmatpush1.msra.mxu0 0.0
        %3166 = vmatprep.mubr.f32.mxu0 0.0
        %3167 = vmatmul.mubr.f32.gmra.mrb[0].mxu0 %v3097
        %v3168 = vpop.f32.mrb[0].mxu0
        %v3169 = vadd.f32 0.0, %v3168
        %v3170 = vpop.f32.mrb[0].mxu0
        %3171 = vmatprep.mubr.f32.mxu0 0.0
        %3172 = vmatmul.mubr.f32.gmra.mrb[0].mxu0 %v3100
        %v3173 = vpop.f32.mrb[0].mxu0
        %v3174 = vadd.f32 0.0, %v3173
        %v3175 = vpop.f32.mrb[0].mxu0
        %3176 = vdwg.mxu0
        %s3177 = scalar_lea.vmem [#allocation19], 96
        %v3178 = vld [vmem:[%s3177] sm:$0xff]
        %v3179 = vld [vmem:[%s3177 + $0x8] sm:$0xff]
        %v3180 = vld [vmem:[%s3177 + $0x10] sm:$0xff]
        %v3181 = vld [vmem:[%s3177 + $0x18] sm:$0xff]
        %v3183 = vsel %vm1778, %v3169, 0
        %v3186 = vsel %vm1778, %v3174, 0
        %3188 = vmatprep.subr.mxu0 0.0
        %3189 = vmatpush1.msra.mxu0 %v3178
        %3190 = vmatprep.subr.mxu0 0.0
        %3191 = vmatpush1.msra.mxu0 %v3179
        %3192 = vmatprep.subr.mxu0 0.0
        %3193 = vmatpush1.msra.mxu0 %v3180
        %3194 = vmatprep.subr.mxu0 0.0
        %3195 = vmatpush1.msra.mxu0 %v3181
        %3196 = vmatprep.subr.mxu0 0.0
        %3197 = vmatpush1.msra.mxu0 0.0
        %3198 = vmatprep.subr.mxu0 0.0
        %3199 = vmatpush1.msra.mxu0 0.0
        %3200 = vmatprep.subr.mxu0 0.0
        %3201 = vmatpush1.msra.mxu0 0.0
        %3202 = vmatprep.subr.mxu0 0.0
        %3203 = vmatpush1.msra.mxu0 0.0
        %3204 = vmatprep.subr.mxu0 0.0
        %3205 = vmatpush1.msra.mxu0 0.0
        %3206 = vmatprep.subr.mxu0 0.0
        %3207 = vmatpush1.msra.mxu0 0.0
        %3208 = vmatprep.subr.mxu0 0.0
        %3209 = vmatpush1.msra.mxu0 0.0
        %3210 = vmatprep.subr.mxu0 0.0
        %3211 = vmatpush1.msra.mxu0 0.0
        %3212 = vmatprep.subr.mxu0 0.0
        %3213 = vmatpush1.msra.mxu0 0.0
        %3214 = vmatprep.subr.mxu0 0.0
        %3215 = vmatpush1.msra.mxu0 0.0
        %3216 = vmatprep.subr.mxu0 0.0
        %3217 = vmatpush1.msra.mxu0 0.0
        %3218 = vmatprep.subr.mxu0 0.0
        %3219 = vmatpush1.msra.mxu0 0.0
        %3220 = vmatprep.subr.mxu0 0.0
        %3221 = vmatpush1.msra.mxu0 0.0
        %3222 = vmatprep.subr.mxu0 0.0
        %3223 = vmatpush1.msra.mxu0 0.0
        %3224 = vmatprep.subr.mxu0 0.0
        %3225 = vmatpush1.msra.mxu0 0.0
        %3226 = vmatprep.subr.mxu0 0.0
        %3227 = vmatpush1.msra.mxu0 0.0
        %3228 = vmatprep.subr.mxu0 0.0
        %3229 = vmatpush1.msra.mxu0 0.0
        %3230 = vmatprep.subr.mxu0 0.0
        %3231 = vmatpush1.msra.mxu0 0.0
        %3232 = vmatprep.subr.mxu0 0.0
        %3233 = vmatpush1.msra.mxu0 0.0
        %3234 = vmatprep.subr.mxu0 0.0
        %3235 = vmatpush1.msra.mxu0 0.0
        %3236 = vmatprep.subr.mxu0 0.0
        %3237 = vmatpush1.msra.mxu0 0.0
        %3238 = vmatprep.subr.mxu0 0.0
        %3239 = vmatpush1.msra.mxu0 0.0
        %3240 = vmatprep.subr.mxu0 0.0
        %3241 = vmatpush1.msra.mxu0 0.0
        %3242 = vmatprep.subr.mxu0 0.0
        %3243 = vmatpush1.msra.mxu0 0.0
        %3244 = vmatprep.subr.mxu0 0.0
        %3245 = vmatpush1.msra.mxu0 0.0
        %3246 = vmatprep.subr.mxu0 0.0
        %3247 = vmatpush1.msra.mxu0 0.0
        %3248 = vmatprep.subr.mxu0 0.0
        %3249 = vmatpush1.msra.mxu0 0.0
        %3250 = vmatprep.subr.mxu0 0.0
        %3251 = vmatpush1.msra.mxu0 0.0
        %3252 = vmatprep.mubr.f32.mxu0 0.0
        %3253 = vmatmul.mubr.f32.gmra.mrb[0].mxu0 %v3183
        %v3254 = vpop.f32.mrb[0].mxu0
        %v3255 = vadd.f32 0.0, %v3254
        %v3256 = vpop.f32.mrb[0].mxu0
        %3257 = vmatprep.mubr.f32.mxu0 0.0
        %3258 = vmatmul.mubr.f32.gmra.mrb[0].mxu0 %v3186
        %v3259 = vpop.f32.mrb[0].mxu0
        %v3260 = vadd.f32 0.0, %v3259
        %v3261 = vpop.f32.mrb[0].mxu0
        %3262 = vdwg.mxu0
        %v3263 = vadd.f32 %v2864, %v3255
        %v3264 = vadd.f32 %v2865, %v3260
        %3265 = vadd.xlane.f32.xlu0 %v3263
        %v3266 = vpop.xlane.xlu0 %3265
        %3267 = vadd.xlane.f32.xlu0 %v3264
        %v3268 = vpop.xlane.xlu0 %3267
        %v3269 = vmul.f32 %v3266, 0.0078125
        %v3270 = vmul.f32 %v3268, 0.0078125
        %v3271 = vsub.f32 %v3263, %v3269
        %v3272 = vsub.f32 %v3264, %v3270
        %v3273 = vmul.f32 %v3271, %v3271
        %v3274 = vmul.f32 %v3272, %v3272
        %3275 = vadd.xlane.f32.xlu0 %v3273
        %v3276 = vpop.xlane.xlu0 %3275
        %3277 = vadd.xlane.f32.xlu0 %v3274
        %v3278 = vpop.xlane.xlu0 %3277
        %v3279 = vmul.f32 %v3276, 0.0078125
        %v3280 = vmul.f32 %v3278, 0.0078125
        %v3281 = vadd.f32 %v3279, 1e-05
        %v3282 = vadd.f32 %v3280, 1e-05
        %v3283 = vrsqrt.pop %v3281
        %v3284 = vrsqrt.pop %v3282
        %v3285 = vmul.f32 %v3271, %v3283
        %v3286 = vmul.f32 %v3272, %v3284
        %v3287 = vld [vmem:[#allocation22] sm:$0x1]
        %v3289 = vlaneseq
        %v3290 = vshrl.u32 %v3289, 7
        %v3291 = vsub.s32 0, %v3290
        %v3292 = vrot.slane %v3287, %v3291
        %v3294 = vmul.f32 %v3285, %v3292
        %v3295 = vmul.f32 %v3286, %v3292
        %v3296 = vld [vmem:[#allocation24] sm:$0x1]
        %v3298 = vlaneseq
        %v3299 = vshrl.u32 %v3298, 7
        %v3300 = vsub.s32 0, %v3299
        %v3301 = vrot.slane %v3296, %v3300
        %v3303 = vadd.f32 %v3294, %v3301
        %v3304 = vadd.f32 %v3295, %v3301
        %3305 = vst [vmem:[%s725] sm:$0xff] %v3303
        %3306 = vst [vmem:[%s725 + $0x8] sm:$0xff] %v3304
        %s3307 = sand.u32 %s355, 1
        %s3308 = scalar_lea.sflag [#allocation6], %s3307
        %s3309 = sand.u32 %s355, 1
        %s3310 = smul.addr %s3309, 16
        %s3311 = scalar_lea.vmem [#allocation25], %s3310
        %s3312 = sand.u32 %s383, 1
        %s3313 = scalar_lea.sflag [#allocation27], %s3312
        %s3314 = sand.u32 %s383, 1
        %s3315 = smul.addr %s3314, 64
        %s3316 = scalar_lea.vmem [#allocation26], %s3315
        // Predicated region
        $region129: #{tpu_custom_call.1} parent=71 // pred_check
          %p3317 = pneg %p365
        $region130: #{tpu_custom_call.1} parent=71 // pred_check_branch
          %3319 = sbr.rel (%p3317) target = $region132
        $region131: #{tpu_custom_call.1} parent=71 // pred_region
          %s3320 = smul.u32 2, %s48
          %s3322 = ssub.s32 256, 256
          %3323 = vsyncadd %s3308, %s3322
          %s3324 = smul.addr %s47, 4
          %s3325 = sadd.s32 %s3320, %s3324
          %s3326 = smul.addr %s3325, 128
          %s3327 = scalar_lea.hbm %s13, %s3326
          %s3328 = sshll.u32 %s3311, 4
          %s3329 = int_to_ptr.vmem [resolvable:$true] %s3328
          %3334 = dma.vmem_to_hbm [thread:$0]  %s3329, 256, %s3327, %s3308, 128, 128, 8
        $region132: #{tpu_custom_call.1} parent=71 // pred_fallthru
          _
        // Predicated region
        $region133: #{tpu_custom_call.1} parent=71 // pred_check
          %p3335 = pneg %p393
        $region134: #{tpu_custom_call.1} parent=71 // pred_check_branch
          %3337 = sbr.rel (%p3335) target = $region136
        $region135: #{tpu_custom_call.1} parent=71 // pred_region
          #allocation29 [shape = 'u32[6]{0}', space=smem, size = 0x18, scoped, tag = 'DMA stride descriptor']
          %s3338 = smul.u32 2, %s48
          %s3340 = ssub.s32 1024, 1024
          %3341 = vsyncadd %s3313, %s3340
          %s3342 = smul.addr %s47, 16
          %s3343 = sadd.s32 %s3338, %s3342
          %s3344 = smul.addr %s3343, 128
          %s3345 = scalar_lea.hbm %s14, %s3344
          %s3347 = sshll.u32 1, 14
          %s3348 = sxor.u32 4294967295, %s3347
          %s3351 = sshll.u32 7, 18
          %s3352 = sxor.u32 4294967295, %s3351
          %s3353 = sand.u32 0, %s3352
          %s3355 = sor.u32 %s3353, 0
          %s3357 = sshll.u32 3, 24
          %s3358 = sxor.u32 4294967295, %s3357
          %s3359 = sand.u32 %s3355, %s3358
          %s3361 = sor.u32 %s3359, 0
          %s3362 = sshll.u32 %s3316, 4
          %s3363 = int_to_ptr.vmem [resolvable:$true] %s3362
          %3369 = sst [smem:[#allocation29]] 256
          %s3370 = scalar_lea.smem [#allocation29], 1
          %3371 = sst [smem:[%s3370]] 512
          %s3372 = scalar_lea.smem [#allocation29], 2
          %3373 = sst [smem:[%s3372]] 2
          %s3374 = scalar_lea.smem [#allocation29], 3
          %3375 = sst [smem:[%s3374]] 128
          %s3376 = scalar_lea.smem [#allocation29], 4
          %3377 = sst [smem:[%s3376]] 128
          %s3378 = scalar_lea.smem [#allocation29], 5
          %3379 = sst [smem:[%s3378]] 8
          %3381 = dma.general %s3363, 1024, %s3345, %s3313, [#allocation28], [#allocation29], %s3361, 0
        $region136: #{tpu_custom_call.1} parent=71 // pred_fallthru
          _
      $region72: #{tpu_custom_call.1} parent=5 // pred_fallthru
        _
      %p3382 = scmp.le.s32.totalorder 2, %s38
      // Predicated region
      $region137: #{tpu_custom_call.1} parent=5 // pred_check
        %p3383 = pneg %p3382
      $region138: #{tpu_custom_call.1} parent=5 // pred_check_branch
        %3385 = sbr.rel (%p3383) target = $region140
      $region139: #{tpu_custom_call.1} parent=5 // pred_region
        %s3386 = ssub.s32 %s38, 2
        // Predicated region
        $region141: #{tpu_custom_call.1} parent=139 // pred_check
          %p3387 = pneg %p371
        $region142: #{tpu_custom_call.1} parent=139 // pred_check_branch
          %3389 = sbr.rel (%p3387) target = $region144
        $region143: #{tpu_custom_call.1} parent=139 // pred_region
          %s3390 = sand.u32 %s356, 1
          %s3391 = scalar_lea.sflag [#allocation6], %s3390
          %s3392 = sand.u32 %s356, 1
          %s3393 = smul.addr %s3392, 16
          %s3394 = scalar_lea.vmem [#allocation25], %s3393
          %3395 = dma.done %s3391, 256
        $region144: #{tpu_custom_call.1} parent=139 // pred_fallthru
          _
        // Predicated region
        $region145: #{tpu_custom_call.1} parent=139 // pred_check
          %p3396 = pneg %p399
        $region146: #{tpu_custom_call.1} parent=139 // pred_check_branch
          %3398 = sbr.rel (%p3396) target = $region148
        $region147: #{tpu_custom_call.1} parent=139 // pred_region
          %s3399 = sand.u32 %s384, 1
          %s3400 = scalar_lea.sflag [#allocation27], %s3399
          %s3401 = sand.u32 %s384, 1
          %s3402 = smul.addr %s3401, 64
          %s3403 = scalar_lea.vmem [#allocation26], %s3402
          %3404 = dma.done %s3400, 1024
        $region148: #{tpu_custom_call.1} parent=139 // pred_fallthru
          _
      $region140: #{tpu_custom_call.1} parent=5 // pred_fallthru
        _
    $region6: #{tpu_custom_call.1} parent=1 // loop_footer
      %s42 = sadd.s32 1, %s38
    $region7: #{tpu_custom_call.1} parent=1 // loop_footer_branch
      %37 = sbr.rel target = $region3
    $region8: #{tpu_custom_call.1} parent=1 // loop_exit
      _
    %3405 = vsyncpa [#allocation5], 1
    %s3406 = scalar_lea.sflag [#allocation5], 1
    %3407 = vsyncpa %s3406, 1
    %3408 = vsyncpa [#allocation8], 1
    %s3409 = scalar_lea.sflag [#allocation8], 1
    %3410 = vsyncpa %s3409, 1
    %3411 = vsyncpa [#allocation11], 1
    %3412 = vsyncpa [#allocation14], 1
    %3413 = vsyncpa [#allocation17], 1
    %3414 = vsyncpa [#allocation20], 1
    %3415 = vsyncpa [#allocation23], 1
    %3416 = vsyncpa [#allocation6], 1
    %s3417 = scalar_lea.sflag [#allocation6], 1
    %3418 = vsyncpa %s3417, 1
    %3419 = vsyncpa [#allocation27], 1
    %s3420 = scalar_lea.sflag [#allocation27], 1
    %3421 = vsyncpa %s3420, 1

</llo_original>
